<compile_context>
chip_gen: v5e
topology: v5e:2x2
jax: 0.10.0
libtpu: 0.0.40
codegen_flags: <defaults>
</compile_context>

<pallas_src>
import jax
import jax.numpy as jnp
from jax import lax
from jax.experimental import pallas as pl
from jax.experimental.pallas import tpu as pltpu


# ----------------------------------------------------------------------------
# Fused kernel factory.
# ----------------------------------------------------------------------------
def _make_fused_kernel(B, L, H, T, num_layers, C1, C2):
    L2 = L // 2
    H4 = 4 * H
    n_extra = 6 * (num_layers - 1)
    f32 = jnp.float32

    def kernel(*refs):
        (x_ref, gxwf_ref, gxbf_ref, whhf_ref,
         gxwb_ref, gxbb_ref, whhb_ref) = refs[:7]
        extra_refs = refs[7:7 + n_extra]
        (c1w_ref, c1s_ref, c1sh_ref,
         c2w_ref, c2s_ref, c2sh_ref,
         c3w_ref, c3s_ref, c3sh_ref) = refs[7 + n_extra:16 + n_extra]
        out_ref = refs[16 + n_extra]
        u1_ref, u2_ref, u3_ref = refs[17 + n_extra:20 + n_extra]

        # ---- biLSTM layer 0: fc folded into the hoisted input projection ----
        # One matmul per direction produces all T gate pre-activations up front
        # (bias already included); only h @ W_hh stays in the recurrence.
        x = x_ref[...]                                            # (B, H)
        gx_f = (jnp.dot(x, gxwf_ref[...], preferred_element_type=f32)
                + gxbf_ref[...])                                  # (B, T*4H)
        gx_b = (jnp.dot(x, gxwb_ref[...], preferred_element_type=f32)
                + gxbb_ref[...])

        def run_dir(gate_x_at, whh):
            """Fully-unrolled LSTM recurrence; gate_x_at(t) -> (B, 4H)."""
            h = jnp.zeros((B, H), f32)
            c = jnp.zeros((B, H), f32)
            outs = []
            for t in range(T):                                    # static unroll
                g = gate_x_at(t) + jnp.dot(h, whh,
                                           preferred_element_type=f32)
                i = jax.nn.sigmoid(g[:, 0 * H:1 * H])
                f = jax.nn.sigmoid(g[:, 1 * H:2 * H])
                gg = jnp.tanh(g[:, 2 * H:3 * H])
                o = jax.nn.sigmoid(g[:, 3 * H:4 * H])
                c = f * c + i * gg
                h = o * jnp.tanh(c)
                outs.append(h)
            return outs

        hs_f = run_dir(lambda t: gx_f[:, t * H4:(t + 1) * H4], whhf_ref[...])
        hs_b = run_dir(lambda t: gx_b[:, (T - 1 - t) * H4:(T - t) * H4],
                       whhb_ref[...])[::-1]
        hs = [jnp.concatenate([a, b], axis=-1) for a, b in zip(hs_f, hs_b)]

        # ---- biLSTM layers >= 1 (generic; input projection hoisted) ----
        for li in range(1, num_layers):
            wf_r, bf_r, whf_r, wb_r, bb_r, whb_r = \
                extra_refs[(li - 1) * 6: li * 6]
            xcat = jnp.concatenate(hs, axis=0)                    # (T*B, 2H)
            gxl_f = (jnp.dot(xcat, wf_r[...], preferred_element_type=f32)
                     + bf_r[...])
            gxl_b = (jnp.dot(xcat, wb_r[...], preferred_element_type=f32)
                     + bb_r[...])
            hs_f = run_dir(lambda t: gxl_f[t * B:(t + 1) * B, :], whf_r[...])
            hs_b = run_dir(lambda t: gxl_b[(T - 1 - t) * B:(T - t) * B, :],
                           whb_r[...])[::-1]
            hs = [jnp.concatenate([a, b], axis=-1) for a, b in zip(hs_f, hs_b)]

        # ---- fused upsample x2 + zero-pad into VMEM scratch (conv1 input) ----
        zc1 = jnp.zeros((B, 2 * H), f32)
        u1_ref[0] = zc1
        u1_ref[L2 + 1] = zc1
        for t in range(T):
            u1_ref[1 + 2 * t] = hs[t]
            u1_ref[2 + 2 * t] = hs[t]

        def conv_im2col(scr_ref, lout, w_ref, s_ref, sh_ref, act):
            """Conv1d(k=3, s=1, p=1) + folded (bias+BN) + optional ReLU.
            scr_ref: (lout+2, B, Cin) zero-padded input.  Returns (lout*B, Cout),
            rows ordered (l, b)."""
            xp = scr_ref[...]
            cin = xp.shape[2]
            a = jnp.concatenate(
                [xp[0:lout], xp[1:lout + 1], xp[2:lout + 2]], axis=-1)
            a = a.reshape(lout * B, 3 * cin)
            y = jnp.dot(a, w_ref[...], preferred_element_type=f32)
            y = y * s_ref[...] + sh_ref[...]
            if act:
                y = jnp.maximum(y, 0.0)                           # ReLU
            return y

        # ---- conv1 + BN1 + ReLU (dropout = identity in eval mode) ----
        y1 = conv_im2col(u1_ref, L2, c1w_ref, c1s_ref, c1sh_ref, True)
        y1_3d = y1.reshape(L2, B, C1)

        # ---- fused upsample x2 + zero-pad (conv2 input) ----
        zc2 = jnp.zeros((B, C1), f32)
        u2_ref[0] = zc2
        u2_ref[L + 1] = zc2
        for l in range(L2):
            blk = y1_3d[l]
            u2_ref[1 + 2 * l] = blk
            u2_ref[2 + 2 * l] = blk

        # ---- conv2 + BN2 + ReLU ----
        y2 = conv_im2col(u2_ref, L, c2w_ref, c2s_ref, c2sh_ref, True)

        # ---- zero-pad (conv3 input) ----
        zc3 = jnp.zeros((B, C2), f32)
        u3_ref[0] = zc3
        u3_ref[L + 1] = zc3
        u3_ref[1:L + 1] = y2.reshape(L, B, C2)

        # ---- conv3 (Cout=1, no BN / activation) ----
        y3 = conv_im2col(u3_ref, L, c3w_ref, c3s_ref, c3sh_ref, False)
        out_ref[...] = y3                                         # (L*B, 1)

    return kernel


# ----------------------------------------------------------------------------
# Parameter init (deterministic, torch-like layout) and one-time weight prep.
# ----------------------------------------------------------------------------
def init_params(key, L, H, num_layers, c1, c2):
    keys = iter(jax.random.split(key, 64))

    def u(shape, scale=0.1):
        return jax.random.uniform(next(keys), shape, jnp.float32, -scale, scale)

    p = {}
    # fc: Linear(H, H * (L//4)); stored pre-transposed (in, out)
    p["fc_w"] = u((H, H * (L // 4)))
    p["fc_b"] = u((1, H * (L // 4)))

    layers = []
    din = H
    for _ in range(num_layers):
        layer = {}
        for d in ("f", "b"):
            layer["wih_" + d] = u((din, 4 * H))   # (Din, 4H), pre-transposed
            layer["whh_" + d] = u((H, 4 * H))     # (H, 4H),   pre-transposed
            layer["b_" + d] = u((1, 4 * H))       # b_ih + b_hh combined
        layers.append(layer)
        din = 2 * H
    p["lstm"] = layers

    # conv weights stored as (K=3, Cin, Cout)  (torch is (Cout, Cin, K))
    p["conv1_w"] = u((3, 2 * H, c1)); p["conv1_b"] = u((1, c1))
    p["conv2_w"] = u((3, c1, c2));    p["conv2_b"] = u((1, c2))
    p["conv3_w"] = u((3, c2, 1));     p["conv3_b"] = u((1, 1))

    # BatchNorm1d eval-mode, PyTorch init: gamma=1, beta=0, mean=0, var=1
    eps = 1e-5
    for name, c in (("bn1", c1), ("bn2", c2)):
        gamma = jnp.ones((1, c), jnp.float32)
        beta = jnp.zeros((1, c), jnp.float32)
        mean = jnp.zeros((1, c), jnp.float32)
        var = jnp.ones((1, c), jnp.float32)
        scale = gamma / jnp.sqrt(var + eps)
        p[name + "_scale"] = scale
        p[name + "_shift"] = beta - mean * scale
    return p


def prepare_params(p, L, H):
    """One-time weight folding:
      * fc folded into the layer-0 LSTM input projection per direction,
      * conv weights reshaped to im2col layout (3*Cin, Cout),
      * conv bias + eval-mode BN folded into per-channel scale/shift."""
    T = L // 4
    prep = {}
    fc_w3 = p["fc_w"].reshape(H, T, H)            # (Hin, T, H)
    fc_b2 = p["fc_b"].reshape(T, H)
    lay0 = p["lstm"][0]
    for d in ("f", "b"):
        wih = lay0["wih_" + d]                    # (H, 4H)
        b = lay0["b_" + d]                        # (1, 4H)
        gxw = jnp.einsum("ith,hg->itg", fc_w3, wih).reshape(H, T * 4 * H)
        gxb = (fc_b2 @ wih + b).reshape(1, T * 4 * H)
        prep["gxw_" + d] = gxw
        prep["gxb_" + d] = gxb
        prep["whh0_" + d] = lay0["whh_" + d]
    prep["extra"] = [
        [lay["wih_f"], lay["b_f"], lay["whh_f"],
         lay["wih_b"], lay["b_b"], lay["whh_b"]]
        for lay in p["lstm"][1:]
    ]
    conv_sets = [
        (p["conv1_w"], p["conv1_b"], p["bn1_scale"], p["bn1_shift"]),
        (p["conv2_w"], p["conv2_b"], p["bn2_scale"], p["bn2_shift"]),
        (p["conv3_w"], p["conv3_b"], None, None),
    ]
    for idx, (cw, cb, bs, bsh) in enumerate(conv_sets, start=1):
        k, cin, cout = cw.shape
        if bs is None:
            bs = jnp.ones((1, cout), jnp.float32)
            bsh = jnp.zeros((1, cout), jnp.float32)
        prep[f"c{idx}_w"] = cw.reshape(k * cin, cout)      # im2col weight
        prep[f"c{idx}_scale"] = bs
        prep[f"c{idx}_shift"] = bsh + cb * bs              # bias folded into shift
    return prep


# ----------------------------------------------------------------------------
# Full forward pass: one fused pallas_call.
# ----------------------------------------------------------------------------
def cnn_lstm_decoder_forward(params, x, L, H):
    """x: (B, H) -> (B, L).  Eval-mode forward of CNNLSTMDecoder."""
    B = x.shape[0]
    T = L // 4
    L2 = L // 2
    num_layers = len(params["lstm"])
    C1 = params["conv1_w"].shape[2]
    C2 = params["conv2_w"].shape[2]

    prep = prepare_params(params, L, H)   # pure-JAX, one-time weight folding

    inputs = [x,
              prep["gxw_f"], prep["gxb_f"], prep["whh0_f"],
              prep["gxw_b"], prep["gxb_b"], prep["whh0_b"]]
    for lay in prep["extra"]:
        inputs += lay
    inputs += [prep["c1_w"], prep["c1_scale"], prep["c1_shift"],
               prep["c2_w"], prep["c2_scale"], prep["c2_shift"],
               prep["c3_w"], prep["c3_scale"], prep["c3_shift"]]

    kernel = _make_fused_kernel(B, L, H, T, num_layers, C1, C2)
    out = pl.pallas_call(
        kernel,
        out_shape=jax.ShapeDtypeStruct((L * B, 1), jnp.float32),
        in_specs=[pl.BlockSpec(memory_space=pltpu.MemorySpace.VMEM)
                  for _ in inputs],
        out_specs=pl.BlockSpec(memory_space=pltpu.MemorySpace.VMEM),
        scratch_shapes=[
            pltpu.VMEM((L2 + 2, B, 2 * H), jnp.float32),  # padded upsampled LSTM out
            pltpu.VMEM((L + 2, B, C1), jnp.float32),      # padded upsampled conv1 out
            pltpu.VMEM((L + 2, B, C2), jnp.float32),      # padded conv2 out
        ],
    )(*inputs)
    # Kernel emits rows in (l, b) order; final (B, L) reshape/transpose on 256
    # bytes is the only XLA glue left in the whole forward pass.
    return out.reshape(L, B).T


# ----------------------------------------------------------------------------
# Pure-JAX reference (same semantics, un-folded params) for a sanity check.
# ----------------------------------------------------------------------------
def reference_forward(params, x, L, H):
    B = x.shape[0]
    y = x @ params["fc_w"] + params["fc_b"][0]
    y = y.reshape(B, L // 4, H)

    def lstm_dir_ref(xseq, wih, whh, b):
        Hh = whh.shape[0]

        def step(carry, xt):
            h, c = carry
            g = xt @ wih + h @ whh + b[0]
            i = jax.nn.sigmoid(g[:, :Hh])
            f = jax.nn.sigmoid(g[:, Hh:2 * Hh])
            gg = jnp.tanh(g[:, 2 * Hh:3 * Hh])
            o = jax.nn.sigmoid(g[:, 3 * Hh:])
            c = f * c + i * gg
            h = o * jnp.tanh(c)
            return (h, c), h

        h0 = jnp.zeros((B, Hh), jnp.float32)
        c0 = jnp.zeros((B, Hh), jnp.float32)
        _, hs = lax.scan(step, (h0, c0), jnp.swapaxes(xseq, 0, 1))
        return jnp.swapaxes(hs, 0, 1)

    h = y
    for layer in params["lstm"]:
        fw = lstm_dir_ref(h, layer["wih_f"], layer["whh_f"], layer["b_f"])
        bw = lstm_dir_ref(h[:, ::-1, :], layer["wih_b"], layer["whh_b"],
                          layer["b_b"])[:, ::-1, :]
        h = jnp.concatenate([fw, bw], axis=-1)
    y = h

    def conv_ref(x_, w, b, scale, shift, act):
        xp = jnp.pad(x_, ((0, 0), (1, 1), (0, 0)))
        Lx = x_.shape[1]
        out = sum(jnp.einsum("blc,cd->bld", xp[:, k:k + Lx, :], w[k])
                  for k in range(3)) + b[0]
        out = out * scale[0] + shift[0]
        return jnp.maximum(out, 0.0) if act else out

    y = jnp.repeat(y, 2, axis=1)
    y = conv_ref(y, params["conv1_w"], params["conv1_b"],
                 params["bn1_scale"], params["bn1_shift"], True)
    y = jnp.repeat(y, 2, axis=1)
    y = conv_ref(y, params["conv2_w"], params["conv2_b"],
                 params["bn2_scale"], params["bn2_shift"], True)
    y = conv_ref(y, params["conv3_w"], params["conv3_b"],
                 jnp.ones((1, 1), jnp.float32),
                 jnp.zeros((1, 1), jnp.float32), False)
    return y[:, :, 0]


if __name__ == "__main__":
    # Config consistent with the module: sequence_length=32, hidden_size=32,
    # num_layers=1, conv1_out_channels=16, conv2_out_channels=8, batch=2.
    L, H, NUM_LAYERS, C1, C2, B = 32, 32, 1, 16, 8, 2

    key = jax.random.PRNGKey(0)
    pkey, xkey = jax.random.split(key)
    params = init_params(pkey, L, H, NUM_LAYERS, C1, C2)
    x = jax.random.normal(xkey, (B, H), jnp.float32)

    out = cnn_lstm_decoder_forward(params, x, L, H)
    out = jax.block_until_ready(out)

    assert out.shape == (B, L), out.shape
    ref = reference_forward(params, x, L, H)
    assert bool(jnp.all(jnp.isfinite(out)))
    err = float(jnp.max(jnp.abs(out - ref)))
    assert bool(jnp.allclose(out, ref, atol=2e-3, rtol=2e-3)), err

    print("KERNEL_OK")
</pallas_src>

<mosaic_0001>
module attributes {stable_mosaic.version = 11 : i64} {
  func.func @kernel(%arg0: memref<2x32xf32, #tpu.memory_space<vmem>>, %arg1: memref<32x1024xf32, #tpu.memory_space<vmem>>, %arg2: memref<1x1024xf32, #tpu.memory_space<vmem>>, %arg3: memref<32x128xf32, #tpu.memory_space<vmem>>, %arg4: memref<32x1024xf32, #tpu.memory_space<vmem>>, %arg5: memref<1x1024xf32, #tpu.memory_space<vmem>>, %arg6: memref<32x128xf32, #tpu.memory_space<vmem>>, %arg7: memref<192x16xf32, #tpu.memory_space<vmem>>, %arg8: memref<1x16xf32, #tpu.memory_space<vmem>>, %arg9: memref<1x16xf32, #tpu.memory_space<vmem>>, %arg10: memref<48x8xf32, #tpu.memory_space<vmem>>, %arg11: memref<1x8xf32, #tpu.memory_space<vmem>>, %arg12: memref<1x8xf32, #tpu.memory_space<vmem>>, %arg13: memref<24x1xf32, #tpu.memory_space<vmem>>, %arg14: memref<1x1xf32, #tpu.memory_space<vmem>>, %arg15: memref<1x1xf32, #tpu.memory_space<vmem>>, %arg16: memref<64x1xf32, #tpu.memory_space<vmem>>, %arg17: memref<18x2x64xf32, #tpu.memory_space<vmem>>, %arg18: memref<34x2x16xf32, #tpu.memory_space<vmem>>, %arg19: memref<34x2x8xf32, #tpu.memory_space<vmem>>) attributes {dimension_semantics = [], scalar_prefetch = 0 : i64, scratch_operands = 3 : i64, tpu.core_type = #tpu.core_type<tc>} {
    %c0 = arith.constant 0 : index
    %c0_0 = arith.constant 0 : index
    %0 = vector.load %arg0[%c0, %c0_0] : memref<2x32xf32, #tpu.memory_space<vmem>>, vector<2x32xf32>
    %c0_1 = arith.constant 0 : index
    %c0_2 = arith.constant 0 : index
    %1 = vector.load %arg1[%c0_1, %c0_2] : memref<32x1024xf32, #tpu.memory_space<vmem>>, vector<32x1024xf32>
    %cst = arith.constant dense<0.000000e+00> : vector<2x1024xf32>
    %2 = tpu.matmul %0, %1, %cst {dimension_numbers = #tpu.dot_dimension_numbers<[1], [0], [0], [1], [0, 0, 1, 1], [], []>} : vector<2x32xf32>, vector<32x1024xf32>, vector<2x1024xf32> -> vector<2x1024xf32>
    %c0_3 = arith.constant 0 : index
    %c0_4 = arith.constant 0 : index
    %3 = vector.load %arg2[%c0_3, %c0_4] : memref<1x1024xf32, #tpu.memory_space<vmem>>, vector<1x1024xf32>
    %4 = vector.broadcast %3 : vector<1x1024xf32> to vector<2x1024xf32>
    %5 = arith.addf %2, %4 : vector<2x1024xf32>
    %c0_5 = arith.constant 0 : index
    %c0_6 = arith.constant 0 : index
    %6 = vector.load %arg4[%c0_5, %c0_6] : memref<32x1024xf32, #tpu.memory_space<vmem>>, vector<32x1024xf32>
    %cst_7 = arith.constant dense<0.000000e+00> : vector<2x1024xf32>
    %7 = tpu.matmul %0, %6, %cst_7 {dimension_numbers = #tpu.dot_dimension_numbers<[1], [0], [0], [1], [0, 0, 1, 1], [], []>} : vector<2x32xf32>, vector<32x1024xf32>, vector<2x1024xf32> -> vector<2x1024xf32>
    %c0_8 = arith.constant 0 : index
    %c0_9 = arith.constant 0 : index
    %8 = vector.load %arg5[%c0_8, %c0_9] : memref<1x1024xf32, #tpu.memory_space<vmem>>, vector<1x1024xf32>
    %9 = vector.broadcast %8 : vector<1x1024xf32> to vector<2x1024xf32>
    %10 = arith.addf %7, %9 : vector<2x1024xf32>
    %c0_10 = arith.constant 0 : index
    %c0_11 = arith.constant 0 : index
    %11 = vector.load %arg3[%c0_10, %c0_11] : memref<32x128xf32, #tpu.memory_space<vmem>>, vector<32x128xf32>
    %cst_12 = arith.constant 0.000000e+00 : f32
    %12 = vector.broadcast %cst_12 : f32 to vector<2x32xf32>
    %cst_13 = arith.constant 0.000000e+00 : f32
    %13 = vector.broadcast %cst_13 : f32 to vector<2x32xf32>
    %14 = vector.extract_strided_slice %5 {offsets = [0, 0], sizes = [2, 128], strides = [1, 1]} : vector<2x1024xf32> to vector<2x128xf32>
    %cst_14 = arith.constant dense<0.000000e+00> : vector<2x128xf32>
    %15 = tpu.matmul %12, %11, %cst_14 {dimension_numbers = #tpu.dot_dimension_numbers<[1], [0], [0], [1], [0, 0, 1, 1], [], []>} : vector<2x32xf32>, vector<32x128xf32>, vector<2x128xf32> -> vector<2x128xf32>
    %16 = arith.addf %14, %15 : vector<2x128xf32>
    %17 = vector.extract_strided_slice %16 {offsets = [0, 0], sizes = [2, 32], strides = [1, 1]} : vector<2x128xf32> to vector<2x32xf32>
    %18 = arith.negf %17 : vector<2x32xf32>
    %19 = math.exp %18 : vector<2x32xf32>
    %cst_15 = arith.constant 1.000000e+00 : f32
    %20 = vector.broadcast %cst_15 : f32 to vector<2x32xf32>
    %21 = arith.addf %20, %19 : vector<2x32xf32>
    %22 = arith.divf %20, %21 : vector<2x32xf32>
    %23 = vector.extract_strided_slice %16 {offsets = [0, 32], sizes = [2, 32], strides = [1, 1]} : vector<2x128xf32> to vector<2x32xf32>
    %24 = arith.negf %23 : vector<2x32xf32>
    %25 = math.exp %24 : vector<2x32xf32>
    %cst_16 = arith.constant 1.000000e+00 : f32
    %26 = vector.broadcast %cst_16 : f32 to vector<2x32xf32>
    %27 = arith.addf %26, %25 : vector<2x32xf32>
    %28 = arith.divf %26, %27 : vector<2x32xf32>
    %29 = vector.extract_strided_slice %16 {offsets = [0, 64], sizes = [2, 32], strides = [1, 1]} : vector<2x128xf32> to vector<2x32xf32>
    %30 = math.tanh %29 : vector<2x32xf32>
    %31 = vector.extract_strided_slice %16 {offsets = [0, 96], sizes = [2, 32], strides = [1, 1]} : vector<2x128xf32> to vector<2x32xf32>
    %32 = arith.negf %31 : vector<2x32xf32>
    %33 = math.exp %32 : vector<2x32xf32>
    %cst_17 = arith.constant 1.000000e+00 : f32
    %34 = vector.broadcast %cst_17 : f32 to vector<2x32xf32>
    %35 = arith.addf %34, %33 : vector<2x32xf32>
    %36 = arith.divf %34, %35 : vector<2x32xf32>
    %37 = arith.mulf %28, %13 : vector<2x32xf32>
    %38 = arith.mulf %22, %30 : vector<2x32xf32>
    %39 = arith.addf %37, %38 : vector<2x32xf32>
    %40 = math.tanh %39 : vector<2x32xf32>
    %41 = arith.mulf %36, %40 : vector<2x32xf32>
    %42 = vector.extract_strided_slice %5 {offsets = [0, 128], sizes = [2, 128], strides = [1, 1]} : vector<2x1024xf32> to vector<2x128xf32>
    %cst_18 = arith.constant dense<0.000000e+00> : vector<2x128xf32>
    %43 = tpu.matmul %41, %11, %cst_18 {dimension_numbers = #tpu.dot_dimension_numbers<[1], [0], [0], [1], [0, 0, 1, 1], [], []>} : vector<2x32xf32>, vector<32x128xf32>, vector<2x128xf32> -> vector<2x128xf32>
    %44 = arith.addf %42, %43 : vector<2x128xf32>
    %45 = vector.extract_strided_slice %44 {offsets = [0, 0], sizes = [2, 32], strides = [1, 1]} : vector<2x128xf32> to vector<2x32xf32>
    %46 = arith.negf %45 : vector<2x32xf32>
    %47 = math.exp %46 : vector<2x32xf32>
    %cst_19 = arith.constant 1.000000e+00 : f32
    %48 = vector.broadcast %cst_19 : f32 to vector<2x32xf32>
    %49 = arith.addf %48, %47 : vector<2x32xf32>
    %50 = arith.divf %48, %49 : vector<2x32xf32>
    %51 = vector.extract_strided_slice %44 {offsets = [0, 32], sizes = [2, 32], strides = [1, 1]} : vector<2x128xf32> to vector<2x32xf32>
    %52 = arith.negf %51 : vector<2x32xf32>
    %53 = math.exp %52 : vector<2x32xf32>
    %cst_20 = arith.constant 1.000000e+00 : f32
    %54 = vector.broadcast %cst_20 : f32 to vector<2x32xf32>
    %55 = arith.addf %54, %53 : vector<2x32xf32>
    %56 = arith.divf %54, %55 : vector<2x32xf32>
    %57 = vector.extract_strided_slice %44 {offsets = [0, 64], sizes = [2, 32], strides = [1, 1]} : vector<2x128xf32> to vector<2x32xf32>
    %58 = math.tanh %57 : vector<2x32xf32>
    %59 = vector.extract_strided_slice %44 {offsets = [0, 96], sizes = [2, 32], strides = [1, 1]} : vector<2x128xf32> to vector<2x32xf32>
    %60 = arith.negf %59 : vector<2x32xf32>
    %61 = math.exp %60 : vector<2x32xf32>
    %cst_21 = arith.constant 1.000000e+00 : f32
    %62 = vector.broadcast %cst_21 : f32 to vector<2x32xf32>
    %63 = arith.addf %62, %61 : vector<2x32xf32>
    %64 = arith.divf %62, %63 : vector<2x32xf32>
    %65 = arith.mulf %56, %39 : vector<2x32xf32>
    %66 = arith.mulf %50, %58 : vector<2x32xf32>
    %67 = arith.addf %65, %66 : vector<2x32xf32>
    %68 = math.tanh %67 : vector<2x32xf32>
    %69 = arith.mulf %64, %68 : vector<2x32xf32>
    %70 = vector.extract_strided_slice %5 {offsets = [0, 256], sizes = [2, 128], strides = [1, 1]} : vector<2x1024xf32> to vector<2x128xf32>
    %cst_22 = arith.constant dense<0.000000e+00> : vector<2x128xf32>
    %71 = tpu.matmul %69, %11, %cst_22 {dimension_numbers = #tpu.dot_dimension_numbers<[1], [0], [0], [1], [0, 0, 1, 1], [], []>} : vector<2x32xf32>, vector<32x128xf32>, vector<2x128xf32> -> vector<2x128xf32>
    %72 = arith.addf %70, %71 : vector<2x128xf32>
    %73 = vector.extract_strided_slice %72 {offsets = [0, 0], sizes = [2, 32], strides = [1, 1]} : vector<2x128xf32> to vector<2x32xf32>
    %74 = arith.negf %73 : vector<2x32xf32>
    %75 = math.exp %74 : vector<2x32xf32>
    %cst_23 = arith.constant 1.000000e+00 : f32
    %76 = vector.broadcast %cst_23 : f32 to vector<2x32xf32>
    %77 = arith.addf %76, %75 : vector<2x32xf32>
    %78 = arith.divf %76, %77 : vector<2x32xf32>
    %79 = vector.extract_strided_slice %72 {offsets = [0, 32], sizes = [2, 32], strides = [1, 1]} : vector<2x128xf32> to vector<2x32xf32>
    %80 = arith.negf %79 : vector<2x32xf32>
    %81 = math.exp %80 : vector<2x32xf32>
    %cst_24 = arith.constant 1.000000e+00 : f32
    %82 = vector.broadcast %cst_24 : f32 to vector<2x32xf32>
    %83 = arith.addf %82, %81 : vector<2x32xf32>
    %84 = arith.divf %82, %83 : vector<2x32xf32>
    %85 = vector.extract_strided_slice %72 {offsets = [0, 64], sizes = [2, 32], strides = [1, 1]} : vector<2x128xf32> to vector<2x32xf32>
    %86 = math.tanh %85 : vector<2x32xf32>
    %87 = vector.extract_strided_slice %72 {offsets = [0, 96], sizes = [2, 32], strides = [1, 1]} : vector<2x128xf32> to vector<2x32xf32>
    %88 = arith.negf %87 : vector<2x32xf32>
    %89 = math.exp %88 : vector<2x32xf32>
    %cst_25 = arith.constant 1.000000e+00 : f32
    %90 = vector.broadcast %cst_25 : f32 to vector<2x32xf32>
    %91 = arith.addf %90, %89 : vector<2x32xf32>
    %92 = arith.divf %90, %91 : vector<2x32xf32>
    %93 = arith.mulf %84, %67 : vector<2x32xf32>
    %94 = arith.mulf %78, %86 : vector<2x32xf32>
    %95 = arith.addf %93, %94 : vector<2x32xf32>
    %96 = math.tanh %95 : vector<2x32xf32>
    %97 = arith.mulf %92, %96 : vector<2x32xf32>
    %98 = vector.extract_strided_slice %5 {offsets = [0, 384], sizes = [2, 128], strides = [1, 1]} : vector<2x1024xf32> to vector<2x128xf32>
    %cst_26 = arith.constant dense<0.000000e+00> : vector<2x128xf32>
    %99 = tpu.matmul %97, %11, %cst_26 {dimension_numbers = #tpu.dot_dimension_numbers<[1], [0], [0], [1], [0, 0, 1, 1], [], []>} : vector<2x32xf32>, vector<32x128xf32>, vector<2x128xf32> -> vector<2x128xf32>
    %100 = arith.addf %98, %99 : vector<2x128xf32>
    %101 = vector.extract_strided_slice %100 {offsets = [0, 0], sizes = [2, 32], strides = [1, 1]} : vector<2x128xf32> to vector<2x32xf32>
    %102 = arith.negf %101 : vector<2x32xf32>
    %103 = math.exp %102 : vector<2x32xf32>
    %cst_27 = arith.constant 1.000000e+00 : f32
    %104 = vector.broadcast %cst_27 : f32 to vector<2x32xf32>
    %105 = arith.addf %104, %103 : vector<2x32xf32>
    %106 = arith.divf %104, %105 : vector<2x32xf32>
    %107 = vector.extract_strided_slice %100 {offsets = [0, 32], sizes = [2, 32], strides = [1, 1]} : vector<2x128xf32> to vector<2x32xf32>
    %108 = arith.negf %107 : vector<2x32xf32>
    %109 = math.exp %108 : vector<2x32xf32>
    %cst_28 = arith.constant 1.000000e+00 : f32
    %110 = vector.broadcast %cst_28 : f32 to vector<2x32xf32>
    %111 = arith.addf %110, %109 : vector<2x32xf32>
    %112 = arith.divf %110, %111 : vector<2x32xf32>
    %113 = vector.extract_strided_slice %100 {offsets = [0, 64], sizes = [2, 32], strides = [1, 1]} : vector<2x128xf32> to vector<2x32xf32>
    %114 = math.tanh %113 : vector<2x32xf32>
    %115 = vector.extract_strided_slice %100 {offsets = [0, 96], sizes = [2, 32], strides = [1, 1]} : vector<2x128xf32> to vector<2x32xf32>
    %116 = arith.negf %115 : vector<2x32xf32>
    %117 = math.exp %116 : vector<2x32xf32>
    %cst_29 = arith.constant 1.000000e+00 : f32
    %118 = vector.broadcast %cst_29 : f32 to vector<2x32xf32>
    %119 = arith.addf %118, %117 : vector<2x32xf32>
    %120 = arith.divf %118, %119 : vector<2x32xf32>
    %121 = arith.mulf %112, %95 : vector<2x32xf32>
    %122 = arith.mulf %106, %114 : vector<2x32xf32>
    %123 = arith.addf %121, %122 : vector<2x32xf32>
    %124 = math.tanh %123 : vector<2x32xf32>
    %125 = arith.mulf %120, %124 : vector<2x32xf32>
    %126 = vector.extract_strided_slice %5 {offsets = [0, 512], sizes = [2, 128], strides = [1, 1]} : vector<2x1024xf32> to vector<2x128xf32>
    %cst_30 = arith.constant dense<0.000000e+00> : vector<2x128xf32>
    %127 = tpu.matmul %125, %11, %cst_30 {dimension_numbers = #tpu.dot_dimension_numbers<[1], [0], [0], [1], [0, 0, 1, 1], [], []>} : vector<2x32xf32>, vector<32x128xf32>, vector<2x128xf32> -> vector<2x128xf32>
    %128 = arith.addf %126, %127 : vector<2x128xf32>
    %129 = vector.extract_strided_slice %128 {offsets = [0, 0], sizes = [2, 32], strides = [1, 1]} : vector<2x128xf32> to vector<2x32xf32>
    %130 = arith.negf %129 : vector<2x32xf32>
    %131 = math.exp %130 : vector<2x32xf32>
    %cst_31 = arith.constant 1.000000e+00 : f32
    %132 = vector.broadcast %cst_31 : f32 to vector<2x32xf32>
    %133 = arith.addf %132, %131 : vector<2x32xf32>
    %134 = arith.divf %132, %133 : vector<2x32xf32>
    %135 = vector.extract_strided_slice %128 {offsets = [0, 32], sizes = [2, 32], strides = [1, 1]} : vector<2x128xf32> to vector<2x32xf32>
    %136 = arith.negf %135 : vector<2x32xf32>
    %137 = math.exp %136 : vector<2x32xf32>
    %cst_32 = arith.constant 1.000000e+00 : f32
    %138 = vector.broadcast %cst_32 : f32 to vector<2x32xf32>
    %139 = arith.addf %138, %137 : vector<2x32xf32>
    %140 = arith.divf %138, %139 : vector<2x32xf32>
    %141 = vector.extract_strided_slice %128 {offsets = [0, 64], sizes = [2, 32], strides = [1, 1]} : vector<2x128xf32> to vector<2x32xf32>
    %142 = math.tanh %141 : vector<2x32xf32>
    %143 = vector.extract_strided_slice %128 {offsets = [0, 96], sizes = [2, 32], strides = [1, 1]} : vector<2x128xf32> to vector<2x32xf32>
    %144 = arith.negf %143 : vector<2x32xf32>
    %145 = math.exp %144 : vector<2x32xf32>
    %cst_33 = arith.constant 1.000000e+00 : f32
    %146 = vector.broadcast %cst_33 : f32 to vector<2x32xf32>
    %147 = arith.addf %146, %145 : vector<2x32xf32>
    %148 = arith.divf %146, %147 : vector<2x32xf32>
    %149 = arith.mulf %140, %123 : vector<2x32xf32>
    %150 = arith.mulf %134, %142 : vector<2x32xf32>
    %151 = arith.addf %149, %150 : vector<2x32xf32>
    %152 = math.tanh %151 : vector<2x32xf32>
    %153 = arith.mulf %148, %152 : vector<2x32xf32>
    %154 = vector.extract_strided_slice %5 {offsets = [0, 640], sizes = [2, 128], strides = [1, 1]} : vector<2x1024xf32> to vector<2x128xf32>
    %cst_34 = arith.constant dense<0.000000e+00> : vector<2x128xf32>
    %155 = tpu.matmul %153, %11, %cst_34 {dimension_numbers = #tpu.dot_dimension_numbers<[1], [0], [0], [1], [0, 0, 1, 1], [], []>} : vector<2x32xf32>, vector<32x128xf32>, vector<2x128xf32> -> vector<2x128xf32>
    %156 = arith.addf %154, %155 : vector<2x128xf32>
    %157 = vector.extract_strided_slice %156 {offsets = [0, 0], sizes = [2, 32], strides = [1, 1]} : vector<2x128xf32> to vector<2x32xf32>
    %158 = arith.negf %157 : vector<2x32xf32>
    %159 = math.exp %158 : vector<2x32xf32>
    %cst_35 = arith.constant 1.000000e+00 : f32
    %160 = vector.broadcast %cst_35 : f32 to vector<2x32xf32>
    %161 = arith.addf %160, %159 : vector<2x32xf32>
    %162 = arith.divf %160, %161 : vector<2x32xf32>
    %163 = vector.extract_strided_slice %156 {offsets = [0, 32], sizes = [2, 32], strides = [1, 1]} : vector<2x128xf32> to vector<2x32xf32>
    %164 = arith.negf %163 : vector<2x32xf32>
    %165 = math.exp %164 : vector<2x32xf32>
    %cst_36 = arith.constant 1.000000e+00 : f32
    %166 = vector.broadcast %cst_36 : f32 to vector<2x32xf32>
    %167 = arith.addf %166, %165 : vector<2x32xf32>
    %168 = arith.divf %166, %167 : vector<2x32xf32>
    %169 = vector.extract_strided_slice %156 {offsets = [0, 64], sizes = [2, 32], strides = [1, 1]} : vector<2x128xf32> to vector<2x32xf32>
    %170 = math.tanh %169 : vector<2x32xf32>
    %171 = vector.extract_strided_slice %156 {offsets = [0, 96], sizes = [2, 32], strides = [1, 1]} : vector<2x128xf32> to vector<2x32xf32>
    %172 = arith.negf %171 : vector<2x32xf32>
    %173 = math.exp %172 : vector<2x32xf32>
    %cst_37 = arith.constant 1.000000e+00 : f32
    %174 = vector.broadcast %cst_37 : f32 to vector<2x32xf32>
    %175 = arith.addf %174, %173 : vector<2x32xf32>
    %176 = arith.divf %174, %175 : vector<2x32xf32>
    %177 = arith.mulf %168, %151 : vector<2x32xf32>
    %178 = arith.mulf %162, %170 : vector<2x32xf32>
    %179 = arith.addf %177, %178 : vector<2x32xf32>
    %180 = math.tanh %179 : vector<2x32xf32>
    %181 = arith.mulf %176, %180 : vector<2x32xf32>
    %182 = vector.extract_strided_slice %5 {offsets = [0, 768], sizes = [2, 128], strides = [1, 1]} : vector<2x1024xf32> to vector<2x128xf32>
    %cst_38 = arith.constant dense<0.000000e+00> : vector<2x128xf32>
    %183 = tpu.matmul %181, %11, %cst_38 {dimension_numbers = #tpu.dot_dimension_numbers<[1], [0], [0], [1], [0, 0, 1, 1], [], []>} : vector<2x32xf32>, vector<32x128xf32>, vector<2x128xf32> -> vector<2x128xf32>
    %184 = arith.addf %182, %183 : vector<2x128xf32>
    %185 = vector.extract_strided_slice %184 {offsets = [0, 0], sizes = [2, 32], strides = [1, 1]} : vector<2x128xf32> to vector<2x32xf32>
    %186 = arith.negf %185 : vector<2x32xf32>
    %187 = math.exp %186 : vector<2x32xf32>
    %cst_39 = arith.constant 1.000000e+00 : f32
    %188 = vector.broadcast %cst_39 : f32 to vector<2x32xf32>
    %189 = arith.addf %188, %187 : vector<2x32xf32>
    %190 = arith.divf %188, %189 : vector<2x32xf32>
    %191 = vector.extract_strided_slice %184 {offsets = [0, 32], sizes = [2, 32], strides = [1, 1]} : vector<2x128xf32> to vector<2x32xf32>
    %192 = arith.negf %191 : vector<2x32xf32>
    %193 = math.exp %192 : vector<2x32xf32>
    %cst_40 = arith.constant 1.000000e+00 : f32
    %194 = vector.broadcast %cst_40 : f32 to vector<2x32xf32>
    %195 = arith.addf %194, %193 : vector<2x32xf32>
    %196 = arith.divf %194, %195 : vector<2x32xf32>
    %197 = vector.extract_strided_slice %184 {offsets = [0, 64], sizes = [2, 32], strides = [1, 1]} : vector<2x128xf32> to vector<2x32xf32>
    %198 = math.tanh %197 : vector<2x32xf32>
    %199 = vector.extract_strided_slice %184 {offsets = [0, 96], sizes = [2, 32], strides = [1, 1]} : vector<2x128xf32> to vector<2x32xf32>
    %200 = arith.negf %199 : vector<2x32xf32>
    %201 = math.exp %200 : vector<2x32xf32>
    %cst_41 = arith.constant 1.000000e+00 : f32
    %202 = vector.broadcast %cst_41 : f32 to vector<2x32xf32>
    %203 = arith.addf %202, %201 : vector<2x32xf32>
    %204 = arith.divf %202, %203 : vector<2x32xf32>
    %205 = arith.mulf %196, %179 : vector<2x32xf32>
    %206 = arith.mulf %190, %198 : vector<2x32xf32>
    %207 = arith.addf %205, %206 : vector<2x32xf32>
    %208 = math.tanh %207 : vector<2x32xf32>
    %209 = arith.mulf %204, %208 : vector<2x32xf32>
    %210 = vector.extract_strided_slice %5 {offsets = [0, 896], sizes = [2, 128], strides = [1, 1]} : vector<2x1024xf32> to vector<2x128xf32>
    %cst_42 = arith.constant dense<0.000000e+00> : vector<2x128xf32>
    %211 = tpu.matmul %209, %11, %cst_42 {dimension_numbers = #tpu.dot_dimension_numbers<[1], [0], [0], [1], [0, 0, 1, 1], [], []>} : vector<2x32xf32>, vector<32x128xf32>, vector<2x128xf32> -> vector<2x128xf32>
    %212 = arith.addf %210, %211 : vector<2x128xf32>
    %213 = vector.extract_strided_slice %212 {offsets = [0, 0], sizes = [2, 32], strides = [1, 1]} : vector<2x128xf32> to vector<2x32xf32>
    %214 = arith.negf %213 : vector<2x32xf32>
    %215 = math.exp %214 : vector<2x32xf32>
    %cst_43 = arith.constant 1.000000e+00 : f32
    %216 = vector.broadcast %cst_43 : f32 to vector<2x32xf32>
    %217 = arith.addf %216, %215 : vector<2x32xf32>
    %218 = arith.divf %216, %217 : vector<2x32xf32>
    %219 = vector.extract_strided_slice %212 {offsets = [0, 32], sizes = [2, 32], strides = [1, 1]} : vector<2x128xf32> to vector<2x32xf32>
    %220 = arith.negf %219 : vector<2x32xf32>
    %221 = math.exp %220 : vector<2x32xf32>
    %cst_44 = arith.constant 1.000000e+00 : f32
    %222 = vector.broadcast %cst_44 : f32 to vector<2x32xf32>
    %223 = arith.addf %222, %221 : vector<2x32xf32>
    %224 = arith.divf %222, %223 : vector<2x32xf32>
    %225 = vector.extract_strided_slice %212 {offsets = [0, 64], sizes = [2, 32], strides = [1, 1]} : vector<2x128xf32> to vector<2x32xf32>
    %226 = math.tanh %225 : vector<2x32xf32>
    %227 = vector.extract_strided_slice %212 {offsets = [0, 96], sizes = [2, 32], strides = [1, 1]} : vector<2x128xf32> to vector<2x32xf32>
    %228 = arith.negf %227 : vector<2x32xf32>
    %229 = math.exp %228 : vector<2x32xf32>
    %cst_45 = arith.constant 1.000000e+00 : f32
    %230 = vector.broadcast %cst_45 : f32 to vector<2x32xf32>
    %231 = arith.addf %230, %229 : vector<2x32xf32>
    %232 = arith.divf %230, %231 : vector<2x32xf32>
    %233 = arith.mulf %224, %207 : vector<2x32xf32>
    %234 = arith.mulf %218, %226 : vector<2x32xf32>
    %235 = arith.addf %233, %234 : vector<2x32xf32>
    %236 = math.tanh %235 : vector<2x32xf32>
    %237 = arith.mulf %232, %236 : vector<2x32xf32>
    %c0_46 = arith.constant 0 : index
    %c0_47 = arith.constant 0 : index
    %238 = vector.load %arg6[%c0_46, %c0_47] : memref<32x128xf32, #tpu.memory_space<vmem>>, vector<32x128xf32>
    %cst_48 = arith.constant 0.000000e+00 : f32
    %239 = vector.broadcast %cst_48 : f32 to vector<2x32xf32>
    %cst_49 = arith.constant 0.000000e+00 : f32
    %240 = vector.broadcast %cst_49 : f32 to vector<2x32xf32>
    %241 = vector.extract_strided_slice %10 {offsets = [0, 896], sizes = [2, 128], strides = [1, 1]} : vector<2x1024xf32> to vector<2x128xf32>
    %cst_50 = arith.constant dense<0.000000e+00> : vector<2x128xf32>
    %242 = tpu.matmul %239, %238, %cst_50 {dimension_numbers = #tpu.dot_dimension_numbers<[1], [0], [0], [1], [0, 0, 1, 1], [], []>} : vector<2x32xf32>, vector<32x128xf32>, vector<2x128xf32> -> vector<2x128xf32>
    %243 = arith.addf %241, %242 : vector<2x128xf32>
    %244 = vector.extract_strided_slice %243 {offsets = [0, 0], sizes = [2, 32], strides = [1, 1]} : vector<2x128xf32> to vector<2x32xf32>
    %245 = arith.negf %244 : vector<2x32xf32>
    %246 = math.exp %245 : vector<2x32xf32>
    %cst_51 = arith.constant 1.000000e+00 : f32
    %247 = vector.broadcast %cst_51 : f32 to vector<2x32xf32>
    %248 = arith.addf %247, %246 : vector<2x32xf32>
    %249 = arith.divf %247, %248 : vector<2x32xf32>
    %250 = vector.extract_strided_slice %243 {offsets = [0, 32], sizes = [2, 32], strides = [1, 1]} : vector<2x128xf32> to vector<2x32xf32>
    %251 = arith.negf %250 : vector<2x32xf32>
    %252 = math.exp %251 : vector<2x32xf32>
    %cst_52 = arith.constant 1.000000e+00 : f32
    %253 = vector.broadcast %cst_52 : f32 to vector<2x32xf32>
    %254 = arith.addf %253, %252 : vector<2x32xf32>
    %255 = arith.divf %253, %254 : vector<2x32xf32>
    %256 = vector.extract_strided_slice %243 {offsets = [0, 64], sizes = [2, 32], strides = [1, 1]} : vector<2x128xf32> to vector<2x32xf32>
    %257 = math.tanh %256 : vector<2x32xf32>
    %258 = vector.extract_strided_slice %243 {offsets = [0, 96], sizes = [2, 32], strides = [1, 1]} : vector<2x128xf32> to vector<2x32xf32>
    %259 = arith.negf %258 : vector<2x32xf32>
    %260 = math.exp %259 : vector<2x32xf32>
    %cst_53 = arith.constant 1.000000e+00 : f32
    %261 = vector.broadcast %cst_53 : f32 to vector<2x32xf32>
    %262 = arith.addf %261, %260 : vector<2x32xf32>
    %263 = arith.divf %261, %262 : vector<2x32xf32>
    %264 = arith.mulf %255, %240 : vector<2x32xf32>
    %265 = arith.mulf %249, %257 : vector<2x32xf32>
    %266 = arith.addf %264, %265 : vector<2x32xf32>
    %267 = math.tanh %266 : vector<2x32xf32>
    %268 = arith.mulf %263, %267 : vector<2x32xf32>
    %269 = vector.extract_strided_slice %10 {offsets = [0, 768], sizes = [2, 128], strides = [1, 1]} : vector<2x1024xf32> to vector<2x128xf32>
    %cst_54 = arith.constant dense<0.000000e+00> : vector<2x128xf32>
    %270 = tpu.matmul %268, %238, %cst_54 {dimension_numbers = #tpu.dot_dimension_numbers<[1], [0], [0], [1], [0, 0, 1, 1], [], []>} : vector<2x32xf32>, vector<32x128xf32>, vector<2x128xf32> -> vector<2x128xf32>
    %271 = arith.addf %269, %270 : vector<2x128xf32>
    %272 = vector.extract_strided_slice %271 {offsets = [0, 0], sizes = [2, 32], strides = [1, 1]} : vector<2x128xf32> to vector<2x32xf32>
    %273 = arith.negf %272 : vector<2x32xf32>
    %274 = math.exp %273 : vector<2x32xf32>
    %cst_55 = arith.constant 1.000000e+00 : f32
    %275 = vector.broadcast %cst_55 : f32 to vector<2x32xf32>
    %276 = arith.addf %275, %274 : vector<2x32xf32>
    %277 = arith.divf %275, %276 : vector<2x32xf32>
    %278 = vector.extract_strided_slice %271 {offsets = [0, 32], sizes = [2, 32], strides = [1, 1]} : vector<2x128xf32> to vector<2x32xf32>
    %279 = arith.negf %278 : vector<2x32xf32>
    %280 = math.exp %279 : vector<2x32xf32>
    %cst_56 = arith.constant 1.000000e+00 : f32
    %281 = vector.broadcast %cst_56 : f32 to vector<2x32xf32>
    %282 = arith.addf %281, %280 : vector<2x32xf32>
    %283 = arith.divf %281, %282 : vector<2x32xf32>
    %284 = vector.extract_strided_slice %271 {offsets = [0, 64], sizes = [2, 32], strides = [1, 1]} : vector<2x128xf32> to vector<2x32xf32>
    %285 = math.tanh %284 : vector<2x32xf32>
    %286 = vector.extract_strided_slice %271 {offsets = [0, 96], sizes = [2, 32], strides = [1, 1]} : vector<2x128xf32> to vector<2x32xf32>
    %287 = arith.negf %286 : vector<2x32xf32>
    %288 = math.exp %287 : vector<2x32xf32>
    %cst_57 = arith.constant 1.000000e+00 : f32
    %289 = vector.broadcast %cst_57 : f32 to vector<2x32xf32>
    %290 = arith.addf %289, %288 : vector<2x32xf32>
    %291 = arith.divf %289, %290 : vector<2x32xf32>
    %292 = arith.mulf %283, %266 : vector<2x32xf32>
    %293 = arith.mulf %277, %285 : vector<2x32xf32>
    %294 = arith.addf %292, %293 : vector<2x32xf32>
    %295 = math.tanh %294 : vector<2x32xf32>
    %296 = arith.mulf %291, %295 : vector<2x32xf32>
    %297 = vector.extract_strided_slice %10 {offsets = [0, 640], sizes = [2, 128], strides = [1, 1]} : vector<2x1024xf32> to vector<2x128xf32>
    %cst_58 = arith.constant dense<0.000000e+00> : vector<2x128xf32>
    %298 = tpu.matmul %296, %238, %cst_58 {dimension_numbers = #tpu.dot_dimension_numbers<[1], [0], [0], [1], [0, 0, 1, 1], [], []>} : vector<2x32xf32>, vector<32x128xf32>, vector<2x128xf32> -> vector<2x128xf32>
    %299 = arith.addf %297, %298 : vector<2x128xf32>
    %300 = vector.extract_strided_slice %299 {offsets = [0, 0], sizes = [2, 32], strides = [1, 1]} : vector<2x128xf32> to vector<2x32xf32>
    %301 = arith.negf %300 : vector<2x32xf32>
    %302 = math.exp %301 : vector<2x32xf32>
    %cst_59 = arith.constant 1.000000e+00 : f32
    %303 = vector.broadcast %cst_59 : f32 to vector<2x32xf32>
    %304 = arith.addf %303, %302 : vector<2x32xf32>
    %305 = arith.divf %303, %304 : vector<2x32xf32>
    %306 = vector.extract_strided_slice %299 {offsets = [0, 32], sizes = [2, 32], strides = [1, 1]} : vector<2x128xf32> to vector<2x32xf32>
    %307 = arith.negf %306 : vector<2x32xf32>
    %308 = math.exp %307 : vector<2x32xf32>
    %cst_60 = arith.constant 1.000000e+00 : f32
    %309 = vector.broadcast %cst_60 : f32 to vector<2x32xf32>
    %310 = arith.addf %309, %308 : vector<2x32xf32>
    %311 = arith.divf %309, %310 : vector<2x32xf32>
    %312 = vector.extract_strided_slice %299 {offsets = [0, 64], sizes = [2, 32], strides = [1, 1]} : vector<2x128xf32> to vector<2x32xf32>
    %313 = math.tanh %312 : vector<2x32xf32>
    %314 = vector.extract_strided_slice %299 {offsets = [0, 96], sizes = [2, 32], strides = [1, 1]} : vector<2x128xf32> to vector<2x32xf32>
    %315 = arith.negf %314 : vector<2x32xf32>
    %316 = math.exp %315 : vector<2x32xf32>
    %cst_61 = arith.constant 1.000000e+00 : f32
    %317 = vector.broadcast %cst_61 : f32 to vector<2x32xf32>
    %318 = arith.addf %317, %316 : vector<2x32xf32>
    %319 = arith.divf %317, %318 : vector<2x32xf32>
    %320 = arith.mulf %311, %294 : vector<2x32xf32>
    %321 = arith.mulf %305, %313 : vector<2x32xf32>
    %322 = arith.addf %320, %321 : vector<2x32xf32>
    %323 = math.tanh %322 : vector<2x32xf32>
    %324 = arith.mulf %319, %323 : vector<2x32xf32>
    %325 = vector.extract_strided_slice %10 {offsets = [0, 512], sizes = [2, 128], strides = [1, 1]} : vector<2x1024xf32> to vector<2x128xf32>
    %cst_62 = arith.constant dense<0.000000e+00> : vector<2x128xf32>
    %326 = tpu.matmul %324, %238, %cst_62 {dimension_numbers = #tpu.dot_dimension_numbers<[1], [0], [0], [1], [0, 0, 1, 1], [], []>} : vector<2x32xf32>, vector<32x128xf32>, vector<2x128xf32> -> vector<2x128xf32>
    %327 = arith.addf %325, %326 : vector<2x128xf32>
    %328 = vector.extract_strided_slice %327 {offsets = [0, 0], sizes = [2, 32], strides = [1, 1]} : vector<2x128xf32> to vector<2x32xf32>
    %329 = arith.negf %328 : vector<2x32xf32>
    %330 = math.exp %329 : vector<2x32xf32>
    %cst_63 = arith.constant 1.000000e+00 : f32
    %331 = vector.broadcast %cst_63 : f32 to vector<2x32xf32>
    %332 = arith.addf %331, %330 : vector<2x32xf32>
    %333 = arith.divf %331, %332 : vector<2x32xf32>
    %334 = vector.extract_strided_slice %327 {offsets = [0, 32], sizes = [2, 32], strides = [1, 1]} : vector<2x128xf32> to vector<2x32xf32>
    %335 = arith.negf %334 : vector<2x32xf32>
    %336 = math.exp %335 : vector<2x32xf32>
    %cst_64 = arith.constant 1.000000e+00 : f32
    %337 = vector.broadcast %cst_64 : f32 to vector<2x32xf32>
    %338 = arith.addf %337, %336 : vector<2x32xf32>
    %339 = arith.divf %337, %338 : vector<2x32xf32>
    %340 = vector.extract_strided_slice %327 {offsets = [0, 64], sizes = [2, 32], strides = [1, 1]} : vector<2x128xf32> to vector<2x32xf32>
    %341 = math.tanh %340 : vector<2x32xf32>
    %342 = vector.extract_strided_slice %327 {offsets = [0, 96], sizes = [2, 32], strides = [1, 1]} : vector<2x128xf32> to vector<2x32xf32>
    %343 = arith.negf %342 : vector<2x32xf32>
    %344 = math.exp %343 : vector<2x32xf32>
    %cst_65 = arith.constant 1.000000e+00 : f32
    %345 = vector.broadcast %cst_65 : f32 to vector<2x32xf32>
    %346 = arith.addf %345, %344 : vector<2x32xf32>
    %347 = arith.divf %345, %346 : vector<2x32xf32>
    %348 = arith.mulf %339, %322 : vector<2x32xf32>
    %349 = arith.mulf %333, %341 : vector<2x32xf32>
    %350 = arith.addf %348, %349 : vector<2x32xf32>
    %351 = math.tanh %350 : vector<2x32xf32>
    %352 = arith.mulf %347, %351 : vector<2x32xf32>
    %353 = vector.extract_strided_slice %10 {offsets = [0, 384], sizes = [2, 128], strides = [1, 1]} : vector<2x1024xf32> to vector<2x128xf32>
    %cst_66 = arith.constant dense<0.000000e+00> : vector<2x128xf32>
    %354 = tpu.matmul %352, %238, %cst_66 {dimension_numbers = #tpu.dot_dimension_numbers<[1], [0], [0], [1], [0, 0, 1, 1], [], []>} : vector<2x32xf32>, vector<32x128xf32>, vector<2x128xf32> -> vector<2x128xf32>
    %355 = arith.addf %353, %354 : vector<2x128xf32>
    %356 = vector.extract_strided_slice %355 {offsets = [0, 0], sizes = [2, 32], strides = [1, 1]} : vector<2x128xf32> to vector<2x32xf32>
    %357 = arith.negf %356 : vector<2x32xf32>
    %358 = math.exp %357 : vector<2x32xf32>
    %cst_67 = arith.constant 1.000000e+00 : f32
    %359 = vector.broadcast %cst_67 : f32 to vector<2x32xf32>
    %360 = arith.addf %359, %358 : vector<2x32xf32>
    %361 = arith.divf %359, %360 : vector<2x32xf32>
    %362 = vector.extract_strided_slice %355 {offsets = [0, 32], sizes = [2, 32], strides = [1, 1]} : vector<2x128xf32> to vector<2x32xf32>
    %363 = arith.negf %362 : vector<2x32xf32>
    %364 = math.exp %363 : vector<2x32xf32>
    %cst_68 = arith.constant 1.000000e+00 : f32
    %365 = vector.broadcast %cst_68 : f32 to vector<2x32xf32>
    %366 = arith.addf %365, %364 : vector<2x32xf32>
    %367 = arith.divf %365, %366 : vector<2x32xf32>
    %368 = vector.extract_strided_slice %355 {offsets = [0, 64], sizes = [2, 32], strides = [1, 1]} : vector<2x128xf32> to vector<2x32xf32>
    %369 = math.tanh %368 : vector<2x32xf32>
    %370 = vector.extract_strided_slice %355 {offsets = [0, 96], sizes = [2, 32], strides = [1, 1]} : vector<2x128xf32> to vector<2x32xf32>
    %371 = arith.negf %370 : vector<2x32xf32>
    %372 = math.exp %371 : vector<2x32xf32>
    %cst_69 = arith.constant 1.000000e+00 : f32
    %373 = vector.broadcast %cst_69 : f32 to vector<2x32xf32>
    %374 = arith.addf %373, %372 : vector<2x32xf32>
    %375 = arith.divf %373, %374 : vector<2x32xf32>
    %376 = arith.mulf %367, %350 : vector<2x32xf32>
    %377 = arith.mulf %361, %369 : vector<2x32xf32>
    %378 = arith.addf %376, %377 : vector<2x32xf32>
    %379 = math.tanh %378 : vector<2x32xf32>
    %380 = arith.mulf %375, %379 : vector<2x32xf32>
    %381 = vector.extract_strided_slice %10 {offsets = [0, 256], sizes = [2, 128], strides = [1, 1]} : vector<2x1024xf32> to vector<2x128xf32>
    %cst_70 = arith.constant dense<0.000000e+00> : vector<2x128xf32>
    %382 = tpu.matmul %380, %238, %cst_70 {dimension_numbers = #tpu.dot_dimension_numbers<[1], [0], [0], [1], [0, 0, 1, 1], [], []>} : vector<2x32xf32>, vector<32x128xf32>, vector<2x128xf32> -> vector<2x128xf32>
    %383 = arith.addf %381, %382 : vector<2x128xf32>
    %384 = vector.extract_strided_slice %383 {offsets = [0, 0], sizes = [2, 32], strides = [1, 1]} : vector<2x128xf32> to vector<2x32xf32>
    %385 = arith.negf %384 : vector<2x32xf32>
    %386 = math.exp %385 : vector<2x32xf32>
    %cst_71 = arith.constant 1.000000e+00 : f32
    %387 = vector.broadcast %cst_71 : f32 to vector<2x32xf32>
    %388 = arith.addf %387, %386 : vector<2x32xf32>
    %389 = arith.divf %387, %388 : vector<2x32xf32>
    %390 = vector.extract_strided_slice %383 {offsets = [0, 32], sizes = [2, 32], strides = [1, 1]} : vector<2x128xf32> to vector<2x32xf32>
    %391 = arith.negf %390 : vector<2x32xf32>
    %392 = math.exp %391 : vector<2x32xf32>
    %cst_72 = arith.constant 1.000000e+00 : f32
    %393 = vector.broadcast %cst_72 : f32 to vector<2x32xf32>
    %394 = arith.addf %393, %392 : vector<2x32xf32>
    %395 = arith.divf %393, %394 : vector<2x32xf32>
    %396 = vector.extract_strided_slice %383 {offsets = [0, 64], sizes = [2, 32], strides = [1, 1]} : vector<2x128xf32> to vector<2x32xf32>
    %397 = math.tanh %396 : vector<2x32xf32>
    %398 = vector.extract_strided_slice %383 {offsets = [0, 96], sizes = [2, 32], strides = [1, 1]} : vector<2x128xf32> to vector<2x32xf32>
    %399 = arith.negf %398 : vector<2x32xf32>
    %400 = math.exp %399 : vector<2x32xf32>
    %cst_73 = arith.constant 1.000000e+00 : f32
    %401 = vector.broadcast %cst_73 : f32 to vector<2x32xf32>
    %402 = arith.addf %401, %400 : vector<2x32xf32>
    %403 = arith.divf %401, %402 : vector<2x32xf32>
    %404 = arith.mulf %395, %378 : vector<2x32xf32>
    %405 = arith.mulf %389, %397 : vector<2x32xf32>
    %406 = arith.addf %404, %405 : vector<2x32xf32>
    %407 = math.tanh %406 : vector<2x32xf32>
    %408 = arith.mulf %403, %407 : vector<2x32xf32>
    %409 = vector.extract_strided_slice %10 {offsets = [0, 128], sizes = [2, 128], strides = [1, 1]} : vector<2x1024xf32> to vector<2x128xf32>
    %cst_74 = arith.constant dense<0.000000e+00> : vector<2x128xf32>
    %410 = tpu.matmul %408, %238, %cst_74 {dimension_numbers = #tpu.dot_dimension_numbers<[1], [0], [0], [1], [0, 0, 1, 1], [], []>} : vector<2x32xf32>, vector<32x128xf32>, vector<2x128xf32> -> vector<2x128xf32>
    %411 = arith.addf %409, %410 : vector<2x128xf32>
    %412 = vector.extract_strided_slice %411 {offsets = [0, 0], sizes = [2, 32], strides = [1, 1]} : vector<2x128xf32> to vector<2x32xf32>
    %413 = arith.negf %412 : vector<2x32xf32>
    %414 = math.exp %413 : vector<2x32xf32>
    %cst_75 = arith.constant 1.000000e+00 : f32
    %415 = vector.broadcast %cst_75 : f32 to vector<2x32xf32>
    %416 = arith.addf %415, %414 : vector<2x32xf32>
    %417 = arith.divf %415, %416 : vector<2x32xf32>
    %418 = vector.extract_strided_slice %411 {offsets = [0, 32], sizes = [2, 32], strides = [1, 1]} : vector<2x128xf32> to vector<2x32xf32>
    %419 = arith.negf %418 : vector<2x32xf32>
    %420 = math.exp %419 : vector<2x32xf32>
    %cst_76 = arith.constant 1.000000e+00 : f32
    %421 = vector.broadcast %cst_76 : f32 to vector<2x32xf32>
    %422 = arith.addf %421, %420 : vector<2x32xf32>
    %423 = arith.divf %421, %422 : vector<2x32xf32>
    %424 = vector.extract_strided_slice %411 {offsets = [0, 64], sizes = [2, 32], strides = [1, 1]} : vector<2x128xf32> to vector<2x32xf32>
    %425 = math.tanh %424 : vector<2x32xf32>
    %426 = vector.extract_strided_slice %411 {offsets = [0, 96], sizes = [2, 32], strides = [1, 1]} : vector<2x128xf32> to vector<2x32xf32>
    %427 = arith.negf %426 : vector<2x32xf32>
    %428 = math.exp %427 : vector<2x32xf32>
    %cst_77 = arith.constant 1.000000e+00 : f32
    %429 = vector.broadcast %cst_77 : f32 to vector<2x32xf32>
    %430 = arith.addf %429, %428 : vector<2x32xf32>
    %431 = arith.divf %429, %430 : vector<2x32xf32>
    %432 = arith.mulf %423, %406 : vector<2x32xf32>
    %433 = arith.mulf %417, %425 : vector<2x32xf32>
    %434 = arith.addf %432, %433 : vector<2x32xf32>
    %435 = math.tanh %434 : vector<2x32xf32>
    %436 = arith.mulf %431, %435 : vector<2x32xf32>
    %437 = vector.extract_strided_slice %10 {offsets = [0, 0], sizes = [2, 128], strides = [1, 1]} : vector<2x1024xf32> to vector<2x128xf32>
    %cst_78 = arith.constant dense<0.000000e+00> : vector<2x128xf32>
    %438 = tpu.matmul %436, %238, %cst_78 {dimension_numbers = #tpu.dot_dimension_numbers<[1], [0], [0], [1], [0, 0, 1, 1], [], []>} : vector<2x32xf32>, vector<32x128xf32>, vector<2x128xf32> -> vector<2x128xf32>
    %439 = arith.addf %437, %438 : vector<2x128xf32>
    %440 = vector.extract_strided_slice %439 {offsets = [0, 0], sizes = [2, 32], strides = [1, 1]} : vector<2x128xf32> to vector<2x32xf32>
    %441 = arith.negf %440 : vector<2x32xf32>
    %442 = math.exp %441 : vector<2x32xf32>
    %cst_79 = arith.constant 1.000000e+00 : f32
    %443 = vector.broadcast %cst_79 : f32 to vector<2x32xf32>
    %444 = arith.addf %443, %442 : vector<2x32xf32>
    %445 = arith.divf %443, %444 : vector<2x32xf32>
    %446 = vector.extract_strided_slice %439 {offsets = [0, 32], sizes = [2, 32], strides = [1, 1]} : vector<2x128xf32> to vector<2x32xf32>
    %447 = arith.negf %446 : vector<2x32xf32>
    %448 = math.exp %447 : vector<2x32xf32>
    %cst_80 = arith.constant 1.000000e+00 : f32
    %449 = vector.broadcast %cst_80 : f32 to vector<2x32xf32>
    %450 = arith.addf %449, %448 : vector<2x32xf32>
    %451 = arith.divf %449, %450 : vector<2x32xf32>
    %452 = vector.extract_strided_slice %439 {offsets = [0, 64], sizes = [2, 32], strides = [1, 1]} : vector<2x128xf32> to vector<2x32xf32>
    %453 = math.tanh %452 : vector<2x32xf32>
    %454 = vector.extract_strided_slice %439 {offsets = [0, 96], sizes = [2, 32], strides = [1, 1]} : vector<2x128xf32> to vector<2x32xf32>
    %455 = arith.negf %454 : vector<2x32xf32>
    %456 = math.exp %455 : vector<2x32xf32>
    %cst_81 = arith.constant 1.000000e+00 : f32
    %457 = vector.broadcast %cst_81 : f32 to vector<2x32xf32>
    %458 = arith.addf %457, %456 : vector<2x32xf32>
    %459 = arith.divf %457, %458 : vector<2x32xf32>
    %460 = arith.mulf %451, %434 : vector<2x32xf32>
    %461 = arith.mulf %445, %453 : vector<2x32xf32>
    %462 = arith.addf %460, %461 : vector<2x32xf32>
    %463 = math.tanh %462 : vector<2x32xf32>
    %464 = arith.mulf %459, %463 : vector<2x32xf32>
    %465 = tpu.concatenate %41, %464 in 1 : vector<2x32xf32>, vector<2x32xf32> -> vector<2x64xf32>
    %466 = tpu.concatenate %69, %436 in 1 : vector<2x32xf32>, vector<2x32xf32> -> vector<2x64xf32>
    %467 = tpu.concatenate %97, %408 in 1 : vector<2x32xf32>, vector<2x32xf32> -> vector<2x64xf32>
    %468 = tpu.concatenate %125, %380 in 1 : vector<2x32xf32>, vector<2x32xf32> -> vector<2x64xf32>
    %469 = tpu.concatenate %153, %352 in 1 : vector<2x32xf32>, vector<2x32xf32> -> vector<2x64xf32>
    %470 = tpu.concatenate %181, %324 in 1 : vector<2x32xf32>, vector<2x32xf32> -> vector<2x64xf32>
    %471 = tpu.concatenate %209, %296 in 1 : vector<2x32xf32>, vector<2x32xf32> -> vector<2x64xf32>
    %472 = tpu.concatenate %237, %268 in 1 : vector<2x32xf32>, vector<2x32xf32> -> vector<2x64xf32>
    %cst_82 = arith.constant 0.000000e+00 : f32
    %473 = vector.broadcast %cst_82 : f32 to vector<2x64xf32>
    %c0_83 = arith.constant 0 : index
    %c0_84 = arith.constant 0 : index
    %c0_85 = arith.constant 0 : index
    %474 = vector.load %arg17[%c0_83, %c0_84, %c0_85] : memref<18x2x64xf32, #tpu.memory_space<vmem>>, vector<1x2x64xf32>
    %475 = vector.shape_cast %474 : vector<1x2x64xf32> to vector<2x64xf32>
    %476 = vector.shape_cast %473 : vector<2x64xf32> to vector<1x2x64xf32>
    tpu.vector_store %arg17[%c0_83, %c0_84, %c0_85], %476 {strides = array<i32>} : memref<18x2x64xf32, #tpu.memory_space<vmem>>, vector<1x2x64xf32>,
    %c17 = arith.constant 17 : index
    %c0_86 = arith.constant 0 : index
    %c0_87 = arith.constant 0 : index
    %477 = vector.load %arg17[%c17, %c0_86, %c0_87] : memref<18x2x64xf32, #tpu.memory_space<vmem>>, vector<1x2x64xf32>
    %478 = vector.shape_cast %477 : vector<1x2x64xf32> to vector<2x64xf32>
    %479 = vector.shape_cast %473 : vector<2x64xf32> to vector<1x2x64xf32>
    tpu.vector_store %arg17[%c17, %c0_86, %c0_87], %479 {strides = array<i32>} : memref<18x2x64xf32, #tpu.memory_space<vmem>>, vector<1x2x64xf32>,
    %c1 = arith.constant 1 : index
    %c0_88 = arith.constant 0 : index
    %c0_89 = arith.constant 0 : index
    %480 = vector.load %arg17[%c1, %c0_88, %c0_89] : memref<18x2x64xf32, #tpu.memory_space<vmem>>, vector<1x2x64xf32>
    %481 = vector.shape_cast %480 : vector<1x2x64xf32> to vector<2x64xf32>
    %482 = vector.shape_cast %465 : vector<2x64xf32> to vector<1x2x64xf32>
    tpu.vector_store %arg17[%c1, %c0_88, %c0_89], %482 {strides = array<i32>} : memref<18x2x64xf32, #tpu.memory_space<vmem>>, vector<1x2x64xf32>,
    %c2 = arith.constant 2 : index
    %c0_90 = arith.constant 0 : index
    %c0_91 = arith.constant 0 : index
    %483 = vector.load %arg17[%c2, %c0_90, %c0_91] : memref<18x2x64xf32, #tpu.memory_space<vmem>>, vector<1x2x64xf32>
    %484 = vector.shape_cast %483 : vector<1x2x64xf32> to vector<2x64xf32>
    %485 = vector.shape_cast %465 : vector<2x64xf32> to vector<1x2x64xf32>
    tpu.vector_store %arg17[%c2, %c0_90, %c0_91], %485 {strides = array<i32>} : memref<18x2x64xf32, #tpu.memory_space<vmem>>, vector<1x2x64xf32>,
    %c3 = arith.constant 3 : index
    %c0_92 = arith.constant 0 : index
    %c0_93 = arith.constant 0 : index
    %486 = vector.load %arg17[%c3, %c0_92, %c0_93] : memref<18x2x64xf32, #tpu.memory_space<vmem>>, vector<1x2x64xf32>
    %487 = vector.shape_cast %486 : vector<1x2x64xf32> to vector<2x64xf32>
    %488 = vector.shape_cast %466 : vector<2x64xf32> to vector<1x2x64xf32>
    tpu.vector_store %arg17[%c3, %c0_92, %c0_93], %488 {strides = array<i32>} : memref<18x2x64xf32, #tpu.memory_space<vmem>>, vector<1x2x64xf32>,
    %c4 = arith.constant 4 : index
    %c0_94 = arith.constant 0 : index
    %c0_95 = arith.constant 0 : index
    %489 = vector.load %arg17[%c4, %c0_94, %c0_95] : memref<18x2x64xf32, #tpu.memory_space<vmem>>, vector<1x2x64xf32>
    %490 = vector.shape_cast %489 : vector<1x2x64xf32> to vector<2x64xf32>
    %491 = vector.shape_cast %466 : vector<2x64xf32> to vector<1x2x64xf32>
    tpu.vector_store %arg17[%c4, %c0_94, %c0_95], %491 {strides = array<i32>} : memref<18x2x64xf32, #tpu.memory_space<vmem>>, vector<1x2x64xf32>,
    %c5 = arith.constant 5 : index
    %c0_96 = arith.constant 0 : index
    %c0_97 = arith.constant 0 : index
    %492 = vector.load %arg17[%c5, %c0_96, %c0_97] : memref<18x2x64xf32, #tpu.memory_space<vmem>>, vector<1x2x64xf32>
    %493 = vector.shape_cast %492 : vector<1x2x64xf32> to vector<2x64xf32>
    %494 = vector.shape_cast %467 : vector<2x64xf32> to vector<1x2x64xf32>
    tpu.vector_store %arg17[%c5, %c0_96, %c0_97], %494 {strides = array<i32>} : memref<18x2x64xf32, #tpu.memory_space<vmem>>, vector<1x2x64xf32>,
    %c6 = arith.constant 6 : index
    %c0_98 = arith.constant 0 : index
    %c0_99 = arith.constant 0 : index
    %495 = vector.load %arg17[%c6, %c0_98, %c0_99] : memref<18x2x64xf32, #tpu.memory_space<vmem>>, vector<1x2x64xf32>
    %496 = vector.shape_cast %495 : vector<1x2x64xf32> to vector<2x64xf32>
    %497 = vector.shape_cast %467 : vector<2x64xf32> to vector<1x2x64xf32>
    tpu.vector_store %arg17[%c6, %c0_98, %c0_99], %497 {strides = array<i32>} : memref<18x2x64xf32, #tpu.memory_space<vmem>>, vector<1x2x64xf32>,
    %c7 = arith.constant 7 : index
    %c0_100 = arith.constant 0 : index
    %c0_101 = arith.constant 0 : index
    %498 = vector.load %arg17[%c7, %c0_100, %c0_101] : memref<18x2x64xf32, #tpu.memory_space<vmem>>, vector<1x2x64xf32>
    %499 = vector.shape_cast %498 : vector<1x2x64xf32> to vector<2x64xf32>
    %500 = vector.shape_cast %468 : vector<2x64xf32> to vector<1x2x64xf32>
    tpu.vector_store %arg17[%c7, %c0_100, %c0_101], %500 {strides = array<i32>} : memref<18x2x64xf32, #tpu.memory_space<vmem>>, vector<1x2x64xf32>,
    %c8 = arith.constant 8 : index
    %c0_102 = arith.constant 0 : index
    %c0_103 = arith.constant 0 : index
    %501 = vector.load %arg17[%c8, %c0_102, %c0_103] : memref<18x2x64xf32, #tpu.memory_space<vmem>>, vector<1x2x64xf32>
    %502 = vector.shape_cast %501 : vector<1x2x64xf32> to vector<2x64xf32>
    %503 = vector.shape_cast %468 : vector<2x64xf32> to vector<1x2x64xf32>
    tpu.vector_store %arg17[%c8, %c0_102, %c0_103], %503 {strides = array<i32>} : memref<18x2x64xf32, #tpu.memory_space<vmem>>, vector<1x2x64xf32>,
    %c9 = arith.constant 9 : index
    %c0_104 = arith.constant 0 : index
    %c0_105 = arith.constant 0 : index
    %504 = vector.load %arg17[%c9, %c0_104, %c0_105] : memref<18x2x64xf32, #tpu.memory_space<vmem>>, vector<1x2x64xf32>
    %505 = vector.shape_cast %504 : vector<1x2x64xf32> to vector<2x64xf32>
    %506 = vector.shape_cast %469 : vector<2x64xf32> to vector<1x2x64xf32>
    tpu.vector_store %arg17[%c9, %c0_104, %c0_105], %506 {strides = array<i32>} : memref<18x2x64xf32, #tpu.memory_space<vmem>>, vector<1x2x64xf32>,
    %c10 = arith.constant 10 : index
    %c0_106 = arith.constant 0 : index
    %c0_107 = arith.constant 0 : index
    %507 = vector.load %arg17[%c10, %c0_106, %c0_107] : memref<18x2x64xf32, #tpu.memory_space<vmem>>, vector<1x2x64xf32>
    %508 = vector.shape_cast %507 : vector<1x2x64xf32> to vector<2x64xf32>
    %509 = vector.shape_cast %469 : vector<2x64xf32> to vector<1x2x64xf32>
    tpu.vector_store %arg17[%c10, %c0_106, %c0_107], %509 {strides = array<i32>} : memref<18x2x64xf32, #tpu.memory_space<vmem>>, vector<1x2x64xf32>,
    %c11 = arith.constant 11 : index
    %c0_108 = arith.constant 0 : index
    %c0_109 = arith.constant 0 : index
    %510 = vector.load %arg17[%c11, %c0_108, %c0_109] : memref<18x2x64xf32, #tpu.memory_space<vmem>>, vector<1x2x64xf32>
    %511 = vector.shape_cast %510 : vector<1x2x64xf32> to vector<2x64xf32>
    %512 = vector.shape_cast %470 : vector<2x64xf32> to vector<1x2x64xf32>
    tpu.vector_store %arg17[%c11, %c0_108, %c0_109], %512 {strides = array<i32>} : memref<18x2x64xf32, #tpu.memory_space<vmem>>, vector<1x2x64xf32>,
    %c12 = arith.constant 12 : index
    %c0_110 = arith.constant 0 : index
    %c0_111 = arith.constant 0 : index
    %513 = vector.load %arg17[%c12, %c0_110, %c0_111] : memref<18x2x64xf32, #tpu.memory_space<vmem>>, vector<1x2x64xf32>
    %514 = vector.shape_cast %513 : vector<1x2x64xf32> to vector<2x64xf32>
    %515 = vector.shape_cast %470 : vector<2x64xf32> to vector<1x2x64xf32>
    tpu.vector_store %arg17[%c12, %c0_110, %c0_111], %515 {strides = array<i32>} : memref<18x2x64xf32, #tpu.memory_space<vmem>>, vector<1x2x64xf32>,
    %c13 = arith.constant 13 : index
    %c0_112 = arith.constant 0 : index
    %c0_113 = arith.constant 0 : index
    %516 = vector.load %arg17[%c13, %c0_112, %c0_113] : memref<18x2x64xf32, #tpu.memory_space<vmem>>, vector<1x2x64xf32>
    %517 = vector.shape_cast %516 : vector<1x2x64xf32> to vector<2x64xf32>
    %518 = vector.shape_cast %471 : vector<2x64xf32> to vector<1x2x64xf32>
    tpu.vector_store %arg17[%c13, %c0_112, %c0_113], %518 {strides = array<i32>} : memref<18x2x64xf32, #tpu.memory_space<vmem>>, vector<1x2x64xf32>,
    %c14 = arith.constant 14 : index
    %c0_114 = arith.constant 0 : index
    %c0_115 = arith.constant 0 : index
    %519 = vector.load %arg17[%c14, %c0_114, %c0_115] : memref<18x2x64xf32, #tpu.memory_space<vmem>>, vector<1x2x64xf32>
    %520 = vector.shape_cast %519 : vector<1x2x64xf32> to vector<2x64xf32>
    %521 = vector.shape_cast %471 : vector<2x64xf32> to vector<1x2x64xf32>
    tpu.vector_store %arg17[%c14, %c0_114, %c0_115], %521 {strides = array<i32>} : memref<18x2x64xf32, #tpu.memory_space<vmem>>, vector<1x2x64xf32>,
    %c15 = arith.constant 15 : index
    %c0_116 = arith.constant 0 : index
    %c0_117 = arith.constant 0 : index
    %522 = vector.load %arg17[%c15, %c0_116, %c0_117] : memref<18x2x64xf32, #tpu.memory_space<vmem>>, vector<1x2x64xf32>
    %523 = vector.shape_cast %522 : vector<1x2x64xf32> to vector<2x64xf32>
    %524 = vector.shape_cast %472 : vector<2x64xf32> to vector<1x2x64xf32>
    tpu.vector_store %arg17[%c15, %c0_116, %c0_117], %524 {strides = array<i32>} : memref<18x2x64xf32, #tpu.memory_space<vmem>>, vector<1x2x64xf32>,
    %c16 = arith.constant 16 : index
    %c0_118 = arith.constant 0 : index
    %c0_119 = arith.constant 0 : index
    %525 = vector.load %arg17[%c16, %c0_118, %c0_119] : memref<18x2x64xf32, #tpu.memory_space<vmem>>, vector<1x2x64xf32>
    %526 = vector.shape_cast %525 : vector<1x2x64xf32> to vector<2x64xf32>
    %527 = vector.shape_cast %472 : vector<2x64xf32> to vector<1x2x64xf32>
    tpu.vector_store %arg17[%c16, %c0_118, %c0_119], %527 {strides = array<i32>} : memref<18x2x64xf32, #tpu.memory_space<vmem>>, vector<1x2x64xf32>,
    %c0_120 = arith.constant 0 : index
    %c0_121 = arith.constant 0 : index
    %c0_122 = arith.constant 0 : index
    %528 = vector.load %arg17[%c0_120, %c0_121, %c0_122] : memref<18x2x64xf32, #tpu.memory_space<vmem>>, vector<18x2x64xf32>
    %529 = vector.extract_strided_slice %528 {offsets = [0, 0, 0], sizes = [16, 2, 64], strides = [1, 1, 1]} : vector<18x2x64xf32> to vector<16x2x64xf32>
    %530 = vector.extract_strided_slice %528 {offsets = [1, 0, 0], sizes = [16, 2, 64], strides = [1, 1, 1]} : vector<18x2x64xf32> to vector<16x2x64xf32>
    %531 = vector.extract_strided_slice %528 {offsets = [2, 0, 0], sizes = [16, 2, 64], strides = [1, 1, 1]} : vector<18x2x64xf32> to vector<16x2x64xf32>
    %532 = tpu.concatenate %529, %530, %531 in 2 : vector<16x2x64xf32>, vector<16x2x64xf32>, vector<16x2x64xf32> -> vector<16x2x192xf32>
    %533 = vector.shape_cast %532 : vector<16x2x192xf32> to vector<32x192xf32>
    %c0_123 = arith.constant 0 : index
    %c0_124 = arith.constant 0 : index
    %534 = vector.load %arg7[%c0_123, %c0_124] : memref<192x16xf32, #tpu.memory_space<vmem>>, vector<192x16xf32>
    %cst_125 = arith.constant dense<0.000000e+00> : vector<32x16xf32>
    %535 = tpu.matmul %533, %534, %cst_125 {dimension_numbers = #tpu.dot_dimension_numbers<[1], [0], [0], [1], [0, 0, 1, 1], [], []>} : vector<32x192xf32>, vector<192x16xf32>, vector<32x16xf32> -> vector<32x16xf32>
    %c0_126 = arith.constant 0 : index
    %c0_127 = arith.constant 0 : index
    %536 = vector.load %arg8[%c0_126, %c0_127] : memref<1x16xf32, #tpu.memory_space<vmem>>, vector<1x16xf32>
    %537 = vector.broadcast %536 : vector<1x16xf32> to vector<32x16xf32>
    %538 = arith.mulf %535, %537 : vector<32x16xf32>
    %c0_128 = arith.constant 0 : index
    %c0_129 = arith.constant 0 : index
    %539 = vector.load %arg9[%c0_128, %c0_129] : memref<1x16xf32, #tpu.memory_space<vmem>>, vector<1x16xf32>
    %540 = vector.broadcast %539 : vector<1x16xf32> to vector<32x16xf32>
    %541 = arith.addf %538, %540 : vector<32x16xf32>
    %cst_130 = arith.constant 0.000000e+00 : f32
    %542 = vector.broadcast %cst_130 : f32 to vector<32x16xf32>
    %543 = arith.maximumf %541, %542 : vector<32x16xf32>
    %544 = vector.shape_cast %543 : vector<32x16xf32> to vector<16x2x16xf32>
    %cst_131 = arith.constant 0.000000e+00 : f32
    %545 = vector.broadcast %cst_131 : f32 to vector<2x16xf32>
    %c0_132 = arith.constant 0 : index
    %c0_133 = arith.constant 0 : index
    %c0_134 = arith.constant 0 : index
    %546 = vector.load %arg18[%c0_132, %c0_133, %c0_134] : memref<34x2x16xf32, #tpu.memory_space<vmem>>, vector<1x2x16xf32>
    %547 = vector.shape_cast %546 : vector<1x2x16xf32> to vector<2x16xf32>
    %548 = vector.shape_cast %545 : vector<2x16xf32> to vector<1x2x16xf32>
    tpu.vector_store %arg18[%c0_132, %c0_133, %c0_134], %548 {strides = array<i32>} : memref<34x2x16xf32, #tpu.memory_space<vmem>>, vector<1x2x16xf32>,
    %c33 = arith.constant 33 : index
    %c0_135 = arith.constant 0 : index
    %c0_136 = arith.constant 0 : index
    %549 = vector.load %arg18[%c33, %c0_135, %c0_136] : memref<34x2x16xf32, #tpu.memory_space<vmem>>, vector<1x2x16xf32>
    %550 = vector.shape_cast %549 : vector<1x2x16xf32> to vector<2x16xf32>
    %551 = vector.shape_cast %545 : vector<2x16xf32> to vector<1x2x16xf32>
    tpu.vector_store %arg18[%c33, %c0_135, %c0_136], %551 {strides = array<i32>} : memref<34x2x16xf32, #tpu.memory_space<vmem>>, vector<1x2x16xf32>,
    %552 = vector.extract_strided_slice %544 {offsets = [0, 0, 0], sizes = [1, 2, 16], strides = [1, 1, 1]} : vector<16x2x16xf32> to vector<1x2x16xf32>
    %553 = vector.shape_cast %552 : vector<1x2x16xf32> to vector<2x16xf32>
    %c1_137 = arith.constant 1 : index
    %c0_138 = arith.constant 0 : index
    %c0_139 = arith.constant 0 : index
    %554 = vector.load %arg18[%c1_137, %c0_138, %c0_139] : memref<34x2x16xf32, #tpu.memory_space<vmem>>, vector<1x2x16xf32>
    %555 = vector.shape_cast %554 : vector<1x2x16xf32> to vector<2x16xf32>
    %556 = vector.shape_cast %553 : vector<2x16xf32> to vector<1x2x16xf32>
    tpu.vector_store %arg18[%c1_137, %c0_138, %c0_139], %556 {strides = array<i32>} : memref<34x2x16xf32, #tpu.memory_space<vmem>>, vector<1x2x16xf32>,
    %c2_140 = arith.constant 2 : index
    %c0_141 = arith.constant 0 : index
    %c0_142 = arith.constant 0 : index
    %557 = vector.load %arg18[%c2_140, %c0_141, %c0_142] : memref<34x2x16xf32, #tpu.memory_space<vmem>>, vector<1x2x16xf32>
    %558 = vector.shape_cast %557 : vector<1x2x16xf32> to vector<2x16xf32>
    %559 = vector.shape_cast %553 : vector<2x16xf32> to vector<1x2x16xf32>
    tpu.vector_store %arg18[%c2_140, %c0_141, %c0_142], %559 {strides = array<i32>} : memref<34x2x16xf32, #tpu.memory_space<vmem>>, vector<1x2x16xf32>,
    %560 = vector.extract_strided_slice %544 {offsets = [1, 0, 0], sizes = [1, 2, 16], strides = [1, 1, 1]} : vector<16x2x16xf32> to vector<1x2x16xf32>
    %561 = vector.shape_cast %560 : vector<1x2x16xf32> to vector<2x16xf32>
    %c3_143 = arith.constant 3 : index
    %c0_144 = arith.constant 0 : index
    %c0_145 = arith.constant 0 : index
    %562 = vector.load %arg18[%c3_143, %c0_144, %c0_145] : memref<34x2x16xf32, #tpu.memory_space<vmem>>, vector<1x2x16xf32>
    %563 = vector.shape_cast %562 : vector<1x2x16xf32> to vector<2x16xf32>
    %564 = vector.shape_cast %561 : vector<2x16xf32> to vector<1x2x16xf32>
    tpu.vector_store %arg18[%c3_143, %c0_144, %c0_145], %564 {strides = array<i32>} : memref<34x2x16xf32, #tpu.memory_space<vmem>>, vector<1x2x16xf32>,
    %c4_146 = arith.constant 4 : index
    %c0_147 = arith.constant 0 : index
    %c0_148 = arith.constant 0 : index
    %565 = vector.load %arg18[%c4_146, %c0_147, %c0_148] : memref<34x2x16xf32, #tpu.memory_space<vmem>>, vector<1x2x16xf32>
    %566 = vector.shape_cast %565 : vector<1x2x16xf32> to vector<2x16xf32>
    %567 = vector.shape_cast %561 : vector<2x16xf32> to vector<1x2x16xf32>
    tpu.vector_store %arg18[%c4_146, %c0_147, %c0_148], %567 {strides = array<i32>} : memref<34x2x16xf32, #tpu.memory_space<vmem>>, vector<1x2x16xf32>,
    %568 = vector.extract_strided_slice %544 {offsets = [2, 0, 0], sizes = [1, 2, 16], strides = [1, 1, 1]} : vector<16x2x16xf32> to vector<1x2x16xf32>
    %569 = vector.shape_cast %568 : vector<1x2x16xf32> to vector<2x16xf32>
    %c5_149 = arith.constant 5 : index
    %c0_150 = arith.constant 0 : index
    %c0_151 = arith.constant 0 : index
    %570 = vector.load %arg18[%c5_149, %c0_150, %c0_151] : memref<34x2x16xf32, #tpu.memory_space<vmem>>, vector<1x2x16xf32>
    %571 = vector.shape_cast %570 : vector<1x2x16xf32> to vector<2x16xf32>
    %572 = vector.shape_cast %569 : vector<2x16xf32> to vector<1x2x16xf32>
    tpu.vector_store %arg18[%c5_149, %c0_150, %c0_151], %572 {strides = array<i32>} : memref<34x2x16xf32, #tpu.memory_space<vmem>>, vector<1x2x16xf32>,
    %c6_152 = arith.constant 6 : index
    %c0_153 = arith.constant 0 : index
    %c0_154 = arith.constant 0 : index
    %573 = vector.load %arg18[%c6_152, %c0_153, %c0_154] : memref<34x2x16xf32, #tpu.memory_space<vmem>>, vector<1x2x16xf32>
    %574 = vector.shape_cast %573 : vector<1x2x16xf32> to vector<2x16xf32>
    %575 = vector.shape_cast %569 : vector<2x16xf32> to vector<1x2x16xf32>
    tpu.vector_store %arg18[%c6_152, %c0_153, %c0_154], %575 {strides = array<i32>} : memref<34x2x16xf32, #tpu.memory_space<vmem>>, vector<1x2x16xf32>,
    %576 = vector.extract_strided_slice %544 {offsets = [3, 0, 0], sizes = [1, 2, 16], strides = [1, 1, 1]} : vector<16x2x16xf32> to vector<1x2x16xf32>
    %577 = vector.shape_cast %576 : vector<1x2x16xf32> to vector<2x16xf32>
    %c7_155 = arith.constant 7 : index
    %c0_156 = arith.constant 0 : index
    %c0_157 = arith.constant 0 : index
    %578 = vector.load %arg18[%c7_155, %c0_156, %c0_157] : memref<34x2x16xf32, #tpu.memory_space<vmem>>, vector<1x2x16xf32>
    %579 = vector.shape_cast %578 : vector<1x2x16xf32> to vector<2x16xf32>
    %580 = vector.shape_cast %577 : vector<2x16xf32> to vector<1x2x16xf32>
    tpu.vector_store %arg18[%c7_155, %c0_156, %c0_157], %580 {strides = array<i32>} : memref<34x2x16xf32, #tpu.memory_space<vmem>>, vector<1x2x16xf32>,
    %c8_158 = arith.constant 8 : index
    %c0_159 = arith.constant 0 : index
    %c0_160 = arith.constant 0 : index
    %581 = vector.load %arg18[%c8_158, %c0_159, %c0_160] : memref<34x2x16xf32, #tpu.memory_space<vmem>>, vector<1x2x16xf32>
    %582 = vector.shape_cast %581 : vector<1x2x16xf32> to vector<2x16xf32>
    %583 = vector.shape_cast %577 : vector<2x16xf32> to vector<1x2x16xf32>
    tpu.vector_store %arg18[%c8_158, %c0_159, %c0_160], %583 {strides = array<i32>} : memref<34x2x16xf32, #tpu.memory_space<vmem>>, vector<1x2x16xf32>,
    %584 = vector.extract_strided_slice %544 {offsets = [4, 0, 0], sizes = [1, 2, 16], strides = [1, 1, 1]} : vector<16x2x16xf32> to vector<1x2x16xf32>
    %585 = vector.shape_cast %584 : vector<1x2x16xf32> to vector<2x16xf32>
    %c9_161 = arith.constant 9 : index
    %c0_162 = arith.constant 0 : index
    %c0_163 = arith.constant 0 : index
    %586 = vector.load %arg18[%c9_161, %c0_162, %c0_163] : memref<34x2x16xf32, #tpu.memory_space<vmem>>, vector<1x2x16xf32>
    %587 = vector.shape_cast %586 : vector<1x2x16xf32> to vector<2x16xf32>
    %588 = vector.shape_cast %585 : vector<2x16xf32> to vector<1x2x16xf32>
    tpu.vector_store %arg18[%c9_161, %c0_162, %c0_163], %588 {strides = array<i32>} : memref<34x2x16xf32, #tpu.memory_space<vmem>>, vector<1x2x16xf32>,
    %c10_164 = arith.constant 10 : index
    %c0_165 = arith.constant 0 : index
    %c0_166 = arith.constant 0 : index
    %589 = vector.load %arg18[%c10_164, %c0_165, %c0_166] : memref<34x2x16xf32, #tpu.memory_space<vmem>>, vector<1x2x16xf32>
    %590 = vector.shape_cast %589 : vector<1x2x16xf32> to vector<2x16xf32>
    %591 = vector.shape_cast %585 : vector<2x16xf32> to vector<1x2x16xf32>
    tpu.vector_store %arg18[%c10_164, %c0_165, %c0_166], %591 {strides = array<i32>} : memref<34x2x16xf32, #tpu.memory_space<vmem>>, vector<1x2x16xf32>,
    %592 = vector.extract_strided_slice %544 {offsets = [5, 0, 0], sizes = [1, 2, 16], strides = [1, 1, 1]} : vector<16x2x16xf32> to vector<1x2x16xf32>
    %593 = vector.shape_cast %592 : vector<1x2x16xf32> to vector<2x16xf32>
    %c11_167 = arith.constant 11 : index
    %c0_168 = arith.constant 0 : index
    %c0_169 = arith.constant 0 : index
    %594 = vector.load %arg18[%c11_167, %c0_168, %c0_169] : memref<34x2x16xf32, #tpu.memory_space<vmem>>, vector<1x2x16xf32>
    %595 = vector.shape_cast %594 : vector<1x2x16xf32> to vector<2x16xf32>
    %596 = vector.shape_cast %593 : vector<2x16xf32> to vector<1x2x16xf32>
    tpu.vector_store %arg18[%c11_167, %c0_168, %c0_169], %596 {strides = array<i32>} : memref<34x2x16xf32, #tpu.memory_space<vmem>>, vector<1x2x16xf32>,
    %c12_170 = arith.constant 12 : index
    %c0_171 = arith.constant 0 : index
    %c0_172 = arith.constant 0 : index
    %597 = vector.load %arg18[%c12_170, %c0_171, %c0_172] : memref<34x2x16xf32, #tpu.memory_space<vmem>>, vector<1x2x16xf32>
    %598 = vector.shape_cast %597 : vector<1x2x16xf32> to vector<2x16xf32>
    %599 = vector.shape_cast %593 : vector<2x16xf32> to vector<1x2x16xf32>
    tpu.vector_store %arg18[%c12_170, %c0_171, %c0_172], %599 {strides = array<i32>} : memref<34x2x16xf32, #tpu.memory_space<vmem>>, vector<1x2x16xf32>,
    %600 = vector.extract_strided_slice %544 {offsets = [6, 0, 0], sizes = [1, 2, 16], strides = [1, 1, 1]} : vector<16x2x16xf32> to vector<1x2x16xf32>
    %601 = vector.shape_cast %600 : vector<1x2x16xf32> to vector<2x16xf32>
    %c13_173 = arith.constant 13 : index
    %c0_174 = arith.constant 0 : index
    %c0_175 = arith.constant 0 : index
    %602 = vector.load %arg18[%c13_173, %c0_174, %c0_175] : memref<34x2x16xf32, #tpu.memory_space<vmem>>, vector<1x2x16xf32>
    %603 = vector.shape_cast %602 : vector<1x2x16xf32> to vector<2x16xf32>
    %604 = vector.shape_cast %601 : vector<2x16xf32> to vector<1x2x16xf32>
    tpu.vector_store %arg18[%c13_173, %c0_174, %c0_175], %604 {strides = array<i32>} : memref<34x2x16xf32, #tpu.memory_space<vmem>>, vector<1x2x16xf32>,
    %c14_176 = arith.constant 14 : index
    %c0_177 = arith.constant 0 : index
    %c0_178 = arith.constant 0 : index
    %605 = vector.load %arg18[%c14_176, %c0_177, %c0_178] : memref<34x2x16xf32, #tpu.memory_space<vmem>>, vector<1x2x16xf32>
    %606 = vector.shape_cast %605 : vector<1x2x16xf32> to vector<2x16xf32>
    %607 = vector.shape_cast %601 : vector<2x16xf32> to vector<1x2x16xf32>
    tpu.vector_store %arg18[%c14_176, %c0_177, %c0_178], %607 {strides = array<i32>} : memref<34x2x16xf32, #tpu.memory_space<vmem>>, vector<1x2x16xf32>,
    %608 = vector.extract_strided_slice %544 {offsets = [7, 0, 0], sizes = [1, 2, 16], strides = [1, 1, 1]} : vector<16x2x16xf32> to vector<1x2x16xf32>
    %609 = vector.shape_cast %608 : vector<1x2x16xf32> to vector<2x16xf32>
    %c15_179 = arith.constant 15 : index
    %c0_180 = arith.constant 0 : index
    %c0_181 = arith.constant 0 : index
    %610 = vector.load %arg18[%c15_179, %c0_180, %c0_181] : memref<34x2x16xf32, #tpu.memory_space<vmem>>, vector<1x2x16xf32>
    %611 = vector.shape_cast %610 : vector<1x2x16xf32> to vector<2x16xf32>
    %612 = vector.shape_cast %609 : vector<2x16xf32> to vector<1x2x16xf32>
    tpu.vector_store %arg18[%c15_179, %c0_180, %c0_181], %612 {strides = array<i32>} : memref<34x2x16xf32, #tpu.memory_space<vmem>>, vector<1x2x16xf32>,
    %c16_182 = arith.constant 16 : index
    %c0_183 = arith.constant 0 : index
    %c0_184 = arith.constant 0 : index
    %613 = vector.load %arg18[%c16_182, %c0_183, %c0_184] : memref<34x2x16xf32, #tpu.memory_space<vmem>>, vector<1x2x16xf32>
    %614 = vector.shape_cast %613 : vector<1x2x16xf32> to vector<2x16xf32>
    %615 = vector.shape_cast %609 : vector<2x16xf32> to vector<1x2x16xf32>
    tpu.vector_store %arg18[%c16_182, %c0_183, %c0_184], %615 {strides = array<i32>} : memref<34x2x16xf32, #tpu.memory_space<vmem>>, vector<1x2x16xf32>,
    %616 = vector.extract_strided_slice %544 {offsets = [8, 0, 0], sizes = [1, 2, 16], strides = [1, 1, 1]} : vector<16x2x16xf32> to vector<1x2x16xf32>
    %617 = vector.shape_cast %616 : vector<1x2x16xf32> to vector<2x16xf32>
    %c17_185 = arith.constant 17 : index
    %c0_186 = arith.constant 0 : index
    %c0_187 = arith.constant 0 : index
    %618 = vector.load %arg18[%c17_185, %c0_186, %c0_187] : memref<34x2x16xf32, #tpu.memory_space<vmem>>, vector<1x2x16xf32>
    %619 = vector.shape_cast %618 : vector<1x2x16xf32> to vector<2x16xf32>
    %620 = vector.shape_cast %617 : vector<2x16xf32> to vector<1x2x16xf32>
    tpu.vector_store %arg18[%c17_185, %c0_186, %c0_187], %620 {strides = array<i32>} : memref<34x2x16xf32, #tpu.memory_space<vmem>>, vector<1x2x16xf32>,
    %c18 = arith.constant 18 : index
    %c0_188 = arith.constant 0 : index
    %c0_189 = arith.constant 0 : index
    %621 = vector.load %arg18[%c18, %c0_188, %c0_189] : memref<34x2x16xf32, #tpu.memory_space<vmem>>, vector<1x2x16xf32>
    %622 = vector.shape_cast %621 : vector<1x2x16xf32> to vector<2x16xf32>
    %623 = vector.shape_cast %617 : vector<2x16xf32> to vector<1x2x16xf32>
    tpu.vector_store %arg18[%c18, %c0_188, %c0_189], %623 {strides = array<i32>} : memref<34x2x16xf32, #tpu.memory_space<vmem>>, vector<1x2x16xf32>,
    %624 = vector.extract_strided_slice %544 {offsets = [9, 0, 0], sizes = [1, 2, 16], strides = [1, 1, 1]} : vector<16x2x16xf32> to vector<1x2x16xf32>
    %625 = vector.shape_cast %624 : vector<1x2x16xf32> to vector<2x16xf32>
    %c19 = arith.constant 19 : index
    %c0_190 = arith.constant 0 : index
    %c0_191 = arith.constant 0 : index
    %626 = vector.load %arg18[%c19, %c0_190, %c0_191] : memref<34x2x16xf32, #tpu.memory_space<vmem>>, vector<1x2x16xf32>
    %627 = vector.shape_cast %626 : vector<1x2x16xf32> to vector<2x16xf32>
    %628 = vector.shape_cast %625 : vector<2x16xf32> to vector<1x2x16xf32>
    tpu.vector_store %arg18[%c19, %c0_190, %c0_191], %628 {strides = array<i32>} : memref<34x2x16xf32, #tpu.memory_space<vmem>>, vector<1x2x16xf32>,
    %c20 = arith.constant 20 : index
    %c0_192 = arith.constant 0 : index
    %c0_193 = arith.constant 0 : index
    %629 = vector.load %arg18[%c20, %c0_192, %c0_193] : memref<34x2x16xf32, #tpu.memory_space<vmem>>, vector<1x2x16xf32>
    %630 = vector.shape_cast %629 : vector<1x2x16xf32> to vector<2x16xf32>
    %631 = vector.shape_cast %625 : vector<2x16xf32> to vector<1x2x16xf32>
    tpu.vector_store %arg18[%c20, %c0_192, %c0_193], %631 {strides = array<i32>} : memref<34x2x16xf32, #tpu.memory_space<vmem>>, vector<1x2x16xf32>,
    %632 = vector.extract_strided_slice %544 {offsets = [10, 0, 0], sizes = [1, 2, 16], strides = [1, 1, 1]} : vector<16x2x16xf32> to vector<1x2x16xf32>
    %633 = vector.shape_cast %632 : vector<1x2x16xf32> to vector<2x16xf32>
    %c21 = arith.constant 21 : index
    %c0_194 = arith.constant 0 : index
    %c0_195 = arith.constant 0 : index
    %634 = vector.load %arg18[%c21, %c0_194, %c0_195] : memref<34x2x16xf32, #tpu.memory_space<vmem>>, vector<1x2x16xf32>
    %635 = vector.shape_cast %634 : vector<1x2x16xf32> to vector<2x16xf32>
    %636 = vector.shape_cast %633 : vector<2x16xf32> to vector<1x2x16xf32>
    tpu.vector_store %arg18[%c21, %c0_194, %c0_195], %636 {strides = array<i32>} : memref<34x2x16xf32, #tpu.memory_space<vmem>>, vector<1x2x16xf32>,
    %c22 = arith.constant 22 : index
    %c0_196 = arith.constant 0 : index
    %c0_197 = arith.constant 0 : index
    %637 = vector.load %arg18[%c22, %c0_196, %c0_197] : memref<34x2x16xf32, #tpu.memory_space<vmem>>, vector<1x2x16xf32>
    %638 = vector.shape_cast %637 : vector<1x2x16xf32> to vector<2x16xf32>
    %639 = vector.shape_cast %633 : vector<2x16xf32> to vector<1x2x16xf32>
    tpu.vector_store %arg18[%c22, %c0_196, %c0_197], %639 {strides = array<i32>} : memref<34x2x16xf32, #tpu.memory_space<vmem>>, vector<1x2x16xf32>,
    %640 = vector.extract_strided_slice %544 {offsets = [11, 0, 0], sizes = [1, 2, 16], strides = [1, 1, 1]} : vector<16x2x16xf32> to vector<1x2x16xf32>
    %641 = vector.shape_cast %640 : vector<1x2x16xf32> to vector<2x16xf32>
    %c23 = arith.constant 23 : index
    %c0_198 = arith.constant 0 : index
    %c0_199 = arith.constant 0 : index
    %642 = vector.load %arg18[%c23, %c0_198, %c0_199] : memref<34x2x16xf32, #tpu.memory_space<vmem>>, vector<1x2x16xf32>
    %643 = vector.shape_cast %642 : vector<1x2x16xf32> to vector<2x16xf32>
    %644 = vector.shape_cast %641 : vector<2x16xf32> to vector<1x2x16xf32>
    tpu.vector_store %arg18[%c23, %c0_198, %c0_199], %644 {strides = array<i32>} : memref<34x2x16xf32, #tpu.memory_space<vmem>>, vector<1x2x16xf32>,
    %c24 = arith.constant 24 : index
    %c0_200 = arith.constant 0 : index
    %c0_201 = arith.constant 0 : index
    %645 = vector.load %arg18[%c24, %c0_200, %c0_201] : memref<34x2x16xf32, #tpu.memory_space<vmem>>, vector<1x2x16xf32>
    %646 = vector.shape_cast %645 : vector<1x2x16xf32> to vector<2x16xf32>
    %647 = vector.shape_cast %641 : vector<2x16xf32> to vector<1x2x16xf32>
    tpu.vector_store %arg18[%c24, %c0_200, %c0_201], %647 {strides = array<i32>} : memref<34x2x16xf32, #tpu.memory_space<vmem>>, vector<1x2x16xf32>,
    %648 = vector.extract_strided_slice %544 {offsets = [12, 0, 0], sizes = [1, 2, 16], strides = [1, 1, 1]} : vector<16x2x16xf32> to vector<1x2x16xf32>
    %649 = vector.shape_cast %648 : vector<1x2x16xf32> to vector<2x16xf32>
    %c25 = arith.constant 25 : index
    %c0_202 = arith.constant 0 : index
    %c0_203 = arith.constant 0 : index
    %650 = vector.load %arg18[%c25, %c0_202, %c0_203] : memref<34x2x16xf32, #tpu.memory_space<vmem>>, vector<1x2x16xf32>
    %651 = vector.shape_cast %650 : vector<1x2x16xf32> to vector<2x16xf32>
    %652 = vector.shape_cast %649 : vector<2x16xf32> to vector<1x2x16xf32>
    tpu.vector_store %arg18[%c25, %c0_202, %c0_203], %652 {strides = array<i32>} : memref<34x2x16xf32, #tpu.memory_space<vmem>>, vector<1x2x16xf32>,
    %c26 = arith.constant 26 : index
    %c0_204 = arith.constant 0 : index
    %c0_205 = arith.constant 0 : index
    %653 = vector.load %arg18[%c26, %c0_204, %c0_205] : memref<34x2x16xf32, #tpu.memory_space<vmem>>, vector<1x2x16xf32>
    %654 = vector.shape_cast %653 : vector<1x2x16xf32> to vector<2x16xf32>
    %655 = vector.shape_cast %649 : vector<2x16xf32> to vector<1x2x16xf32>
    tpu.vector_store %arg18[%c26, %c0_204, %c0_205], %655 {strides = array<i32>} : memref<34x2x16xf32, #tpu.memory_space<vmem>>, vector<1x2x16xf32>,
    %656 = vector.extract_strided_slice %544 {offsets = [13, 0, 0], sizes = [1, 2, 16], strides = [1, 1, 1]} : vector<16x2x16xf32> to vector<1x2x16xf32>
    %657 = vector.shape_cast %656 : vector<1x2x16xf32> to vector<2x16xf32>
    %c27 = arith.constant 27 : index
    %c0_206 = arith.constant 0 : index
    %c0_207 = arith.constant 0 : index
    %658 = vector.load %arg18[%c27, %c0_206, %c0_207] : memref<34x2x16xf32, #tpu.memory_space<vmem>>, vector<1x2x16xf32>
    %659 = vector.shape_cast %658 : vector<1x2x16xf32> to vector<2x16xf32>
    %660 = vector.shape_cast %657 : vector<2x16xf32> to vector<1x2x16xf32>
    tpu.vector_store %arg18[%c27, %c0_206, %c0_207], %660 {strides = array<i32>} : memref<34x2x16xf32, #tpu.memory_space<vmem>>, vector<1x2x16xf32>,
    %c28 = arith.constant 28 : index
    %c0_208 = arith.constant 0 : index
    %c0_209 = arith.constant 0 : index
    %661 = vector.load %arg18[%c28, %c0_208, %c0_209] : memref<34x2x16xf32, #tpu.memory_space<vmem>>, vector<1x2x16xf32>
    %662 = vector.shape_cast %661 : vector<1x2x16xf32> to vector<2x16xf32>
    %663 = vector.shape_cast %657 : vector<2x16xf32> to vector<1x2x16xf32>
    tpu.vector_store %arg18[%c28, %c0_208, %c0_209], %663 {strides = array<i32>} : memref<34x2x16xf32, #tpu.memory_space<vmem>>, vector<1x2x16xf32>,
    %664 = vector.extract_strided_slice %544 {offsets = [14, 0, 0], sizes = [1, 2, 16], strides = [1, 1, 1]} : vector<16x2x16xf32> to vector<1x2x16xf32>
    %665 = vector.shape_cast %664 : vector<1x2x16xf32> to vector<2x16xf32>
    %c29 = arith.constant 29 : index
    %c0_210 = arith.constant 0 : index
    %c0_211 = arith.constant 0 : index
    %666 = vector.load %arg18[%c29, %c0_210, %c0_211] : memref<34x2x16xf32, #tpu.memory_space<vmem>>, vector<1x2x16xf32>
    %667 = vector.shape_cast %666 : vector<1x2x16xf32> to vector<2x16xf32>
    %668 = vector.shape_cast %665 : vector<2x16xf32> to vector<1x2x16xf32>
    tpu.vector_store %arg18[%c29, %c0_210, %c0_211], %668 {strides = array<i32>} : memref<34x2x16xf32, #tpu.memory_space<vmem>>, vector<1x2x16xf32>,
    %c30 = arith.constant 30 : index
    %c0_212 = arith.constant 0 : index
    %c0_213 = arith.constant 0 : index
    %669 = vector.load %arg18[%c30, %c0_212, %c0_213] : memref<34x2x16xf32, #tpu.memory_space<vmem>>, vector<1x2x16xf32>
    %670 = vector.shape_cast %669 : vector<1x2x16xf32> to vector<2x16xf32>
    %671 = vector.shape_cast %665 : vector<2x16xf32> to vector<1x2x16xf32>
    tpu.vector_store %arg18[%c30, %c0_212, %c0_213], %671 {strides = array<i32>} : memref<34x2x16xf32, #tpu.memory_space<vmem>>, vector<1x2x16xf32>,
    %672 = vector.extract_strided_slice %544 {offsets = [15, 0, 0], sizes = [1, 2, 16], strides = [1, 1, 1]} : vector<16x2x16xf32> to vector<1x2x16xf32>
    %673 = vector.shape_cast %672 : vector<1x2x16xf32> to vector<2x16xf32>
    %c31 = arith.constant 31 : index
    %c0_214 = arith.constant 0 : index
    %c0_215 = arith.constant 0 : index
    %674 = vector.load %arg18[%c31, %c0_214, %c0_215] : memref<34x2x16xf32, #tpu.memory_space<vmem>>, vector<1x2x16xf32>
    %675 = vector.shape_cast %674 : vector<1x2x16xf32> to vector<2x16xf32>
    %676 = vector.shape_cast %673 : vector<2x16xf32> to vector<1x2x16xf32>
    tpu.vector_store %arg18[%c31, %c0_214, %c0_215], %676 {strides = array<i32>} : memref<34x2x16xf32, #tpu.memory_space<vmem>>, vector<1x2x16xf32>,
    %c32 = arith.constant 32 : index
    %c0_216 = arith.constant 0 : index
    %c0_217 = arith.constant 0 : index
    %677 = vector.load %arg18[%c32, %c0_216, %c0_217] : memref<34x2x16xf32, #tpu.memory_space<vmem>>, vector<1x2x16xf32>
    %678 = vector.shape_cast %677 : vector<1x2x16xf32> to vector<2x16xf32>
    %679 = vector.shape_cast %673 : vector<2x16xf32> to vector<1x2x16xf32>
    tpu.vector_store %arg18[%c32, %c0_216, %c0_217], %679 {strides = array<i32>} : memref<34x2x16xf32, #tpu.memory_space<vmem>>, vector<1x2x16xf32>,
    %c0_218 = arith.constant 0 : index
    %c0_219 = arith.constant 0 : index
    %c0_220 = arith.constant 0 : index
    %680 = vector.load %arg18[%c0_218, %c0_219, %c0_220] : memref<34x2x16xf32, #tpu.memory_space<vmem>>, vector<34x2x16xf32>
    %681 = vector.extract_strided_slice %680 {offsets = [0, 0, 0], sizes = [32, 2, 16], strides = [1, 1, 1]} : vector<34x2x16xf32> to vector<32x2x16xf32>
    %682 = vector.extract_strided_slice %680 {offsets = [1, 0, 0], sizes = [32, 2, 16], strides = [1, 1, 1]} : vector<34x2x16xf32> to vector<32x2x16xf32>
    %683 = vector.extract_strided_slice %680 {offsets = [2, 0, 0], sizes = [32, 2, 16], strides = [1, 1, 1]} : vector<34x2x16xf32> to vector<32x2x16xf32>
    %684 = tpu.concatenate %681, %682, %683 in 2 : vector<32x2x16xf32>, vector<32x2x16xf32>, vector<32x2x16xf32> -> vector<32x2x48xf32>
    %685 = vector.shape_cast %684 : vector<32x2x48xf32> to vector<64x48xf32>
    %c0_221 = arith.constant 0 : index
    %c0_222 = arith.constant 0 : index
    %686 = vector.load %arg10[%c0_221, %c0_222] : memref<48x8xf32, #tpu.memory_space<vmem>>, vector<48x8xf32>
    %cst_223 = arith.constant dense<0.000000e+00> : vector<64x8xf32>
    %687 = tpu.matmul %685, %686, %cst_223 {dimension_numbers = #tpu.dot_dimension_numbers<[1], [0], [0], [1], [0, 0, 1, 1], [], []>} : vector<64x48xf32>, vector<48x8xf32>, vector<64x8xf32> -> vector<64x8xf32>
    %c0_224 = arith.constant 0 : index
    %c0_225 = arith.constant 0 : index
    %688 = vector.load %arg11[%c0_224, %c0_225] : memref<1x8xf32, #tpu.memory_space<vmem>>, vector<1x8xf32>
    %689 = vector.broadcast %688 : vector<1x8xf32> to vector<64x8xf32>
    %690 = arith.mulf %687, %689 : vector<64x8xf32>
    %c0_226 = arith.constant 0 : index
    %c0_227 = arith.constant 0 : index
    %691 = vector.load %arg12[%c0_226, %c0_227] : memref<1x8xf32, #tpu.memory_space<vmem>>, vector<1x8xf32>
    %692 = vector.broadcast %691 : vector<1x8xf32> to vector<64x8xf32>
    %693 = arith.addf %690, %692 : vector<64x8xf32>
    %cst_228 = arith.constant 0.000000e+00 : f32
    %694 = vector.broadcast %cst_228 : f32 to vector<64x8xf32>
    %695 = arith.maximumf %693, %694 : vector<64x8xf32>
    %cst_229 = arith.constant 0.000000e+00 : f32
    %696 = vector.broadcast %cst_229 : f32 to vector<2x8xf32>
    %c0_230 = arith.constant 0 : index
    %c0_231 = arith.constant 0 : index
    %c0_232 = arith.constant 0 : index
    %697 = vector.load %arg19[%c0_230, %c0_231, %c0_232] : memref<34x2x8xf32, #tpu.memory_space<vmem>>, vector<1x2x8xf32>
    %698 = vector.shape_cast %697 : vector<1x2x8xf32> to vector<2x8xf32>
    %699 = vector.shape_cast %696 : vector<2x8xf32> to vector<1x2x8xf32>
    tpu.vector_store %arg19[%c0_230, %c0_231, %c0_232], %699 {strides = array<i32>} : memref<34x2x8xf32, #tpu.memory_space<vmem>>, vector<1x2x8xf32>,
    %c33_233 = arith.constant 33 : index
    %c0_234 = arith.constant 0 : index
    %c0_235 = arith.constant 0 : index
    %700 = vector.load %arg19[%c33_233, %c0_234, %c0_235] : memref<34x2x8xf32, #tpu.memory_space<vmem>>, vector<1x2x8xf32>
    %701 = vector.shape_cast %700 : vector<1x2x8xf32> to vector<2x8xf32>
    %702 = vector.shape_cast %696 : vector<2x8xf32> to vector<1x2x8xf32>
    tpu.vector_store %arg19[%c33_233, %c0_234, %c0_235], %702 {strides = array<i32>} : memref<34x2x8xf32, #tpu.memory_space<vmem>>, vector<1x2x8xf32>,
    %703 = vector.shape_cast %695 : vector<64x8xf32> to vector<32x2x8xf32>
    %c1_236 = arith.constant 1 : index
    %c0_237 = arith.constant 0 : index
    %c0_238 = arith.constant 0 : index
    %704 = vector.load %arg19[%c1_236, %c0_237, %c0_238] : memref<34x2x8xf32, #tpu.memory_space<vmem>>, vector<32x2x8xf32>
    tpu.vector_store %arg19[%c1_236, %c0_237, %c0_238], %703 {strides = array<i32>} : memref<34x2x8xf32, #tpu.memory_space<vmem>>, vector<32x2x8xf32>,
    %c0_239 = arith.constant 0 : index
    %c0_240 = arith.constant 0 : index
    %c0_241 = arith.constant 0 : index
    %705 = vector.load %arg19[%c0_239, %c0_240, %c0_241] : memref<34x2x8xf32, #tpu.memory_space<vmem>>, vector<34x2x8xf32>
    %706 = vector.extract_strided_slice %705 {offsets = [0, 0, 0], sizes = [32, 2, 8], strides = [1, 1, 1]} : vector<34x2x8xf32> to vector<32x2x8xf32>
    %707 = vector.extract_strided_slice %705 {offsets = [1, 0, 0], sizes = [32, 2, 8], strides = [1, 1, 1]} : vector<34x2x8xf32> to vector<32x2x8xf32>
    %708 = vector.extract_strided_slice %705 {offsets = [2, 0, 0], sizes = [32, 2, 8], strides = [1, 1, 1]} : vector<34x2x8xf32> to vector<32x2x8xf32>
    %709 = tpu.concatenate %706, %707, %708 in 2 : vector<32x2x8xf32>, vector<32x2x8xf32>, vector<32x2x8xf32> -> vector<32x2x24xf32>
    %710 = vector.shape_cast %709 : vector<32x2x24xf32> to vector<64x24xf32>
    %c0_242 = arith.constant 0 : index
    %c0_243 = arith.constant 0 : index
    %711 = vector.load %arg13[%c0_242, %c0_243] : memref<24x1xf32, #tpu.memory_space<vmem>>, vector<24x1xf32>
    %cst_244 = arith.constant dense<0.000000e+00> : vector<64x1xf32>
    %712 = tpu.matmul %710, %711, %cst_244 {dimension_numbers = #tpu.dot_dimension_numbers<[1], [0], [0], [1], [0, 0, 1, 1], [], []>} : vector<64x24xf32>, vector<24x1xf32>, vector<64x1xf32> -> vector<64x1xf32>
    %c0_245 = arith.constant 0 : index
    %c0_246 = arith.constant 0 : index
    %713 = vector.load %arg14[%c0_245, %c0_246] : memref<1x1xf32, #tpu.memory_space<vmem>>, vector<1x1xf32>
    %714 = vector.broadcast %713 : vector<1x1xf32> to vector<64x1xf32>
    %715 = arith.mulf %712, %714 : vector<64x1xf32>
    %c0_247 = arith.constant 0 : index
    %c0_248 = arith.constant 0 : index
    %716 = vector.load %arg15[%c0_247, %c0_248] : memref<1x1xf32, #tpu.memory_space<vmem>>, vector<1x1xf32>
    %717 = vector.broadcast %716 : vector<1x1xf32> to vector<64x1xf32>
    %718 = arith.addf %715, %717 : vector<64x1xf32>
    %c0_249 = arith.constant 0 : index
    %c0_250 = arith.constant 0 : index
    %719 = vector.load %arg16[%c0_249, %c0_250] : memref<64x1xf32, #tpu.memory_space<vmem>>, vector<64x1xf32>
    tpu.vector_store %arg16[%c0_249, %c0_250], %718 {strides = array<i32>} : memref<64x1xf32, #tpu.memory_space<vmem>>, vector<64x1xf32>,
    return
  }
}

</mosaic_0001>

<llo_original>
// kernel: tpu_custom_call.1
$region0: #{tpu_custom_call.1}
  #allocation0 [shape = 'u32[]', space=smem, size = 0x4, offset = 0x4, fixed_abs, tag = 'smem constant byte address 0x4 - core index']
  #allocation1 [shape = 'u32[72,128]{1,0:T(1,128)}', space=vmem, size = 0x9000, scoped, tag = 'internal scratch']
  #allocation2 [shape = 'f32[18,2,64]{2,1,0:T(2,128)}', space=vmem, size = 0x4800, scoped, tag = 'scratch operand']
  #allocation3 [shape = 'f32[34,2,16]{2,1,0:T(2,128)}', space=vmem, size = 0x8800, scoped, tag = 'scratch operand']
  #allocation4 [shape = 'f32[34,2,8]{2,1,0:T(2,128)}', space=vmem, size = 0x8800, scoped, tag = 'scratch operand']
  #allocation5 [shape = 'f32[1,1]{1,0:T(1,128)S(1)}', space=vmem, size = 0x200, scoped, tag = 'scoped memory for tpu_custom_call.1']
  #allocation6 [shape = 'f32[1,1]{1,0:T(1,128)S(1)}', space=vmem, size = 0x200, scoped, tag = 'scoped memory for tpu_custom_call.1']
  %s0 = inlined_call_operand.vmem [shape: f32[2,32], index: 0, kind: input, shape index: {}]
  %s1 = inlined_call_operand.hbm [shape: f32[32,1024], index: 1, kind: input, shape index: {}]
  %s2 = inlined_call_operand.vmem [shape: f32[1,1024], index: 2, kind: input, shape index: {}]
  %s3 = inlined_call_operand.vmem [shape: f32[32,128], index: 3, kind: input, shape index: {}]
  %s4 = inlined_call_operand.hbm [shape: f32[32,1024], index: 4, kind: input, shape index: {}]
  %s5 = inlined_call_operand.vmem [shape: f32[1,1024], index: 5, kind: input, shape index: {}]
  %s6 = inlined_call_operand.vmem [shape: f32[32,128], index: 6, kind: input, shape index: {}]
  %s7 = inlined_call_operand.vmem [shape: f32[192,16], index: 7, kind: input, shape index: {}]
  %s8 = inlined_call_operand.vmem [shape: f32[1,16], index: 8, kind: input, shape index: {}]
  %s9 = inlined_call_operand.vmem [shape: f32[1,16], index: 9, kind: input, shape index: {}]
  %s10 = inlined_call_operand.vmem [shape: f32[48,8], index: 10, kind: input, shape index: {}]
  %s11 = inlined_call_operand.vmem [shape: f32[1,8], index: 11, kind: input, shape index: {}]
  %s12 = inlined_call_operand.vmem [shape: f32[1,8], index: 12, kind: input, shape index: {}]
  %s13 = inlined_call_operand.vmem [shape: f32[24,1], index: 13, kind: input, shape index: {}]
  %s14 = inlined_call_operand.<no memory space> [shape: f32[1,1], index: 14, kind: input, shape index: {}]
  %s15 = inlined_call_operand.<no memory space> [shape: f32[1,1], index: 15, kind: input, shape index: {}]
  %s16 = inlined_call_operand.vmem [shape: f32[64,1], index: 16, kind: output, shape index: {}]
  %s17 = sld [smem:[#allocation0]]
  $region82: #{tpu_custom_call.1} parent=0
    _
  %s19 = ssub.s32 1, %s17
  %s20 = scalar_select 0, %s19, %s17
  %v21 = vstv %s14
  %22 = vst [vmem:[#allocation5] sm:$0x1] %v21
  %v23 = vstv %s15
  %24 = vst [vmem:[#allocation6] sm:$0x1] %v23
  $region1: #{tpu_custom_call.1} parent=0
    #allocation7 [shape = 'u8[131072]{0}', space=vmem, size = 0x20000, scoped, tag = 'input window, operand 1, single buffered']
    #allocation8 [shape = 's32[1]{0}', space=sflag, size = 0x4, scoped, tag = 'scoped memory for tpu_custom_call.1']
    #allocation9 [shape = 'u8[131072]{0}', space=vmem, size = 0x20000, scoped, tag = 'input window, operand 4, single buffered']
    #allocation10 [shape = 's32[1]{0}', space=sflag, size = 0x4, scoped, tag = 'scoped memory for tpu_custom_call.1']
    %25 = vsyncpa [#allocation8], 0
    %26 = vsyncpa [#allocation10], 0
    // Predicated region
    $region2: #{tpu_custom_call.1} parent=1 // pred_check
      _
    $region3: #{tpu_custom_call.1} parent=1 // pred_check_branch
      %28 = sbr.rel (0) target = $region5
    $region4: #{tpu_custom_call.1} parent=1 // pred_region
      _
    $region5: #{tpu_custom_call.1} parent=1 // pred_fallthru
      _
    // Predicated region
    $region6: #{tpu_custom_call.1} parent=1 // pred_check
      _
    $region7: #{tpu_custom_call.1} parent=1 // pred_check_branch
      %30 = sbr.rel (0) target = $region9
    $region8: #{tpu_custom_call.1} parent=1 // pred_region
      %32 = vsyncadd [#allocation8], 0
      %s33 = sshll.u32 %s1, 4
      %s34 = int_to_ptr.hbm [resolvable:$true] %s33
      %s35 = sshll.u32 [#allocation7], 4
      %s36 = int_to_ptr.vmem [resolvable:$true] %s35
      %41 = dma.hbm_to_vmem [thread:$0]  %s34, 4096, %s36, [#allocation8], 1024, 1024, 64
    $region9: #{tpu_custom_call.1} parent=1 // pred_fallthru
      _
    // Predicated region
    $region10: #{tpu_custom_call.1} parent=1 // pred_check
      _
    $region11: #{tpu_custom_call.1} parent=1 // pred_check_branch
      %43 = sbr.rel (0) target = $region13
    $region12: #{tpu_custom_call.1} parent=1 // pred_region
      _
    $region13: #{tpu_custom_call.1} parent=1 // pred_fallthru
      _
    // Predicated region
    $region14: #{tpu_custom_call.1} parent=1 // pred_check
      _
    $region15: #{tpu_custom_call.1} parent=1 // pred_check_branch
      %45 = sbr.rel (0) target = $region17
    $region16: #{tpu_custom_call.1} parent=1 // pred_region
      _
    $region17: #{tpu_custom_call.1} parent=1 // pred_fallthru
      _
    // Predicated region
    $region18: #{tpu_custom_call.1} parent=1 // pred_check
      _
    $region19: #{tpu_custom_call.1} parent=1 // pred_check_branch
      %47 = sbr.rel (0) target = $region21
    $region20: #{tpu_custom_call.1} parent=1 // pred_region
      %49 = vsyncadd [#allocation10], 0
      %s50 = sshll.u32 %s4, 4
      %s51 = int_to_ptr.hbm [resolvable:$true] %s50
      %s52 = sshll.u32 [#allocation9], 4
      %s53 = int_to_ptr.vmem [resolvable:$true] %s52
      %58 = dma.hbm_to_vmem [thread:$0]  %s51, 4096, %s53, [#allocation10], 1024, 1024, 64
    $region21: #{tpu_custom_call.1} parent=1 // pred_fallthru
      _
    // Predicated region
    $region22: #{tpu_custom_call.1} parent=1 // pred_check
      _
    $region23: #{tpu_custom_call.1} parent=1 // pred_check_branch
      %60 = sbr.rel (0) target = $region25
    $region24: #{tpu_custom_call.1} parent=1 // pred_region
      _
    $region25: #{tpu_custom_call.1} parent=1 // pred_fallthru
      _
    // Predicated region
    $region26: #{tpu_custom_call.1} parent=1 // pred_check
      _
    $region27: #{tpu_custom_call.1} parent=1 // pred_check_branch
      %62 = sbr.rel (0) target = $region29
    $region28: #{tpu_custom_call.1} parent=1 // pred_region
      _
    $region29: #{tpu_custom_call.1} parent=1 // pred_fallthru
      _
    // Predicated region
    $region30: #{tpu_custom_call.1} parent=1 // pred_check
      _
    $region31: #{tpu_custom_call.1} parent=1 // pred_check_branch
      %64 = sbr.rel (0) target = $region33
    $region32: #{tpu_custom_call.1} parent=1 // pred_region
      _
    $region33: #{tpu_custom_call.1} parent=1 // pred_fallthru
      _
    // Predicated region
    $region34: #{tpu_custom_call.1} parent=1 // pred_check
      _
    $region35: #{tpu_custom_call.1} parent=1 // pred_check_branch
      %66 = sbr.rel (0) target = $region37
    $region36: #{tpu_custom_call.1} parent=1 // pred_region
      _
    $region37: #{tpu_custom_call.1} parent=1 // pred_fallthru
      _
    // Predicated region
    $region38: #{tpu_custom_call.1} parent=1 // pred_check
      _
    $region39: #{tpu_custom_call.1} parent=1 // pred_check_branch
      %68 = sbr.rel (0) target = $region41
    $region40: #{tpu_custom_call.1} parent=1 // pred_region
      _
    $region41: #{tpu_custom_call.1} parent=1 // pred_fallthru
      _
    // Predicated region
    $region42: #{tpu_custom_call.1} parent=1 // pred_check
      _
    $region43: #{tpu_custom_call.1} parent=1 // pred_check_branch
      %70 = sbr.rel (0) target = $region45
    $region44: #{tpu_custom_call.1} parent=1 // pred_region
      _
    $region45: #{tpu_custom_call.1} parent=1 // pred_fallthru
      _
    // Predicated region
    $region46: #{tpu_custom_call.1} parent=1 // pred_check
      _
    $region47: #{tpu_custom_call.1} parent=1 // pred_check_branch
      %72 = sbr.rel (0) target = $region49
    $region48: #{tpu_custom_call.1} parent=1 // pred_region
      _
    $region49: #{tpu_custom_call.1} parent=1 // pred_fallthru
      _
    // Predicated region
    $region50: #{tpu_custom_call.1} parent=1 // pred_check
      _
    $region51: #{tpu_custom_call.1} parent=1 // pred_check_branch
      %74 = sbr.rel (0) target = $region53
    $region52: #{tpu_custom_call.1} parent=1 // pred_region
      _
    $region53: #{tpu_custom_call.1} parent=1 // pred_fallthru
      _
    // Predicated region
    $region54: #{tpu_custom_call.1} parent=1 // pred_check
      _
    $region55: #{tpu_custom_call.1} parent=1 // pred_check_branch
      %76 = sbr.rel (0) target = $region57
    $region56: #{tpu_custom_call.1} parent=1 // pred_region
      _
    $region57: #{tpu_custom_call.1} parent=1 // pred_fallthru
      _
    // Predicated region
    $region58: #{tpu_custom_call.1} parent=1 // pred_check
      _
    $region59: #{tpu_custom_call.1} parent=1 // pred_check_branch
      %78 = sbr.rel (0) target = $region61
    $region60: #{tpu_custom_call.1} parent=1 // pred_region
      _
    $region61: #{tpu_custom_call.1} parent=1 // pred_fallthru
      _
    // Predicated region
    $region62: #{tpu_custom_call.1} parent=1 // pred_check
      _
    $region63: #{tpu_custom_call.1} parent=1 // pred_check_branch
      %80 = sbr.rel (0) target = $region65
    $region64: #{tpu_custom_call.1} parent=1 // pred_region
      _
    $region65: #{tpu_custom_call.1} parent=1 // pred_fallthru
      _
    // Predicated region
    $region66: #{tpu_custom_call.1} parent=1 // pred_check
      _
    $region67: #{tpu_custom_call.1} parent=1 // pred_check_branch
      %82 = sbr.rel (0) target = $region69
    $region68: #{tpu_custom_call.1} parent=1 // pred_region
      %84 = dma.done [#allocation8], 4096
    $region69: #{tpu_custom_call.1} parent=1 // pred_fallthru
      _
    // Predicated region
    $region70: #{tpu_custom_call.1} parent=1 // pred_check
      _
    $region71: #{tpu_custom_call.1} parent=1 // pred_check_branch
      %86 = sbr.rel (0) target = $region73
    $region72: #{tpu_custom_call.1} parent=1 // pred_region
      %88 = dma.done [#allocation10], 4096
    $region73: #{tpu_custom_call.1} parent=1 // pred_fallthru
      _
    %v89 = vld [vmem:[%s0] sm:$0x3]
    %v90 = vld [vmem:[#allocation7] sm:$0xff]
    %v91 = vld [vmem:[#allocation7 + $0x8] sm:$0xff]
    %v92 = vld [vmem:[#allocation7 + $0x10] sm:$0xff]
    %v93 = vld [vmem:[#allocation7 + $0x18] sm:$0xff]
    %v94 = vld [vmem:[#allocation7 + $0x20] sm:$0xff]
    %v95 = vld [vmem:[#allocation7 + $0x28] sm:$0xff]
    %v96 = vld [vmem:[#allocation7 + $0x30] sm:$0xff]
    %v97 = vld [vmem:[#allocation7 + $0x38] sm:$0xff]
    %v98 = vld [vmem:[#allocation7 + $0x40] sm:$0xff]
    %v99 = vld [vmem:[#allocation7 + $0x48] sm:$0xff]
    %v100 = vld [vmem:[#allocation7 + $0x50] sm:$0xff]
    %v101 = vld [vmem:[#allocation7 + $0x58] sm:$0xff]
    %v102 = vld [vmem:[#allocation7 + $0x60] sm:$0xff]
    %v103 = vld [vmem:[#allocation7 + $0x68] sm:$0xff]
    %v104 = vld [vmem:[#allocation7 + $0x70] sm:$0xff]
    %v105 = vld [vmem:[#allocation7 + $0x78] sm:$0xff]
    %v106 = vld [vmem:[#allocation7 + $0x80] sm:$0xff]
    %v107 = vld [vmem:[#allocation7 + $0x88] sm:$0xff]
    %v108 = vld [vmem:[#allocation7 + $0x90] sm:$0xff]
    %v109 = vld [vmem:[#allocation7 + $0x98] sm:$0xff]
    %v110 = vld [vmem:[#allocation7 + $0xa0] sm:$0xff]
    %v111 = vld [vmem:[#allocation7 + $0xa8] sm:$0xff]
    %v112 = vld [vmem:[#allocation7 + $0xb0] sm:$0xff]
    %v113 = vld [vmem:[#allocation7 + $0xb8] sm:$0xff]
    %v114 = vld [vmem:[#allocation7 + $0xc0] sm:$0xff]
    %v115 = vld [vmem:[#allocation7 + $0xc8] sm:$0xff]
    %v116 = vld [vmem:[#allocation7 + $0xd0] sm:$0xff]
    %v117 = vld [vmem:[#allocation7 + $0xd8] sm:$0xff]
    %v118 = vld [vmem:[#allocation7 + $0xe0] sm:$0xff]
    %v119 = vld [vmem:[#allocation7 + $0xe8] sm:$0xff]
    %v120 = vld [vmem:[#allocation7 + $0xf0] sm:$0xff]
    %v121 = vld [vmem:[#allocation7 + $0xf8] sm:$0xff]
    %v122 = vld [vmem:[%s2] sm:$0xff]
    %v124 = vperm.slane %v122, 0
    %v125 = vperm.slane %v122, 1
    %v126 = vperm.slane %v122, 2
    %v127 = vperm.slane %v122, 3
    %v128 = vperm.slane %v122, 4
    %v129 = vperm.slane %v122, 5
    %v130 = vperm.slane %v122, 6
    %v131 = vperm.slane %v122, 7
    %vm140 = vcmask 261120
    %v142 = vsel %vm140, %v89, 0
    %144 = vmatpush.msra.mxu0 0.0
    %145 = vmatpush.msra.mxu0 0.0
    %146 = vmatpush.msra.mxu0 0.0
    %147 = vmatpush.msra.mxu0 0.0
    %148 = vmatpush.msra.mxu0 0.0
    %149 = vmatpush.msra.mxu0 0.0
    %150 = vmatpush.msra.mxu0 0.0
    %151 = vmatpush.msra.mxu0 0.0
    %152 = vmatpush.msra.mxu0 0.0
    %153 = vmatpush.msra.mxu0 0.0
    %154 = vmatpush.msra.mxu0 0.0
    %155 = vmatpush.msra.mxu0 0.0
    %156 = vmatpush.msra.mxu0 %v114
    %157 = vmatpush.msra.mxu0 %v106
    %158 = vmatpush.msra.mxu0 %v98
    %159 = vmatpush.msra.mxu0 %v90
    %160 = vmatmul.f32.gmra.mxu0 %v142
    %v161 = vpop.f32.mrf.mxu0
    %v162 = vadd.f32 %v124, %v161
    %163 = vdwg.mxu0
    %164 = vmatpush.msra.mxu0 0.0
    %165 = vmatpush.msra.mxu0 0.0
    %166 = vmatpush.msra.mxu0 0.0
    %167 = vmatpush.msra.mxu0 0.0
    %168 = vmatpush.msra.mxu0 0.0
    %169 = vmatpush.msra.mxu0 0.0
    %170 = vmatpush.msra.mxu0 0.0
    %171 = vmatpush.msra.mxu0 0.0
    %172 = vmatpush.msra.mxu0 0.0
    %173 = vmatpush.msra.mxu0 0.0
    %174 = vmatpush.msra.mxu0 0.0
    %175 = vmatpush.msra.mxu0 0.0
    %176 = vmatpush.msra.mxu0 %v115
    %177 = vmatpush.msra.mxu0 %v107
    %178 = vmatpush.msra.mxu0 %v99
    %179 = vmatpush.msra.mxu0 %v91
    %180 = vmatmul.f32.gmra.mxu0 %v142
    %v181 = vpop.f32.mrf.mxu0
    %v182 = vadd.f32 %v125, %v181
    %183 = vdwg.mxu0
    %184 = vmatpush.msra.mxu0 0.0
    %185 = vmatpush.msra.mxu0 0.0
    %186 = vmatpush.msra.mxu0 0.0
    %187 = vmatpush.msra.mxu0 0.0
    %188 = vmatpush.msra.mxu0 0.0
    %189 = vmatpush.msra.mxu0 0.0
    %190 = vmatpush.msra.mxu0 0.0
    %191 = vmatpush.msra.mxu0 0.0
    %192 = vmatpush.msra.mxu0 0.0
    %193 = vmatpush.msra.mxu0 0.0
    %194 = vmatpush.msra.mxu0 0.0
    %195 = vmatpush.msra.mxu0 0.0
    %196 = vmatpush.msra.mxu0 %v116
    %197 = vmatpush.msra.mxu0 %v108
    %198 = vmatpush.msra.mxu0 %v100
    %199 = vmatpush.msra.mxu0 %v92
    %200 = vmatmul.f32.gmra.mxu0 %v142
    %v201 = vpop.f32.mrf.mxu0
    %v202 = vadd.f32 %v126, %v201
    %203 = vdwg.mxu0
    %204 = vmatpush.msra.mxu0 0.0
    %205 = vmatpush.msra.mxu0 0.0
    %206 = vmatpush.msra.mxu0 0.0
    %207 = vmatpush.msra.mxu0 0.0
    %208 = vmatpush.msra.mxu0 0.0
    %209 = vmatpush.msra.mxu0 0.0
    %210 = vmatpush.msra.mxu0 0.0
    %211 = vmatpush.msra.mxu0 0.0
    %212 = vmatpush.msra.mxu0 0.0
    %213 = vmatpush.msra.mxu0 0.0
    %214 = vmatpush.msra.mxu0 0.0
    %215 = vmatpush.msra.mxu0 0.0
    %216 = vmatpush.msra.mxu0 %v117
    %217 = vmatpush.msra.mxu0 %v109
    %218 = vmatpush.msra.mxu0 %v101
    %219 = vmatpush.msra.mxu0 %v93
    %220 = vmatmul.f32.gmra.mxu0 %v142
    %v221 = vpop.f32.mrf.mxu0
    %v222 = vadd.f32 %v127, %v221
    %223 = vdwg.mxu0
    %224 = vmatpush.msra.mxu0 0.0
    %225 = vmatpush.msra.mxu0 0.0
    %226 = vmatpush.msra.mxu0 0.0
    %227 = vmatpush.msra.mxu0 0.0
    %228 = vmatpush.msra.mxu0 0.0
    %229 = vmatpush.msra.mxu0 0.0
    %230 = vmatpush.msra.mxu0 0.0
    %231 = vmatpush.msra.mxu0 0.0
    %232 = vmatpush.msra.mxu0 0.0
    %233 = vmatpush.msra.mxu0 0.0
    %234 = vmatpush.msra.mxu0 0.0
    %235 = vmatpush.msra.mxu0 0.0
    %236 = vmatpush.msra.mxu0 %v118
    %237 = vmatpush.msra.mxu0 %v110
    %238 = vmatpush.msra.mxu0 %v102
    %239 = vmatpush.msra.mxu0 %v94
    %240 = vmatmul.f32.gmra.mxu0 %v142
    %v241 = vpop.f32.mrf.mxu0
    %v242 = vadd.f32 %v128, %v241
    %243 = vdwg.mxu0
    %244 = vmatpush.msra.mxu0 0.0
    %245 = vmatpush.msra.mxu0 0.0
    %246 = vmatpush.msra.mxu0 0.0
    %247 = vmatpush.msra.mxu0 0.0
    %248 = vmatpush.msra.mxu0 0.0
    %249 = vmatpush.msra.mxu0 0.0
    %250 = vmatpush.msra.mxu0 0.0
    %251 = vmatpush.msra.mxu0 0.0
    %252 = vmatpush.msra.mxu0 0.0
    %253 = vmatpush.msra.mxu0 0.0
    %254 = vmatpush.msra.mxu0 0.0
    %255 = vmatpush.msra.mxu0 0.0
    %256 = vmatpush.msra.mxu0 %v119
    %257 = vmatpush.msra.mxu0 %v111
    %258 = vmatpush.msra.mxu0 %v103
    %259 = vmatpush.msra.mxu0 %v95
    %260 = vmatmul.f32.gmra.mxu0 %v142
    %v261 = vpop.f32.mrf.mxu0
    %v262 = vadd.f32 %v129, %v261
    %263 = vdwg.mxu0
    %264 = vmatpush.msra.mxu0 0.0
    %265 = vmatpush.msra.mxu0 0.0
    %266 = vmatpush.msra.mxu0 0.0
    %267 = vmatpush.msra.mxu0 0.0
    %268 = vmatpush.msra.mxu0 0.0
    %269 = vmatpush.msra.mxu0 0.0
    %270 = vmatpush.msra.mxu0 0.0
    %271 = vmatpush.msra.mxu0 0.0
    %272 = vmatpush.msra.mxu0 0.0
    %273 = vmatpush.msra.mxu0 0.0
    %274 = vmatpush.msra.mxu0 0.0
    %275 = vmatpush.msra.mxu0 0.0
    %276 = vmatpush.msra.mxu0 %v120
    %277 = vmatpush.msra.mxu0 %v112
    %278 = vmatpush.msra.mxu0 %v104
    %279 = vmatpush.msra.mxu0 %v96
    %280 = vmatmul.f32.gmra.mxu0 %v142
    %v281 = vpop.f32.mrf.mxu0
    %v282 = vadd.f32 %v130, %v281
    %283 = vdwg.mxu0
    %284 = vmatpush.msra.mxu0 0.0
    %285 = vmatpush.msra.mxu0 0.0
    %286 = vmatpush.msra.mxu0 0.0
    %287 = vmatpush.msra.mxu0 0.0
    %288 = vmatpush.msra.mxu0 0.0
    %289 = vmatpush.msra.mxu0 0.0
    %290 = vmatpush.msra.mxu0 0.0
    %291 = vmatpush.msra.mxu0 0.0
    %292 = vmatpush.msra.mxu0 0.0
    %293 = vmatpush.msra.mxu0 0.0
    %294 = vmatpush.msra.mxu0 0.0
    %295 = vmatpush.msra.mxu0 0.0
    %296 = vmatpush.msra.mxu0 %v121
    %297 = vmatpush.msra.mxu0 %v113
    %298 = vmatpush.msra.mxu0 %v105
    %299 = vmatpush.msra.mxu0 %v97
    %300 = vmatmul.f32.gmra.mxu0 %v142
    %v301 = vpop.f32.mrf.mxu0
    %v302 = vadd.f32 %v131, %v301
    %303 = vdwg.mxu0
    %v304 = vld [vmem:[#allocation9] sm:$0xff]
    %v305 = vld [vmem:[#allocation9 + $0x8] sm:$0xff]
    %v306 = vld [vmem:[#allocation9 + $0x10] sm:$0xff]
    %v307 = vld [vmem:[#allocation9 + $0x18] sm:$0xff]
    %v308 = vld [vmem:[#allocation9 + $0x20] sm:$0xff]
    %v309 = vld [vmem:[#allocation9 + $0x28] sm:$0xff]
    %v310 = vld [vmem:[#allocation9 + $0x30] sm:$0xff]
    %v311 = vld [vmem:[#allocation9 + $0x38] sm:$0xff]
    %v312 = vld [vmem:[#allocation9 + $0x40] sm:$0xff]
    %v313 = vld [vmem:[#allocation9 + $0x48] sm:$0xff]
    %v314 = vld [vmem:[#allocation9 + $0x50] sm:$0xff]
    %v315 = vld [vmem:[#allocation9 + $0x58] sm:$0xff]
    %v316 = vld [vmem:[#allocation9 + $0x60] sm:$0xff]
    %v317 = vld [vmem:[#allocation9 + $0x68] sm:$0xff]
    %v318 = vld [vmem:[#allocation9 + $0x70] sm:$0xff]
    %v319 = vld [vmem:[#allocation9 + $0x78] sm:$0xff]
    %v320 = vld [vmem:[#allocation9 + $0x80] sm:$0xff]
    %v321 = vld [vmem:[#allocation9 + $0x88] sm:$0xff]
    %v322 = vld [vmem:[#allocation9 + $0x90] sm:$0xff]
    %v323 = vld [vmem:[#allocation9 + $0x98] sm:$0xff]
    %v324 = vld [vmem:[#allocation9 + $0xa0] sm:$0xff]
    %v325 = vld [vmem:[#allocation9 + $0xa8] sm:$0xff]
    %v326 = vld [vmem:[#allocation9 + $0xb0] sm:$0xff]
    %v327 = vld [vmem:[#allocation9 + $0xb8] sm:$0xff]
    %v328 = vld [vmem:[#allocation9 + $0xc0] sm:$0xff]
    %v329 = vld [vmem:[#allocation9 + $0xc8] sm:$0xff]
    %v330 = vld [vmem:[#allocation9 + $0xd0] sm:$0xff]
    %v331 = vld [vmem:[#allocation9 + $0xd8] sm:$0xff]
    %v332 = vld [vmem:[#allocation9 + $0xe0] sm:$0xff]
    %v333 = vld [vmem:[#allocation9 + $0xe8] sm:$0xff]
    %v334 = vld [vmem:[#allocation9 + $0xf0] sm:$0xff]
    %v335 = vld [vmem:[#allocation9 + $0xf8] sm:$0xff]
    %v336 = vld [vmem:[%s5] sm:$0xff]
    %v338 = vperm.slane %v336, 0
    %v339 = vperm.slane %v336, 1
    %v340 = vperm.slane %v336, 2
    %v341 = vperm.slane %v336, 3
    %v342 = vperm.slane %v336, 4
    %v343 = vperm.slane %v336, 5
    %v344 = vperm.slane %v336, 6
    %v345 = vperm.slane %v336, 7
    %354 = vmatpush.msra.mxu0 0.0
    %355 = vmatpush.msra.mxu0 0.0
    %356 = vmatpush.msra.mxu0 0.0
    %357 = vmatpush.msra.mxu0 0.0
    %358 = vmatpush.msra.mxu0 0.0
    %359 = vmatpush.msra.mxu0 0.0
    %360 = vmatpush.msra.mxu0 0.0
    %361 = vmatpush.msra.mxu0 0.0
    %362 = vmatpush.msra.mxu0 0.0
    %363 = vmatpush.msra.mxu0 0.0
    %364 = vmatpush.msra.mxu0 0.0
    %365 = vmatpush.msra.mxu0 0.0
    %366 = vmatpush.msra.mxu0 %v328
    %367 = vmatpush.msra.mxu0 %v320
    %368 = vmatpush.msra.mxu0 %v312
    %369 = vmatpush.msra.mxu0 %v304
    %370 = vmatmul.f32.gmra.mxu0 %v142
    %v371 = vpop.f32.mrf.mxu0
    %v372 = vadd.f32 %v338, %v371
    %373 = vdwg.mxu0
    %374 = vmatpush.msra.mxu0 0.0
    %375 = vmatpush.msra.mxu0 0.0
    %376 = vmatpush.msra.mxu0 0.0
    %377 = vmatpush.msra.mxu0 0.0
    %378 = vmatpush.msra.mxu0 0.0
    %379 = vmatpush.msra.mxu0 0.0
    %380 = vmatpush.msra.mxu0 0.0
    %381 = vmatpush.msra.mxu0 0.0
    %382 = vmatpush.msra.mxu0 0.0
    %383 = vmatpush.msra.mxu0 0.0
    %384 = vmatpush.msra.mxu0 0.0
    %385 = vmatpush.msra.mxu0 0.0
    %386 = vmatpush.msra.mxu0 %v329
    %387 = vmatpush.msra.mxu0 %v321
    %388 = vmatpush.msra.mxu0 %v313
    %389 = vmatpush.msra.mxu0 %v305
    %390 = vmatmul.f32.gmra.mxu0 %v142
    %v391 = vpop.f32.mrf.mxu0
    %v392 = vadd.f32 %v339, %v391
    %393 = vdwg.mxu0
    %394 = vmatpush.msra.mxu0 0.0
    %395 = vmatpush.msra.mxu0 0.0
    %396 = vmatpush.msra.mxu0 0.0
    %397 = vmatpush.msra.mxu0 0.0
    %398 = vmatpush.msra.mxu0 0.0
    %399 = vmatpush.msra.mxu0 0.0
    %400 = vmatpush.msra.mxu0 0.0
    %401 = vmatpush.msra.mxu0 0.0
    %402 = vmatpush.msra.mxu0 0.0
    %403 = vmatpush.msra.mxu0 0.0
    %404 = vmatpush.msra.mxu0 0.0
    %405 = vmatpush.msra.mxu0 0.0
    %406 = vmatpush.msra.mxu0 %v330
    %407 = vmatpush.msra.mxu0 %v322
    %408 = vmatpush.msra.mxu0 %v314
    %409 = vmatpush.msra.mxu0 %v306
    %410 = vmatmul.f32.gmra.mxu0 %v142
    %v411 = vpop.f32.mrf.mxu0
    %v412 = vadd.f32 %v340, %v411
    %413 = vdwg.mxu0
    %414 = vmatpush.msra.mxu0 0.0
    %415 = vmatpush.msra.mxu0 0.0
    %416 = vmatpush.msra.mxu0 0.0
    %417 = vmatpush.msra.mxu0 0.0
    %418 = vmatpush.msra.mxu0 0.0
    %419 = vmatpush.msra.mxu0 0.0
    %420 = vmatpush.msra.mxu0 0.0
    %421 = vmatpush.msra.mxu0 0.0
    %422 = vmatpush.msra.mxu0 0.0
    %423 = vmatpush.msra.mxu0 0.0
    %424 = vmatpush.msra.mxu0 0.0
    %425 = vmatpush.msra.mxu0 0.0
    %426 = vmatpush.msra.mxu0 %v331
    %427 = vmatpush.msra.mxu0 %v323
    %428 = vmatpush.msra.mxu0 %v315
    %429 = vmatpush.msra.mxu0 %v307
    %430 = vmatmul.f32.gmra.mxu0 %v142
    %v431 = vpop.f32.mrf.mxu0
    %v432 = vadd.f32 %v341, %v431
    %433 = vdwg.mxu0
    %434 = vmatpush.msra.mxu0 0.0
    %435 = vmatpush.msra.mxu0 0.0
    %436 = vmatpush.msra.mxu0 0.0
    %437 = vmatpush.msra.mxu0 0.0
    %438 = vmatpush.msra.mxu0 0.0
    %439 = vmatpush.msra.mxu0 0.0
    %440 = vmatpush.msra.mxu0 0.0
    %441 = vmatpush.msra.mxu0 0.0
    %442 = vmatpush.msra.mxu0 0.0
    %443 = vmatpush.msra.mxu0 0.0
    %444 = vmatpush.msra.mxu0 0.0
    %445 = vmatpush.msra.mxu0 0.0
    %446 = vmatpush.msra.mxu0 %v332
    %447 = vmatpush.msra.mxu0 %v324
    %448 = vmatpush.msra.mxu0 %v316
    %449 = vmatpush.msra.mxu0 %v308
    %450 = vmatmul.f32.gmra.mxu0 %v142
    %v451 = vpop.f32.mrf.mxu0
    %v452 = vadd.f32 %v342, %v451
    %453 = vdwg.mxu0
    %454 = vmatpush.msra.mxu0 0.0
    %455 = vmatpush.msra.mxu0 0.0
    %456 = vmatpush.msra.mxu0 0.0
    %457 = vmatpush.msra.mxu0 0.0
    %458 = vmatpush.msra.mxu0 0.0
    %459 = vmatpush.msra.mxu0 0.0
    %460 = vmatpush.msra.mxu0 0.0
    %461 = vmatpush.msra.mxu0 0.0
    %462 = vmatpush.msra.mxu0 0.0
    %463 = vmatpush.msra.mxu0 0.0
    %464 = vmatpush.msra.mxu0 0.0
    %465 = vmatpush.msra.mxu0 0.0
    %466 = vmatpush.msra.mxu0 %v333
    %467 = vmatpush.msra.mxu0 %v325
    %468 = vmatpush.msra.mxu0 %v317
    %469 = vmatpush.msra.mxu0 %v309
    %470 = vmatmul.f32.gmra.mxu0 %v142
    %v471 = vpop.f32.mrf.mxu0
    %v472 = vadd.f32 %v343, %v471
    %473 = vdwg.mxu0
    %474 = vmatpush.msra.mxu0 0.0
    %475 = vmatpush.msra.mxu0 0.0
    %476 = vmatpush.msra.mxu0 0.0
    %477 = vmatpush.msra.mxu0 0.0
    %478 = vmatpush.msra.mxu0 0.0
    %479 = vmatpush.msra.mxu0 0.0
    %480 = vmatpush.msra.mxu0 0.0
    %481 = vmatpush.msra.mxu0 0.0
    %482 = vmatpush.msra.mxu0 0.0
    %483 = vmatpush.msra.mxu0 0.0
    %484 = vmatpush.msra.mxu0 0.0
    %485 = vmatpush.msra.mxu0 0.0
    %486 = vmatpush.msra.mxu0 %v334
    %487 = vmatpush.msra.mxu0 %v326
    %488 = vmatpush.msra.mxu0 %v318
    %489 = vmatpush.msra.mxu0 %v310
    %490 = vmatmul.f32.gmra.mxu0 %v142
    %v491 = vpop.f32.mrf.mxu0
    %v492 = vadd.f32 %v344, %v491
    %493 = vdwg.mxu0
    %494 = vmatpush.msra.mxu0 0.0
    %495 = vmatpush.msra.mxu0 0.0
    %496 = vmatpush.msra.mxu0 0.0
    %497 = vmatpush.msra.mxu0 0.0
    %498 = vmatpush.msra.mxu0 0.0
    %499 = vmatpush.msra.mxu0 0.0
    %500 = vmatpush.msra.mxu0 0.0
    %501 = vmatpush.msra.mxu0 0.0
    %502 = vmatpush.msra.mxu0 0.0
    %503 = vmatpush.msra.mxu0 0.0
    %504 = vmatpush.msra.mxu0 0.0
    %505 = vmatpush.msra.mxu0 0.0
    %506 = vmatpush.msra.mxu0 %v335
    %507 = vmatpush.msra.mxu0 %v327
    %508 = vmatpush.msra.mxu0 %v319
    %509 = vmatpush.msra.mxu0 %v311
    %510 = vmatmul.f32.gmra.mxu0 %v142
    %v511 = vpop.f32.mrf.mxu0
    %v512 = vadd.f32 %v345, %v511
    %513 = vdwg.mxu0
    %v514 = vld [vmem:[%s3] sm:$0xff]
    %v515 = vld [vmem:[%s3 + $0x8] sm:$0xff]
    %v516 = vld [vmem:[%s3 + $0x10] sm:$0xff]
    %v517 = vld [vmem:[%s3 + $0x18] sm:$0xff]
    %v519 = vsel %vm140, 0.0, 0
    %521 = vmatpush.msra.mxu0 0.0
    %522 = vmatpush.msra.mxu0 0.0
    %523 = vmatpush.msra.mxu0 0.0
    %524 = vmatpush.msra.mxu0 0.0
    %525 = vmatpush.msra.mxu0 0.0
    %526 = vmatpush.msra.mxu0 0.0
    %527 = vmatpush.msra.mxu0 0.0
    %528 = vmatpush.msra.mxu0 0.0
    %529 = vmatpush.msra.mxu0 0.0
    %530 = vmatpush.msra.mxu0 0.0
    %531 = vmatpush.msra.mxu0 0.0
    %532 = vmatpush.msra.mxu0 0.0
    %533 = vmatpush.msra.mxu0 %v517
    %534 = vmatpush.msra.mxu0 %v516
    %535 = vmatpush.msra.mxu0 %v515
    %536 = vmatpush.msra.mxu0 %v514
    %537 = vmatmul.f32.gmra.mxu0 %v519
    %v538 = vpop.f32.mrf.mxu0
    %v539 = vadd.f32 0.0, %v538
    %540 = vdwg.mxu0
    %v541 = vadd.f32 %v162, %v539
    %v542 = vxor.u32 %v541, 2147483648
    %v543 = vmul.f32 %v542, 1.442695
    %v544 = vpow.pop %v543
    %v545 = vadd.f32 %v544, 1.0
    %v546 = vrcp.pop %v545
    %v547 = vmul.f32 %v545, %v546
    %v548 = vsub.f32 1.0, %v547
    %v549 = vmul.f32 %v546, %v548
    %v550 = vadd.f32 %v546, %v549
    %vm551 = vweird.f32 %v545
    %vm552 = vweird.f32 %v546
    %vm553 = vmor %vm551, %vm552
    %v554 = vsel %vm553, %v546, %v550
    %v555 = vand.u32 2147483647, %v545
    %vm556 = vcmp.eq.f32.partialorder %v555, 8.507059e+37
    %v557 = vand.u32 %v545, 2147483648
    %v558 = vor.u32 1.1754944e-38, %v557
    %v559 = vsel %vm556, %v558, %v554
    %v560 = vmul.f32 1.0, %v559
    %v561 = vtanh.pop %v541
    %v562 = vmul.f32 %v560, 0.0
    %564 = vrot.lane.b32.xlu0 %v561, 64
    %v565 = vpop.permute.xlu0 %564
    %v567 = vmul.f32 %v560, %v565
    %569 = vrot.lane.b32.xlu0 %v567, 32
    %v570 = vpop.permute.xlu0 %569
    %v572 = vadd.f32 %v562, %v570
    %v573 = vtanh.pop %v572
    %575 = vrot.lane.b32.xlu0 %v573, 64
    %v576 = vpop.permute.xlu0 %575
    %v578 = vmul.f32 %v560, %v576
    %580 = vrot.lane.b32.xlu0 %v578, 32
    %v581 = vpop.permute.xlu0 %580
    %v582 = vsel %vm140, %v581, 0
    %584 = vmatpush.msra.mxu0 0.0
    %585 = vmatpush.msra.mxu0 0.0
    %586 = vmatpush.msra.mxu0 0.0
    %587 = vmatpush.msra.mxu0 0.0
    %588 = vmatpush.msra.mxu0 0.0
    %589 = vmatpush.msra.mxu0 0.0
    %590 = vmatpush.msra.mxu0 0.0
    %591 = vmatpush.msra.mxu0 0.0
    %592 = vmatpush.msra.mxu0 0.0
    %593 = vmatpush.msra.mxu0 0.0
    %594 = vmatpush.msra.mxu0 0.0
    %595 = vmatpush.msra.mxu0 0.0
    %596 = vmatpush.msra.mxu0 %v517
    %597 = vmatpush.msra.mxu0 %v516
    %598 = vmatpush.msra.mxu0 %v515
    %599 = vmatpush.msra.mxu0 %v514
    %600 = vmatmul.f32.gmra.mxu0 %v582
    %v601 = vpop.f32.mrf.mxu0
    %v602 = vadd.f32 0.0, %v601
    %603 = vdwg.mxu0
    %v604 = vadd.f32 %v182, %v602
    %v605 = vxor.u32 %v604, 2147483648
    %v606 = vmul.f32 %v605, 1.442695
    %v607 = vpow.pop %v606
    %v608 = vadd.f32 %v607, 1.0
    %v609 = vrcp.pop %v608
    %v610 = vmul.f32 %v608, %v609
    %v611 = vsub.f32 1.0, %v610
    %v612 = vmul.f32 %v609, %v611
    %v613 = vadd.f32 %v609, %v612
    %vm614 = vweird.f32 %v608
    %vm615 = vweird.f32 %v609
    %vm616 = vmor %vm614, %vm615
    %v617 = vsel %vm616, %v609, %v613
    %v618 = vand.u32 2147483647, %v608
    %vm619 = vcmp.eq.f32.partialorder %v618, 8.507059e+37
    %v620 = vand.u32 %v608, 2147483648
    %v621 = vor.u32 1.1754944e-38, %v620
    %v622 = vsel %vm619, %v621, %v617
    %v623 = vmul.f32 1.0, %v622
    %v624 = vtanh.pop %v604
    %v625 = vmul.f32 %v623, %v572
    %627 = vrot.lane.b32.xlu0 %v624, 64
    %v628 = vpop.permute.xlu0 %627
    %v630 = vmul.f32 %v623, %v628
    %632 = vrot.lane.b32.xlu0 %v630, 32
    %v633 = vpop.permute.xlu0 %632
    %v635 = vadd.f32 %v625, %v633
    %v636 = vtanh.pop %v635
    %638 = vrot.lane.b32.xlu0 %v636, 64
    %v639 = vpop.permute.xlu0 %638
    %v641 = vmul.f32 %v623, %v639
    %643 = vrot.lane.b32.xlu0 %v641, 32
    %v644 = vpop.permute.xlu0 %643
    %v645 = vsel %vm140, %v644, 0
    %647 = vmatpush.msra.mxu0 0.0
    %648 = vmatpush.msra.mxu0 0.0
    %649 = vmatpush.msra.mxu0 0.0
    %650 = vmatpush.msra.mxu0 0.0
    %651 = vmatpush.msra.mxu0 0.0
    %652 = vmatpush.msra.mxu0 0.0
    %653 = vmatpush.msra.mxu0 0.0
    %654 = vmatpush.msra.mxu0 0.0
    %655 = vmatpush.msra.mxu0 0.0
    %656 = vmatpush.msra.mxu0 0.0
    %657 = vmatpush.msra.mxu0 0.0
    %658 = vmatpush.msra.mxu0 0.0
    %659 = vmatpush.msra.mxu0 %v517
    %660 = vmatpush.msra.mxu0 %v516
    %661 = vmatpush.msra.mxu0 %v515
    %662 = vmatpush.msra.mxu0 %v514
    %663 = vmatmul.f32.gmra.mxu0 %v645
    %v664 = vpop.f32.mrf.mxu0
    %v665 = vadd.f32 0.0, %v664
    %666 = vdwg.mxu0
    %v667 = vadd.f32 %v202, %v665
    %v668 = vxor.u32 %v667, 2147483648
    %v669 = vmul.f32 %v668, 1.442695
    %v670 = vpow.pop %v669
    %v671 = vadd.f32 %v670, 1.0
    %v672 = vrcp.pop %v671
    %v673 = vmul.f32 %v671, %v672
    %v674 = vsub.f32 1.0, %v673
    %v675 = vmul.f32 %v672, %v674
    %v676 = vadd.f32 %v672, %v675
    %vm677 = vweird.f32 %v671
    %vm678 = vweird.f32 %v672
    %vm679 = vmor %vm677, %vm678
    %v680 = vsel %vm679, %v672, %v676
    %v681 = vand.u32 2147483647, %v671
    %vm682 = vcmp.eq.f32.partialorder %v681, 8.507059e+37
    %v683 = vand.u32 %v671, 2147483648
    %v684 = vor.u32 1.1754944e-38, %v683
    %v685 = vsel %vm682, %v684, %v680
    %v686 = vmul.f32 1.0, %v685
    %v687 = vtanh.pop %v667
    %v688 = vmul.f32 %v686, %v635
    %690 = vrot.lane.b32.xlu0 %v687, 64
    %v691 = vpop.permute.xlu0 %690
    %v693 = vmul.f32 %v686, %v691
    %695 = vrot.lane.b32.xlu0 %v693, 32
    %v696 = vpop.permute.xlu0 %695
    %v698 = vadd.f32 %v688, %v696
    %v699 = vtanh.pop %v698
    %701 = vrot.lane.b32.xlu0 %v699, 64
    %v702 = vpop.permute.xlu0 %701
    %v704 = vmul.f32 %v686, %v702
    %706 = vrot.lane.b32.xlu0 %v704, 32
    %v707 = vpop.permute.xlu0 %706
    %v708 = vsel %vm140, %v707, 0
    %710 = vmatpush.msra.mxu0 0.0
    %711 = vmatpush.msra.mxu0 0.0
    %712 = vmatpush.msra.mxu0 0.0
    %713 = vmatpush.msra.mxu0 0.0
    %714 = vmatpush.msra.mxu0 0.0
    %715 = vmatpush.msra.mxu0 0.0
    %716 = vmatpush.msra.mxu0 0.0
    %717 = vmatpush.msra.mxu0 0.0
    %718 = vmatpush.msra.mxu0 0.0
    %719 = vmatpush.msra.mxu0 0.0
    %720 = vmatpush.msra.mxu0 0.0
    %721 = vmatpush.msra.mxu0 0.0
    %722 = vmatpush.msra.mxu0 %v517
    %723 = vmatpush.msra.mxu0 %v516
    %724 = vmatpush.msra.mxu0 %v515
    %725 = vmatpush.msra.mxu0 %v514
    %726 = vmatmul.f32.gmra.mxu0 %v708
    %v727 = vpop.f32.mrf.mxu0
    %v728 = vadd.f32 0.0, %v727
    %729 = vdwg.mxu0
    %v730 = vadd.f32 %v222, %v728
    %v731 = vxor.u32 %v730, 2147483648
    %v732 = vmul.f32 %v731, 1.442695
    %v733 = vpow.pop %v732
    %v734 = vadd.f32 %v733, 1.0
    %v735 = vrcp.pop %v734
    %v736 = vmul.f32 %v734, %v735
    %v737 = vsub.f32 1.0, %v736
    %v738 = vmul.f32 %v735, %v737
    %v739 = vadd.f32 %v735, %v738
    %vm740 = vweird.f32 %v734
    %vm741 = vweird.f32 %v735
    %vm742 = vmor %vm740, %vm741
    %v743 = vsel %vm742, %v735, %v739
    %v744 = vand.u32 2147483647, %v734
    %vm745 = vcmp.eq.f32.partialorder %v744, 8.507059e+37
    %v746 = vand.u32 %v734, 2147483648
    %v747 = vor.u32 1.1754944e-38, %v746
    %v748 = vsel %vm745, %v747, %v743
    %v749 = vmul.f32 1.0, %v748
    %v750 = vtanh.pop %v730
    %v751 = vmul.f32 %v749, %v698
    %753 = vrot.lane.b32.xlu0 %v750, 64
    %v754 = vpop.permute.xlu0 %753
    %v756 = vmul.f32 %v749, %v754
    %758 = vrot.lane.b32.xlu0 %v756, 32
    %v759 = vpop.permute.xlu0 %758
    %v761 = vadd.f32 %v751, %v759
    %v762 = vtanh.pop %v761
    %764 = vrot.lane.b32.xlu0 %v762, 64
    %v765 = vpop.permute.xlu0 %764
    %v767 = vmul.f32 %v749, %v765
    %769 = vrot.lane.b32.xlu0 %v767, 32
    %v770 = vpop.permute.xlu0 %769
    %v771 = vsel %vm140, %v770, 0
    %773 = vmatpush.msra.mxu0 0.0
    %774 = vmatpush.msra.mxu0 0.0
    %775 = vmatpush.msra.mxu0 0.0
    %776 = vmatpush.msra.mxu0 0.0
    %777 = vmatpush.msra.mxu0 0.0
    %778 = vmatpush.msra.mxu0 0.0
    %779 = vmatpush.msra.mxu0 0.0
    %780 = vmatpush.msra.mxu0 0.0
    %781 = vmatpush.msra.mxu0 0.0
    %782 = vmatpush.msra.mxu0 0.0
    %783 = vmatpush.msra.mxu0 0.0
    %784 = vmatpush.msra.mxu0 0.0
    %785 = vmatpush.msra.mxu0 %v517
    %786 = vmatpush.msra.mxu0 %v516
    %787 = vmatpush.msra.mxu0 %v515
    %788 = vmatpush.msra.mxu0 %v514
    %789 = vmatmul.f32.gmra.mxu0 %v771
    %v790 = vpop.f32.mrf.mxu0
    %v791 = vadd.f32 0.0, %v790
    %792 = vdwg.mxu0
    %v793 = vadd.f32 %v242, %v791
    %v794 = vxor.u32 %v793, 2147483648
    %v795 = vmul.f32 %v794, 1.442695
    %v796 = vpow.pop %v795
    %v797 = vadd.f32 %v796, 1.0
    %v798 = vrcp.pop %v797
    %v799 = vmul.f32 %v797, %v798
    %v800 = vsub.f32 1.0, %v799
    %v801 = vmul.f32 %v798, %v800
    %v802 = vadd.f32 %v798, %v801
    %vm803 = vweird.f32 %v797
    %vm804 = vweird.f32 %v798
    %vm805 = vmor %vm803, %vm804
    %v806 = vsel %vm805, %v798, %v802
    %v807 = vand.u32 2147483647, %v797
    %vm808 = vcmp.eq.f32.partialorder %v807, 8.507059e+37
    %v809 = vand.u32 %v797, 2147483648
    %v810 = vor.u32 1.1754944e-38, %v809
    %v811 = vsel %vm808, %v810, %v806
    %v812 = vmul.f32 1.0, %v811
    %v813 = vtanh.pop %v793
    %v814 = vmul.f32 %v812, %v761
    %816 = vrot.lane.b32.xlu0 %v813, 64
    %v817 = vpop.permute.xlu0 %816
    %v819 = vmul.f32 %v812, %v817
    %821 = vrot.lane.b32.xlu0 %v819, 32
    %v822 = vpop.permute.xlu0 %821
    %v824 = vadd.f32 %v814, %v822
    %v825 = vtanh.pop %v824
    %827 = vrot.lane.b32.xlu0 %v825, 64
    %v828 = vpop.permute.xlu0 %827
    %v830 = vmul.f32 %v812, %v828
    %832 = vrot.lane.b32.xlu0 %v830, 32
    %v833 = vpop.permute.xlu0 %832
    %v834 = vsel %vm140, %v833, 0
    %836 = vmatpush.msra.mxu0 0.0
    %837 = vmatpush.msra.mxu0 0.0
    %838 = vmatpush.msra.mxu0 0.0
    %839 = vmatpush.msra.mxu0 0.0
    %840 = vmatpush.msra.mxu0 0.0
    %841 = vmatpush.msra.mxu0 0.0
    %842 = vmatpush.msra.mxu0 0.0
    %843 = vmatpush.msra.mxu0 0.0
    %844 = vmatpush.msra.mxu0 0.0
    %845 = vmatpush.msra.mxu0 0.0
    %846 = vmatpush.msra.mxu0 0.0
    %847 = vmatpush.msra.mxu0 0.0
    %848 = vmatpush.msra.mxu0 %v517
    %849 = vmatpush.msra.mxu0 %v516
    %850 = vmatpush.msra.mxu0 %v515
    %851 = vmatpush.msra.mxu0 %v514
    %852 = vmatmul.f32.gmra.mxu0 %v834
    %v853 = vpop.f32.mrf.mxu0
    %v854 = vadd.f32 0.0, %v853
    %855 = vdwg.mxu0
    %v856 = vadd.f32 %v262, %v854
    %v857 = vxor.u32 %v856, 2147483648
    %v858 = vmul.f32 %v857, 1.442695
    %v859 = vpow.pop %v858
    %v860 = vadd.f32 %v859, 1.0
    %v861 = vrcp.pop %v860
    %v862 = vmul.f32 %v860, %v861
    %v863 = vsub.f32 1.0, %v862
    %v864 = vmul.f32 %v861, %v863
    %v865 = vadd.f32 %v861, %v864
    %vm866 = vweird.f32 %v860
    %vm867 = vweird.f32 %v861
    %vm868 = vmor %vm866, %vm867
    %v869 = vsel %vm868, %v861, %v865
    %v870 = vand.u32 2147483647, %v860
    %vm871 = vcmp.eq.f32.partialorder %v870, 8.507059e+37
    %v872 = vand.u32 %v860, 2147483648
    %v873 = vor.u32 1.1754944e-38, %v872
    %v874 = vsel %vm871, %v873, %v869
    %v875 = vmul.f32 1.0, %v874
    %v876 = vtanh.pop %v856
    %v877 = vmul.f32 %v875, %v824
    %879 = vrot.lane.b32.xlu0 %v876, 64
    %v880 = vpop.permute.xlu0 %879
    %v882 = vmul.f32 %v875, %v880
    %884 = vrot.lane.b32.xlu0 %v882, 32
    %v885 = vpop.permute.xlu0 %884
    %v887 = vadd.f32 %v877, %v885
    %v888 = vtanh.pop %v887
    %890 = vrot.lane.b32.xlu0 %v888, 64
    %v891 = vpop.permute.xlu0 %890
    %v893 = vmul.f32 %v875, %v891
    %895 = vrot.lane.b32.xlu0 %v893, 32
    %v896 = vpop.permute.xlu0 %895
    %v897 = vsel %vm140, %v896, 0
    %899 = vmatpush.msra.mxu0 0.0
    %900 = vmatpush.msra.mxu0 0.0
    %901 = vmatpush.msra.mxu0 0.0
    %902 = vmatpush.msra.mxu0 0.0
    %903 = vmatpush.msra.mxu0 0.0
    %904 = vmatpush.msra.mxu0 0.0
    %905 = vmatpush.msra.mxu0 0.0
    %906 = vmatpush.msra.mxu0 0.0
    %907 = vmatpush.msra.mxu0 0.0
    %908 = vmatpush.msra.mxu0 0.0
    %909 = vmatpush.msra.mxu0 0.0
    %910 = vmatpush.msra.mxu0 0.0
    %911 = vmatpush.msra.mxu0 %v517
    %912 = vmatpush.msra.mxu0 %v516
    %913 = vmatpush.msra.mxu0 %v515
    %914 = vmatpush.msra.mxu0 %v514
    %915 = vmatmul.f32.gmra.mxu0 %v897
    %v916 = vpop.f32.mrf.mxu0
    %v917 = vadd.f32 0.0, %v916
    %918 = vdwg.mxu0
    %v919 = vadd.f32 %v282, %v917
    %v920 = vxor.u32 %v919, 2147483648
    %v921 = vmul.f32 %v920, 1.442695
    %v922 = vpow.pop %v921
    %v923 = vadd.f32 %v922, 1.0
    %v924 = vrcp.pop %v923
    %v925 = vmul.f32 %v923, %v924
    %v926 = vsub.f32 1.0, %v925
    %v927 = vmul.f32 %v924, %v926
    %v928 = vadd.f32 %v924, %v927
    %vm929 = vweird.f32 %v923
    %vm930 = vweird.f32 %v924
    %vm931 = vmor %vm929, %vm930
    %v932 = vsel %vm931, %v924, %v928
    %v933 = vand.u32 2147483647, %v923
    %vm934 = vcmp.eq.f32.partialorder %v933, 8.507059e+37
    %v935 = vand.u32 %v923, 2147483648
    %v936 = vor.u32 1.1754944e-38, %v935
    %v937 = vsel %vm934, %v936, %v932
    %v938 = vmul.f32 1.0, %v937
    %v939 = vtanh.pop %v919
    %v940 = vmul.f32 %v938, %v887
    %942 = vrot.lane.b32.xlu0 %v939, 64
    %v943 = vpop.permute.xlu0 %942
    %v945 = vmul.f32 %v938, %v943
    %947 = vrot.lane.b32.xlu0 %v945, 32
    %v948 = vpop.permute.xlu0 %947
    %v950 = vadd.f32 %v940, %v948
    %v951 = vtanh.pop %v950
    %953 = vrot.lane.b32.xlu0 %v951, 64
    %v954 = vpop.permute.xlu0 %953
    %v956 = vmul.f32 %v938, %v954
    %958 = vrot.lane.b32.xlu0 %v956, 32
    %v959 = vpop.permute.xlu0 %958
    %v960 = vsel %vm140, %v959, 0
    %962 = vmatpush.msra.mxu0 0.0
    %963 = vmatpush.msra.mxu0 0.0
    %964 = vmatpush.msra.mxu0 0.0
    %965 = vmatpush.msra.mxu0 0.0
    %966 = vmatpush.msra.mxu0 0.0
    %967 = vmatpush.msra.mxu0 0.0
    %968 = vmatpush.msra.mxu0 0.0
    %969 = vmatpush.msra.mxu0 0.0
    %970 = vmatpush.msra.mxu0 0.0
    %971 = vmatpush.msra.mxu0 0.0
    %972 = vmatpush.msra.mxu0 0.0
    %973 = vmatpush.msra.mxu0 0.0
    %974 = vmatpush.msra.mxu0 %v517
    %975 = vmatpush.msra.mxu0 %v516
    %976 = vmatpush.msra.mxu0 %v515
    %977 = vmatpush.msra.mxu0 %v514
    %978 = vmatmul.f32.gmra.mxu0 %v960
    %v979 = vpop.f32.mrf.mxu0
    %v980 = vadd.f32 0.0, %v979
    %981 = vdwg.mxu0
    %v982 = vadd.f32 %v302, %v980
    %v983 = vxor.u32 %v982, 2147483648
    %v984 = vmul.f32 %v983, 1.442695
    %v985 = vpow.pop %v984
    %v986 = vadd.f32 %v985, 1.0
    %v987 = vrcp.pop %v986
    %v988 = vmul.f32 %v986, %v987
    %v989 = vsub.f32 1.0, %v988
    %v990 = vmul.f32 %v987, %v989
    %v991 = vadd.f32 %v987, %v990
    %vm992 = vweird.f32 %v986
    %vm993 = vweird.f32 %v987
    %vm994 = vmor %vm992, %vm993
    %v995 = vsel %vm994, %v987, %v991
    %v996 = vand.u32 2147483647, %v986
    %vm997 = vcmp.eq.f32.partialorder %v996, 8.507059e+37
    %v998 = vand.u32 %v986, 2147483648
    %v999 = vor.u32 1.1754944e-38, %v998
    %v1000 = vsel %vm997, %v999, %v995
    %v1001 = vmul.f32 1.0, %v1000
    %v1002 = vtanh.pop %v982
    %v1003 = vmul.f32 %v1001, %v950
    %1005 = vrot.lane.b32.xlu0 %v1002, 64
    %v1006 = vpop.permute.xlu0 %1005
    %v1008 = vmul.f32 %v1001, %v1006
    %1010 = vrot.lane.b32.xlu0 %v1008, 32
    %v1011 = vpop.permute.xlu0 %1010
    %v1013 = vadd.f32 %v1003, %v1011
    %v1014 = vtanh.pop %v1013
    %1016 = vrot.lane.b32.xlu0 %v1014, 64
    %v1017 = vpop.permute.xlu0 %1016
    %v1019 = vmul.f32 %v1001, %v1017
    %v1020 = vld [vmem:[%s6] sm:$0xff]
    %v1021 = vld [vmem:[%s6 + $0x8] sm:$0xff]
    %v1022 = vld [vmem:[%s6 + $0x10] sm:$0xff]
    %v1023 = vld [vmem:[%s6 + $0x18] sm:$0xff]
    %1024 = vmatpush.msra.mxu0 0.0
    %1025 = vmatpush.msra.mxu0 0.0
    %1026 = vmatpush.msra.mxu0 0.0
    %1027 = vmatpush.msra.mxu0 0.0
    %1028 = vmatpush.msra.mxu0 0.0
    %1029 = vmatpush.msra.mxu0 0.0
    %1030 = vmatpush.msra.mxu0 0.0
    %1031 = vmatpush.msra.mxu0 0.0
    %1032 = vmatpush.msra.mxu0 0.0
    %1033 = vmatpush.msra.mxu0 0.0
    %1034 = vmatpush.msra.mxu0 0.0
    %1035 = vmatpush.msra.mxu0 0.0
    %1036 = vmatpush.msra.mxu0 %v1023
    %1037 = vmatpush.msra.mxu0 %v1022
    %1038 = vmatpush.msra.mxu0 %v1021
    %1039 = vmatpush.msra.mxu0 %v1020
    %1040 = vmatmul.f32.gmra.mxu0 %v519
    %v1041 = vpop.f32.mrf.mxu0
    %v1042 = vadd.f32 0.0, %v1041
    %1043 = vdwg.mxu0
    %v1044 = vadd.f32 %v512, %v1042
    %v1045 = vxor.u32 %v1044, 2147483648
    %v1046 = vmul.f32 %v1045, 1.442695
    %v1047 = vpow.pop %v1046
    %v1048 = vadd.f32 %v1047, 1.0
    %v1049 = vrcp.pop %v1048
    %v1050 = vmul.f32 %v1048, %v1049
    %v1051 = vsub.f32 1.0, %v1050
    %v1052 = vmul.f32 %v1049, %v1051
    %v1053 = vadd.f32 %v1049, %v1052
    %vm1054 = vweird.f32 %v1048
    %vm1055 = vweird.f32 %v1049
    %vm1056 = vmor %vm1054, %vm1055
    %v1057 = vsel %vm1056, %v1049, %v1053
    %v1058 = vand.u32 2147483647, %v1048
    %vm1059 = vcmp.eq.f32.partialorder %v1058, 8.507059e+37
    %v1060 = vand.u32 %v1048, 2147483648
    %v1061 = vor.u32 1.1754944e-38, %v1060
    %v1062 = vsel %vm1059, %v1061, %v1057
    %v1063 = vmul.f32 1.0, %v1062
    %v1064 = vtanh.pop %v1044
    %v1065 = vmul.f32 %v1063, 0.0
    %1067 = vrot.lane.b32.xlu0 %v1064, 64
    %v1068 = vpop.permute.xlu0 %1067
    %v1070 = vmul.f32 %v1063, %v1068
    %1072 = vrot.lane.b32.xlu0 %v1070, 32
    %v1073 = vpop.permute.xlu0 %1072
    %v1075 = vadd.f32 %v1065, %v1073
    %v1076 = vtanh.pop %v1075
    %1078 = vrot.lane.b32.xlu0 %v1076, 64
    %v1079 = vpop.permute.xlu0 %1078
    %v1081 = vmul.f32 %v1063, %v1079
    %1083 = vrot.lane.b32.xlu0 %v1081, 32
    %v1084 = vpop.permute.xlu0 %1083
    %v1085 = vsel %vm140, %v1084, 0
    %1087 = vmatpush.msra.mxu0 0.0
    %1088 = vmatpush.msra.mxu0 0.0
    %1089 = vmatpush.msra.mxu0 0.0
    %1090 = vmatpush.msra.mxu0 0.0
    %1091 = vmatpush.msra.mxu0 0.0
    %1092 = vmatpush.msra.mxu0 0.0
    %1093 = vmatpush.msra.mxu0 0.0
    %1094 = vmatpush.msra.mxu0 0.0
    %1095 = vmatpush.msra.mxu0 0.0
    %1096 = vmatpush.msra.mxu0 0.0
    %1097 = vmatpush.msra.mxu0 0.0
    %1098 = vmatpush.msra.mxu0 0.0
    %1099 = vmatpush.msra.mxu0 %v1023
    %1100 = vmatpush.msra.mxu0 %v1022
    %1101 = vmatpush.msra.mxu0 %v1021
    %1102 = vmatpush.msra.mxu0 %v1020
    %1103 = vmatmul.f32.gmra.mxu0 %v1085
    %v1104 = vpop.f32.mrf.mxu0
    %v1105 = vadd.f32 0.0, %v1104
    %1106 = vdwg.mxu0
    %v1107 = vadd.f32 %v492, %v1105
    %v1108 = vxor.u32 %v1107, 2147483648
    %v1109 = vmul.f32 %v1108, 1.442695
    %v1110 = vpow.pop %v1109
    %v1111 = vadd.f32 %v1110, 1.0
    %v1112 = vrcp.pop %v1111
    %v1113 = vmul.f32 %v1111, %v1112
    %v1114 = vsub.f32 1.0, %v1113
    %v1115 = vmul.f32 %v1112, %v1114
    %v1116 = vadd.f32 %v1112, %v1115
    %vm1117 = vweird.f32 %v1111
    %vm1118 = vweird.f32 %v1112
    %vm1119 = vmor %vm1117, %vm1118
    %v1120 = vsel %vm1119, %v1112, %v1116
    %v1121 = vand.u32 2147483647, %v1111
    %vm1122 = vcmp.eq.f32.partialorder %v1121, 8.507059e+37
    %v1123 = vand.u32 %v1111, 2147483648
    %v1124 = vor.u32 1.1754944e-38, %v1123
    %v1125 = vsel %vm1122, %v1124, %v1120
    %v1126 = vmul.f32 1.0, %v1125
    %v1127 = vtanh.pop %v1107
    %v1128 = vmul.f32 %v1126, %v1075
    %1130 = vrot.lane.b32.xlu0 %v1127, 64
    %v1131 = vpop.permute.xlu0 %1130
    %v1133 = vmul.f32 %v1126, %v1131
    %1135 = vrot.lane.b32.xlu0 %v1133, 32
    %v1136 = vpop.permute.xlu0 %1135
    %v1138 = vadd.f32 %v1128, %v1136
    %v1139 = vtanh.pop %v1138
    %1141 = vrot.lane.b32.xlu0 %v1139, 64
    %v1142 = vpop.permute.xlu0 %1141
    %v1144 = vmul.f32 %v1126, %v1142
    %1146 = vrot.lane.b32.xlu0 %v1144, 32
    %v1147 = vpop.permute.xlu0 %1146
    %v1148 = vsel %vm140, %v1147, 0
    %1150 = vmatpush.msra.mxu0 0.0
    %1151 = vmatpush.msra.mxu0 0.0
    %1152 = vmatpush.msra.mxu0 0.0
    %1153 = vmatpush.msra.mxu0 0.0
    %1154 = vmatpush.msra.mxu0 0.0
    %1155 = vmatpush.msra.mxu0 0.0
    %1156 = vmatpush.msra.mxu0 0.0
    %1157 = vmatpush.msra.mxu0 0.0
    %1158 = vmatpush.msra.mxu0 0.0
    %1159 = vmatpush.msra.mxu0 0.0
    %1160 = vmatpush.msra.mxu0 0.0
    %1161 = vmatpush.msra.mxu0 0.0
    %1162 = vmatpush.msra.mxu0 %v1023
    %1163 = vmatpush.msra.mxu0 %v1022
    %1164 = vmatpush.msra.mxu0 %v1021
    %1165 = vmatpush.msra.mxu0 %v1020
    %1166 = vmatmul.f32.gmra.mxu0 %v1148
    %v1167 = vpop.f32.mrf.mxu0
    %v1168 = vadd.f32 0.0, %v1167
    %1169 = vdwg.mxu0
    %v1170 = vadd.f32 %v472, %v1168
    %v1171 = vxor.u32 %v1170, 2147483648
    %v1172 = vmul.f32 %v1171, 1.442695
    %v1173 = vpow.pop %v1172
    %v1174 = vadd.f32 %v1173, 1.0
    %v1175 = vrcp.pop %v1174
    %v1176 = vmul.f32 %v1174, %v1175
    %v1177 = vsub.f32 1.0, %v1176
    %v1178 = vmul.f32 %v1175, %v1177
    %v1179 = vadd.f32 %v1175, %v1178
    %vm1180 = vweird.f32 %v1174
    %vm1181 = vweird.f32 %v1175
    %vm1182 = vmor %vm1180, %vm1181
    %v1183 = vsel %vm1182, %v1175, %v1179
    %v1184 = vand.u32 2147483647, %v1174
    %vm1185 = vcmp.eq.f32.partialorder %v1184, 8.507059e+37
    %v1186 = vand.u32 %v1174, 2147483648
    %v1187 = vor.u32 1.1754944e-38, %v1186
    %v1188 = vsel %vm1185, %v1187, %v1183
    %v1189 = vmul.f32 1.0, %v1188
    %v1190 = vtanh.pop %v1170
    %v1191 = vmul.f32 %v1189, %v1138
    %1193 = vrot.lane.b32.xlu0 %v1190, 64
    %v1194 = vpop.permute.xlu0 %1193
    %v1196 = vmul.f32 %v1189, %v1194
    %1198 = vrot.lane.b32.xlu0 %v1196, 32
    %v1199 = vpop.permute.xlu0 %1198
    %v1201 = vadd.f32 %v1191, %v1199
    %v1202 = vtanh.pop %v1201
    %1204 = vrot.lane.b32.xlu0 %v1202, 64
    %v1205 = vpop.permute.xlu0 %1204
    %v1207 = vmul.f32 %v1189, %v1205
    %1209 = vrot.lane.b32.xlu0 %v1207, 32
    %v1210 = vpop.permute.xlu0 %1209
    %v1211 = vsel %vm140, %v1210, 0
    %1213 = vmatpush.msra.mxu0 0.0
    %1214 = vmatpush.msra.mxu0 0.0
    %1215 = vmatpush.msra.mxu0 0.0
    %1216 = vmatpush.msra.mxu0 0.0
    %1217 = vmatpush.msra.mxu0 0.0
    %1218 = vmatpush.msra.mxu0 0.0
    %1219 = vmatpush.msra.mxu0 0.0
    %1220 = vmatpush.msra.mxu0 0.0
    %1221 = vmatpush.msra.mxu0 0.0
    %1222 = vmatpush.msra.mxu0 0.0
    %1223 = vmatpush.msra.mxu0 0.0
    %1224 = vmatpush.msra.mxu0 0.0
    %1225 = vmatpush.msra.mxu0 %v1023
    %1226 = vmatpush.msra.mxu0 %v1022
    %1227 = vmatpush.msra.mxu0 %v1021
    %1228 = vmatpush.msra.mxu0 %v1020
    %1229 = vmatmul.f32.gmra.mxu0 %v1211
    %v1230 = vpop.f32.mrf.mxu0
    %v1231 = vadd.f32 0.0, %v1230
    %1232 = vdwg.mxu0
    %v1233 = vadd.f32 %v452, %v1231
    %v1234 = vxor.u32 %v1233, 2147483648
    %v1235 = vmul.f32 %v1234, 1.442695
    %v1236 = vpow.pop %v1235
    %v1237 = vadd.f32 %v1236, 1.0
    %v1238 = vrcp.pop %v1237
    %v1239 = vmul.f32 %v1237, %v1238
    %v1240 = vsub.f32 1.0, %v1239
    %v1241 = vmul.f32 %v1238, %v1240
    %v1242 = vadd.f32 %v1238, %v1241
    %vm1243 = vweird.f32 %v1237
    %vm1244 = vweird.f32 %v1238
    %vm1245 = vmor %vm1243, %vm1244
    %v1246 = vsel %vm1245, %v1238, %v1242
    %v1247 = vand.u32 2147483647, %v1237
    %vm1248 = vcmp.eq.f32.partialorder %v1247, 8.507059e+37
    %v1249 = vand.u32 %v1237, 2147483648
    %v1250 = vor.u32 1.1754944e-38, %v1249
    %v1251 = vsel %vm1248, %v1250, %v1246
    %v1252 = vmul.f32 1.0, %v1251
    %v1253 = vtanh.pop %v1233
    %v1254 = vmul.f32 %v1252, %v1201
    %1256 = vrot.lane.b32.xlu0 %v1253, 64
    %v1257 = vpop.permute.xlu0 %1256
    %v1259 = vmul.f32 %v1252, %v1257
    %1261 = vrot.lane.b32.xlu0 %v1259, 32
    %v1262 = vpop.permute.xlu0 %1261
    %v1264 = vadd.f32 %v1254, %v1262
    %v1265 = vtanh.pop %v1264
    %1267 = vrot.lane.b32.xlu0 %v1265, 64
    %v1268 = vpop.permute.xlu0 %1267
    %v1270 = vmul.f32 %v1252, %v1268
    %1272 = vrot.lane.b32.xlu0 %v1270, 32
    %v1273 = vpop.permute.xlu0 %1272
    %v1274 = vsel %vm140, %v1273, 0
    %1276 = vmatpush.msra.mxu0 0.0
    %1277 = vmatpush.msra.mxu0 0.0
    %1278 = vmatpush.msra.mxu0 0.0
    %1279 = vmatpush.msra.mxu0 0.0
    %1280 = vmatpush.msra.mxu0 0.0
    %1281 = vmatpush.msra.mxu0 0.0
    %1282 = vmatpush.msra.mxu0 0.0
    %1283 = vmatpush.msra.mxu0 0.0
    %1284 = vmatpush.msra.mxu0 0.0
    %1285 = vmatpush.msra.mxu0 0.0
    %1286 = vmatpush.msra.mxu0 0.0
    %1287 = vmatpush.msra.mxu0 0.0
    %1288 = vmatpush.msra.mxu0 %v1023
    %1289 = vmatpush.msra.mxu0 %v1022
    %1290 = vmatpush.msra.mxu0 %v1021
    %1291 = vmatpush.msra.mxu0 %v1020
    %1292 = vmatmul.f32.gmra.mxu0 %v1274
    %v1293 = vpop.f32.mrf.mxu0
    %v1294 = vadd.f32 0.0, %v1293
    %1295 = vdwg.mxu0
    %v1296 = vadd.f32 %v432, %v1294
    %v1297 = vxor.u32 %v1296, 2147483648
    %v1298 = vmul.f32 %v1297, 1.442695
    %v1299 = vpow.pop %v1298
    %v1300 = vadd.f32 %v1299, 1.0
    %v1301 = vrcp.pop %v1300
    %v1302 = vmul.f32 %v1300, %v1301
    %v1303 = vsub.f32 1.0, %v1302
    %v1304 = vmul.f32 %v1301, %v1303
    %v1305 = vadd.f32 %v1301, %v1304
    %vm1306 = vweird.f32 %v1300
    %vm1307 = vweird.f32 %v1301
    %vm1308 = vmor %vm1306, %vm1307
    %v1309 = vsel %vm1308, %v1301, %v1305
    %v1310 = vand.u32 2147483647, %v1300
    %vm1311 = vcmp.eq.f32.partialorder %v1310, 8.507059e+37
    %v1312 = vand.u32 %v1300, 2147483648
    %v1313 = vor.u32 1.1754944e-38, %v1312
    %v1314 = vsel %vm1311, %v1313, %v1309
    %v1315 = vmul.f32 1.0, %v1314
    %v1316 = vtanh.pop %v1296
    %v1317 = vmul.f32 %v1315, %v1264
    %1319 = vrot.lane.b32.xlu0 %v1316, 64
    %v1320 = vpop.permute.xlu0 %1319
    %v1322 = vmul.f32 %v1315, %v1320
    %1324 = vrot.lane.b32.xlu0 %v1322, 32
    %v1325 = vpop.permute.xlu0 %1324
    %v1327 = vadd.f32 %v1317, %v1325
    %v1328 = vtanh.pop %v1327
    %1330 = vrot.lane.b32.xlu0 %v1328, 64
    %v1331 = vpop.permute.xlu0 %1330
    %v1333 = vmul.f32 %v1315, %v1331
    %1335 = vrot.lane.b32.xlu0 %v1333, 32
    %v1336 = vpop.permute.xlu0 %1335
    %v1337 = vsel %vm140, %v1336, 0
    %1339 = vmatpush.msra.mxu0 0.0
    %1340 = vmatpush.msra.mxu0 0.0
    %1341 = vmatpush.msra.mxu0 0.0
    %1342 = vmatpush.msra.mxu0 0.0
    %1343 = vmatpush.msra.mxu0 0.0
    %1344 = vmatpush.msra.mxu0 0.0
    %1345 = vmatpush.msra.mxu0 0.0
    %1346 = vmatpush.msra.mxu0 0.0
    %1347 = vmatpush.msra.mxu0 0.0
    %1348 = vmatpush.msra.mxu0 0.0
    %1349 = vmatpush.msra.mxu0 0.0
    %1350 = vmatpush.msra.mxu0 0.0
    %1351 = vmatpush.msra.mxu0 %v1023
    %1352 = vmatpush.msra.mxu0 %v1022
    %1353 = vmatpush.msra.mxu0 %v1021
    %1354 = vmatpush.msra.mxu0 %v1020
    %1355 = vmatmul.f32.gmra.mxu0 %v1337
    %v1356 = vpop.f32.mrf.mxu0
    %v1357 = vadd.f32 0.0, %v1356
    %1358 = vdwg.mxu0
    %v1359 = vadd.f32 %v412, %v1357
    %v1360 = vxor.u32 %v1359, 2147483648
    %v1361 = vmul.f32 %v1360, 1.442695
    %v1362 = vpow.pop %v1361
    %v1363 = vadd.f32 %v1362, 1.0
    %v1364 = vrcp.pop %v1363
    %v1365 = vmul.f32 %v1363, %v1364
    %v1366 = vsub.f32 1.0, %v1365
    %v1367 = vmul.f32 %v1364, %v1366
    %v1368 = vadd.f32 %v1364, %v1367
    %vm1369 = vweird.f32 %v1363
    %vm1370 = vweird.f32 %v1364
    %vm1371 = vmor %vm1369, %vm1370
    %v1372 = vsel %vm1371, %v1364, %v1368
    %v1373 = vand.u32 2147483647, %v1363
    %vm1374 = vcmp.eq.f32.partialorder %v1373, 8.507059e+37
    %v1375 = vand.u32 %v1363, 2147483648
    %v1376 = vor.u32 1.1754944e-38, %v1375
    %v1377 = vsel %vm1374, %v1376, %v1372
    %v1378 = vmul.f32 1.0, %v1377
    %v1379 = vtanh.pop %v1359
    %v1380 = vmul.f32 %v1378, %v1327
    %1382 = vrot.lane.b32.xlu0 %v1379, 64
    %v1383 = vpop.permute.xlu0 %1382
    %v1385 = vmul.f32 %v1378, %v1383
    %1387 = vrot.lane.b32.xlu0 %v1385, 32
    %v1388 = vpop.permute.xlu0 %1387
    %v1390 = vadd.f32 %v1380, %v1388
    %v1391 = vtanh.pop %v1390
    %1393 = vrot.lane.b32.xlu0 %v1391, 64
    %v1394 = vpop.permute.xlu0 %1393
    %v1396 = vmul.f32 %v1378, %v1394
    %1398 = vrot.lane.b32.xlu0 %v1396, 32
    %v1399 = vpop.permute.xlu0 %1398
    %v1400 = vsel %vm140, %v1399, 0
    %1402 = vmatpush.msra.mxu0 0.0
    %1403 = vmatpush.msra.mxu0 0.0
    %1404 = vmatpush.msra.mxu0 0.0
    %1405 = vmatpush.msra.mxu0 0.0
    %1406 = vmatpush.msra.mxu0 0.0
    %1407 = vmatpush.msra.mxu0 0.0
    %1408 = vmatpush.msra.mxu0 0.0
    %1409 = vmatpush.msra.mxu0 0.0
    %1410 = vmatpush.msra.mxu0 0.0
    %1411 = vmatpush.msra.mxu0 0.0
    %1412 = vmatpush.msra.mxu0 0.0
    %1413 = vmatpush.msra.mxu0 0.0
    %1414 = vmatpush.msra.mxu0 %v1023
    %1415 = vmatpush.msra.mxu0 %v1022
    %1416 = vmatpush.msra.mxu0 %v1021
    %1417 = vmatpush.msra.mxu0 %v1020
    %1418 = vmatmul.f32.gmra.mxu0 %v1400
    %v1419 = vpop.f32.mrf.mxu0
    %v1420 = vadd.f32 0.0, %v1419
    %1421 = vdwg.mxu0
    %v1422 = vadd.f32 %v392, %v1420
    %v1423 = vxor.u32 %v1422, 2147483648
    %v1424 = vmul.f32 %v1423, 1.442695
    %v1425 = vpow.pop %v1424
    %v1426 = vadd.f32 %v1425, 1.0
    %v1427 = vrcp.pop %v1426
    %v1428 = vmul.f32 %v1426, %v1427
    %v1429 = vsub.f32 1.0, %v1428
    %v1430 = vmul.f32 %v1427, %v1429
    %v1431 = vadd.f32 %v1427, %v1430
    %vm1432 = vweird.f32 %v1426
    %vm1433 = vweird.f32 %v1427
    %vm1434 = vmor %vm1432, %vm1433
    %v1435 = vsel %vm1434, %v1427, %v1431
    %v1436 = vand.u32 2147483647, %v1426
    %vm1437 = vcmp.eq.f32.partialorder %v1436, 8.507059e+37
    %v1438 = vand.u32 %v1426, 2147483648
    %v1439 = vor.u32 1.1754944e-38, %v1438
    %v1440 = vsel %vm1437, %v1439, %v1435
    %v1441 = vmul.f32 1.0, %v1440
    %v1442 = vtanh.pop %v1422
    %v1443 = vmul.f32 %v1441, %v1390
    %1445 = vrot.lane.b32.xlu0 %v1442, 64
    %v1446 = vpop.permute.xlu0 %1445
    %v1448 = vmul.f32 %v1441, %v1446
    %1450 = vrot.lane.b32.xlu0 %v1448, 32
    %v1451 = vpop.permute.xlu0 %1450
    %v1453 = vadd.f32 %v1443, %v1451
    %v1454 = vtanh.pop %v1453
    %1456 = vrot.lane.b32.xlu0 %v1454, 64
    %v1457 = vpop.permute.xlu0 %1456
    %v1459 = vmul.f32 %v1441, %v1457
    %1461 = vrot.lane.b32.xlu0 %v1459, 32
    %v1462 = vpop.permute.xlu0 %1461
    %v1463 = vsel %vm140, %v1462, 0
    %1465 = vmatpush.msra.mxu0 0.0
    %1466 = vmatpush.msra.mxu0 0.0
    %1467 = vmatpush.msra.mxu0 0.0
    %1468 = vmatpush.msra.mxu0 0.0
    %1469 = vmatpush.msra.mxu0 0.0
    %1470 = vmatpush.msra.mxu0 0.0
    %1471 = vmatpush.msra.mxu0 0.0
    %1472 = vmatpush.msra.mxu0 0.0
    %1473 = vmatpush.msra.mxu0 0.0
    %1474 = vmatpush.msra.mxu0 0.0
    %1475 = vmatpush.msra.mxu0 0.0
    %1476 = vmatpush.msra.mxu0 0.0
    %1477 = vmatpush.msra.mxu0 %v1023
    %1478 = vmatpush.msra.mxu0 %v1022
    %1479 = vmatpush.msra.mxu0 %v1021
    %1480 = vmatpush.msra.mxu0 %v1020
    %1481 = vmatmul.f32.gmra.mxu0 %v1463
    %v1482 = vpop.f32.mrf.mxu0
    %v1483 = vadd.f32 0.0, %v1482
    %1484 = vdwg.mxu0
    %v1485 = vadd.f32 %v372, %v1483
    %v1486 = vxor.u32 %v1485, 2147483648
    %v1487 = vmul.f32 %v1486, 1.442695
    %v1488 = vpow.pop %v1487
    %v1489 = vadd.f32 %v1488, 1.0
    %v1490 = vrcp.pop %v1489
    %v1491 = vmul.f32 %v1489, %v1490
    %v1492 = vsub.f32 1.0, %v1491
    %v1493 = vmul.f32 %v1490, %v1492
    %v1494 = vadd.f32 %v1490, %v1493
    %vm1495 = vweird.f32 %v1489
    %vm1496 = vweird.f32 %v1490
    %vm1497 = vmor %vm1495, %vm1496
    %v1498 = vsel %vm1497, %v1490, %v1494
    %v1499 = vand.u32 2147483647, %v1489
    %vm1500 = vcmp.eq.f32.partialorder %v1499, 8.507059e+37
    %v1501 = vand.u32 %v1489, 2147483648
    %v1502 = vor.u32 1.1754944e-38, %v1501
    %v1503 = vsel %vm1500, %v1502, %v1498
    %v1504 = vmul.f32 1.0, %v1503
    %v1505 = vtanh.pop %v1485
    %v1506 = vmul.f32 %v1504, %v1453
    %1508 = vrot.lane.b32.xlu0 %v1505, 64
    %v1509 = vpop.permute.xlu0 %1508
    %v1511 = vmul.f32 %v1504, %v1509
    %1513 = vrot.lane.b32.xlu0 %v1511, 32
    %v1514 = vpop.permute.xlu0 %1513
    %v1516 = vadd.f32 %v1506, %v1514
    %v1517 = vtanh.pop %v1516
    %1519 = vrot.lane.b32.xlu0 %v1517, 64
    %v1520 = vpop.permute.xlu0 %1519
    %v1522 = vmul.f32 %v1504, %v1520
    %1525 = vrot.lane.b32.xlu0 %v1522, 64
    %v1526 = vpop.permute.xlu0 %1525
    %v1528 = vsel %vm140, %v581, %v1526
    %1530 = vrot.lane.b32.xlu0 %v1459, 64
    %v1531 = vpop.permute.xlu0 %1530
    %v1533 = vsel %vm140, %v644, %v1531
    %1535 = vrot.lane.b32.xlu0 %v1396, 64
    %v1536 = vpop.permute.xlu0 %1535
    %v1538 = vsel %vm140, %v707, %v1536
    %1540 = vrot.lane.b32.xlu0 %v1333, 64
    %v1541 = vpop.permute.xlu0 %1540
    %v1543 = vsel %vm140, %v770, %v1541
    %1545 = vrot.lane.b32.xlu0 %v1270, 64
    %v1546 = vpop.permute.xlu0 %1545
    %v1548 = vsel %vm140, %v833, %v1546
    %1550 = vrot.lane.b32.xlu0 %v1207, 64
    %v1551 = vpop.permute.xlu0 %1550
    %v1553 = vsel %vm140, %v896, %v1551
    %1555 = vrot.lane.b32.xlu0 %v1144, 64
    %v1556 = vpop.permute.xlu0 %1555
    %v1558 = vsel %vm140, %v959, %v1556
    %1560 = vrot.lane.b32.xlu0 %v1019, 32
    %v1561 = vpop.permute.xlu0 %1560
    %1563 = vrot.lane.b32.xlu0 %v1081, 64
    %v1564 = vpop.permute.xlu0 %1563
    %v1566 = vsel %vm140, %v1561, %v1564
    %vm1567 = vcmask 517120
    %1568 = vst.msk [vmem:[#allocation2] sm:$0x3] %vm1567, 0.0
    %s1569 = scalar_lea.vmem [#allocation2], 34
    %1570 = vst.msk [vmem:[%s1569] sm:$0x3] %vm1567, 0.0
    %s1571 = scalar_lea.vmem [#allocation2], 2
    %1572 = vst.msk [vmem:[%s1571] sm:$0x3] %vm1567, %v1528
    %s1573 = scalar_lea.vmem [#allocation2], 4
    %1574 = vst.msk [vmem:[%s1573] sm:$0x3] %vm1567, %v1528
    %s1575 = scalar_lea.vmem [#allocation2], 6
    %1576 = vst.msk [vmem:[%s1575] sm:$0x3] %vm1567, %v1533
    %s1577 = scalar_lea.vmem [#allocation2], 8
    %1578 = vst.msk [vmem:[%s1577] sm:$0x3] %vm1567, %v1533
    %s1579 = scalar_lea.vmem [#allocation2], 10
    %1580 = vst.msk [vmem:[%s1579] sm:$0x3] %vm1567, %v1538
    %s1581 = scalar_lea.vmem [#allocation2], 12
    %1582 = vst.msk [vmem:[%s1581] sm:$0x3] %vm1567, %v1538
    %s1583 = scalar_lea.vmem [#allocation2], 14
    %1584 = vst.msk [vmem:[%s1583] sm:$0x3] %vm1567, %v1543
    %s1585 = scalar_lea.vmem [#allocation2], 16
    %1586 = vst.msk [vmem:[%s1585] sm:$0x3] %vm1567, %v1543
    %s1587 = scalar_lea.vmem [#allocation2], 18
    %1588 = vst.msk [vmem:[%s1587] sm:$0x3] %vm1567, %v1548
    %s1589 = scalar_lea.vmem [#allocation2], 20
    %1590 = vst.msk [vmem:[%s1589] sm:$0x3] %vm1567, %v1548
    %s1591 = scalar_lea.vmem [#allocation2], 22
    %1592 = vst.msk [vmem:[%s1591] sm:$0x3] %vm1567, %v1553
    %s1593 = scalar_lea.vmem [#allocation2], 24
    %1594 = vst.msk [vmem:[%s1593] sm:$0x3] %vm1567, %v1553
    %s1595 = scalar_lea.vmem [#allocation2], 26
    %1596 = vst.msk [vmem:[%s1595] sm:$0x3] %vm1567, %v1558
    %s1597 = scalar_lea.vmem [#allocation2], 28
    %1598 = vst.msk [vmem:[%s1597] sm:$0x3] %vm1567, %v1558
    %s1599 = scalar_lea.vmem [#allocation2], 30
    %1600 = vst.msk [vmem:[%s1599] sm:$0x3] %vm1567, %v1566
    %s1601 = scalar_lea.vmem [#allocation2], 32
    %1602 = vst.msk [vmem:[%s1601] sm:$0x3] %vm1567, %v1566
    %v1603 = vld [vmem:[#allocation2] sm:$0x3]
    %v1604 = vld [vmem:[#allocation2 + $0x2] sm:$0x3]
    %v1605 = vld [vmem:[#allocation2 + $0x4] sm:$0x3]
    %v1606 = vld [vmem:[#allocation2 + $0x6] sm:$0x3]
    %v1607 = vld [vmem:[#allocation2 + $0x8] sm:$0x3]
    %v1608 = vld [vmem:[#allocation2 + $0xa] sm:$0x3]
    %v1609 = vld [vmem:[#allocation2 + $0xc] sm:$0x3]
    %v1610 = vld [vmem:[#allocation2 + $0xe] sm:$0x3]
    %v1611 = vld [vmem:[#allocation2 + $0x10] sm:$0x3]
    %v1612 = vld [vmem:[#allocation2 + $0x12] sm:$0x3]
    %v1613 = vld [vmem:[#allocation2 + $0x14] sm:$0x3]
    %v1614 = vld [vmem:[#allocation2 + $0x16] sm:$0x3]
    %v1615 = vld [vmem:[#allocation2 + $0x18] sm:$0x3]
    %v1616 = vld [vmem:[#allocation2 + $0x1a] sm:$0x3]
    %v1617 = vld [vmem:[#allocation2 + $0x1c] sm:$0x3]
    %v1618 = vld [vmem:[#allocation2 + $0x1e] sm:$0x3]
    %v1619 = vld [vmem:[#allocation2 + $0x20] sm:$0x3]
    %v1620 = vld [vmem:[#allocation2 + $0x22] sm:$0x3]
    %1637 = vrot.lane.b32.xlu0 %v1604, 64
    %v1638 = vpop.permute.xlu0 %1637
    %1639 = vrot.lane.b32.xlu0 %v1605, 64
    %v1640 = vpop.permute.xlu0 %1639
    %1641 = vrot.lane.b32.xlu0 %v1606, 64
    %v1642 = vpop.permute.xlu0 %1641
    %1643 = vrot.lane.b32.xlu0 %v1607, 64
    %v1644 = vpop.permute.xlu0 %1643
    %1645 = vrot.lane.b32.xlu0 %v1608, 64
    %v1646 = vpop.permute.xlu0 %1645
    %1647 = vrot.lane.b32.xlu0 %v1609, 64
    %v1648 = vpop.permute.xlu0 %1647
    %1649 = vrot.lane.b32.xlu0 %v1610, 64
    %v1650 = vpop.permute.xlu0 %1649
    %1651 = vrot.lane.b32.xlu0 %v1611, 64
    %v1652 = vpop.permute.xlu0 %1651
    %1653 = vrot.lane.b32.xlu0 %v1612, 64
    %v1654 = vpop.permute.xlu0 %1653
    %1655 = vrot.lane.b32.xlu0 %v1613, 64
    %v1656 = vpop.permute.xlu0 %1655
    %1657 = vrot.lane.b32.xlu0 %v1614, 64
    %v1658 = vpop.permute.xlu0 %1657
    %1659 = vrot.lane.b32.xlu0 %v1615, 64
    %v1660 = vpop.permute.xlu0 %1659
    %1661 = vrot.lane.b32.xlu0 %v1616, 64
    %v1662 = vpop.permute.xlu0 %1661
    %1663 = vrot.lane.b32.xlu0 %v1617, 64
    %v1664 = vpop.permute.xlu0 %1663
    %1665 = vrot.lane.b32.xlu0 %v1618, 64
    %v1666 = vpop.permute.xlu0 %1665
    %1667 = vrot.lane.b32.xlu0 %v1619, 64
    %v1668 = vpop.permute.xlu0 %1667
    %vm1685 = vcmask 523264
    %v1686 = vsel %vm1685, %v1603, %v1638
    %v1687 = vsel %vm1685, %v1604, %v1640
    %v1688 = vsel %vm1685, %v1605, %v1642
    %v1689 = vsel %vm1685, %v1606, %v1644
    %v1690 = vsel %vm1685, %v1607, %v1646
    %v1691 = vsel %vm1685, %v1608, %v1648
    %v1692 = vsel %vm1685, %v1609, %v1650
    %v1693 = vsel %vm1685, %v1610, %v1652
    %v1694 = vsel %vm1685, %v1611, %v1654
    %v1695 = vsel %vm1685, %v1612, %v1656
    %v1696 = vsel %vm1685, %v1613, %v1658
    %v1697 = vsel %vm1685, %v1614, %v1660
    %v1698 = vsel %vm1685, %v1615, %v1662
    %v1699 = vsel %vm1685, %v1616, %v1664
    %v1700 = vsel %vm1685, %v1617, %v1666
    %v1701 = vsel %vm1685, %v1618, %v1668
    %v1719 = vrot.slane %v1605, 6
    %v1720 = vrot.slane %v1606, 6
    %v1721 = vrot.slane %v1607, 6
    %v1722 = vrot.slane %v1608, 6
    %v1723 = vrot.slane %v1609, 6
    %v1724 = vrot.slane %v1610, 6
    %v1725 = vrot.slane %v1611, 6
    %v1726 = vrot.slane %v1612, 6
    %v1727 = vrot.slane %v1613, 6
    %v1728 = vrot.slane %v1614, 6
    %v1729 = vrot.slane %v1615, 6
    %v1730 = vrot.slane %v1616, 6
    %v1731 = vrot.slane %v1617, 6
    %v1732 = vrot.slane %v1618, 6
    %v1733 = vrot.slane %v1619, 6
    %v1734 = vrot.slane %v1620, 6
    %vm1735 = vcmask 1041408
    %v1736 = vsel %vm1735, %v1686, %v1719
    %v1737 = vsel %vm1735, %v1687, %v1720
    %v1738 = vsel %vm1735, %v1688, %v1721
    %v1739 = vsel %vm1735, %v1689, %v1722
    %v1740 = vsel %vm1735, %v1690, %v1723
    %v1741 = vsel %vm1735, %v1691, %v1724
    %v1742 = vsel %vm1735, %v1692, %v1725
    %v1743 = vsel %vm1735, %v1693, %v1726
    %v1744 = vsel %vm1735, %v1694, %v1727
    %v1745 = vsel %vm1735, %v1695, %v1728
    %v1746 = vsel %vm1735, %v1696, %v1729
    %v1747 = vsel %vm1735, %v1697, %v1730
    %v1748 = vsel %vm1735, %v1698, %v1731
    %v1749 = vsel %vm1735, %v1699, %v1732
    %v1750 = vsel %vm1735, %v1700, %v1733
    %v1751 = vsel %vm1735, %v1701, %v1734
    %v1752 = vld [vmem:[%s7] sm:$0xff]
    %v1753 = vld [vmem:[%s7 + $0x8] sm:$0xff]
    %v1754 = vld [vmem:[%s7 + $0x10] sm:$0xff]
    %v1755 = vld [vmem:[%s7 + $0x18] sm:$0xff]
    %v1756 = vld [vmem:[%s7 + $0x20] sm:$0xff]
    %v1757 = vld [vmem:[%s7 + $0x28] sm:$0xff]
    %v1758 = vld [vmem:[%s7 + $0x30] sm:$0xff]
    %v1759 = vld [vmem:[%s7 + $0x38] sm:$0xff]
    %v1760 = vld [vmem:[%s7 + $0x40] sm:$0xff]
    %v1761 = vld [vmem:[%s7 + $0x48] sm:$0xff]
    %v1762 = vld [vmem:[%s7 + $0x50] sm:$0xff]
    %v1763 = vld [vmem:[%s7 + $0x58] sm:$0xff]
    %v1764 = vld [vmem:[%s7 + $0x60] sm:$0xff]
    %v1765 = vld [vmem:[%s7 + $0x68] sm:$0xff]
    %v1766 = vld [vmem:[%s7 + $0x70] sm:$0xff]
    %v1767 = vld [vmem:[%s7 + $0x78] sm:$0xff]
    %v1768 = vld [vmem:[%s7 + $0x80] sm:$0xff]
    %v1769 = vld [vmem:[%s7 + $0x88] sm:$0xff]
    %v1770 = vld [vmem:[%s7 + $0x90] sm:$0xff]
    %v1771 = vld [vmem:[%s7 + $0x98] sm:$0xff]
    %v1772 = vld [vmem:[%s7 + $0xa0] sm:$0xff]
    %v1773 = vld [vmem:[%s7 + $0xa8] sm:$0xff]
    %v1774 = vld [vmem:[%s7 + $0xb0] sm:$0xff]
    %v1775 = vld [vmem:[%s7 + $0xb8] sm:$0xff]
    %1776 = vst [vmem:[#allocation1] ss:$4 sm:$0xff] %v1736
    %s1777 = scalar_lea.vmem [#allocation1], 1
    %1778 = vst [vmem:[%s1777] ss:$4 sm:$0xff] %v1737
    %s1779 = scalar_lea.vmem [#allocation1], 2
    %1780 = vst [vmem:[%s1779] ss:$4 sm:$0xff] %v1738
    %s1781 = scalar_lea.vmem [#allocation1], 3
    %1782 = vst [vmem:[%s1781] ss:$4 sm:$0xff] %v1739
    %s1783 = scalar_lea.vmem [#allocation1], 32
    %1784 = vst [vmem:[%s1783] ss:$4 sm:$0xff] %v1740
    %s1785 = scalar_lea.vmem [#allocation1], 33
    %1786 = vst [vmem:[%s1785] ss:$4 sm:$0xff] %v1741
    %s1787 = scalar_lea.vmem [#allocation1], 34
    %1788 = vst [vmem:[%s1787] ss:$4 sm:$0xff] %v1742
    %s1789 = scalar_lea.vmem [#allocation1], 35
    %1790 = vst [vmem:[%s1789] ss:$4 sm:$0xff] %v1743
    %v1791 = vld.sshfl [vmem:[#allocation1] sm:$0xff pattern:$0x73625140]
    %v1792 = vld.sshfl [vmem:[#allocation1 + $0x8] sm:$0xff pattern:$0x73625140]
    %v1793 = vld.sshfl [vmem:[#allocation1 + $0x20] sm:$0xff pattern:$0x73625140]
    %v1794 = vld.sshfl [vmem:[#allocation1 + $0x28] sm:$0xff pattern:$0x73625140]
    %1795 = vst [vmem:[#allocation1] ss:$4 sm:$0xff] %v1744
    %1796 = vst [vmem:[%s1777] ss:$4 sm:$0xff] %v1745
    %1797 = vst [vmem:[%s1779] ss:$4 sm:$0xff] %v1746
    %1798 = vst [vmem:[%s1781] ss:$4 sm:$0xff] %v1747
    %1799 = vst [vmem:[%s1783] ss:$4 sm:$0xff] %v1748
    %1800 = vst [vmem:[%s1785] ss:$4 sm:$0xff] %v1749
    %1801 = vst [vmem:[%s1787] ss:$4 sm:$0xff] %v1750
    %1802 = vst [vmem:[%s1789] ss:$4 sm:$0xff] %v1751
    %v1803 = vld.sshfl [vmem:[#allocation1] sm:$0xff pattern:$0x73625140]
    %v1804 = vld.sshfl [vmem:[#allocation1 + $0x8] sm:$0xff pattern:$0x73625140]
    %v1805 = vld.sshfl [vmem:[#allocation1 + $0x20] sm:$0xff pattern:$0x73625140]
    %v1806 = vld.sshfl [vmem:[#allocation1 + $0x28] sm:$0xff pattern:$0x73625140]
    %v1811 = vsel %vm1685, %v1792, 0
    %v1813 = vsel %vm1685, %v1794, 0
    %v1815 = vsel %vm1685, %v1804, 0
    %v1817 = vsel %vm1685, %v1806, 0
    %1819 = vmatpush.msra.mxu0 %v1767
    %1820 = vmatpush.msra.mxu0 %v1766
    %1821 = vmatpush.msra.mxu0 %v1765
    %1822 = vmatpush.msra.mxu0 %v1764
    %1823 = vmatpush.msra.mxu0 %v1763
    %1824 = vmatpush.msra.mxu0 %v1762
    %1825 = vmatpush.msra.mxu0 %v1761
    %1826 = vmatpush.msra.mxu0 %v1760
    %1827 = vmatpush.msra.mxu0 %v1759
    %1828 = vmatpush.msra.mxu0 %v1758
    %1829 = vmatpush.msra.mxu0 %v1757
    %1830 = vmatpush.msra.mxu0 %v1756
    %1831 = vmatpush.msra.mxu0 %v1755
    %1832 = vmatpush.msra.mxu0 %v1754
    %1833 = vmatpush.msra.mxu0 %v1753
    %1834 = vmatpush.msra.mxu0 %v1752
    %1835 = vmatmul.f32.gmra.mxu0 %v1791
    %v1836 = vpop.f32.mrf.mxu0
    %v1837 = vadd.f32 0.0, %v1836
    %1838 = vmatmul.f32.gmra.mxu0 %v1793
    %v1839 = vpop.f32.mrf.mxu0
    %v1840 = vadd.f32 0.0, %v1839
    %1841 = vmatmul.f32.gmra.mxu0 %v1803
    %v1842 = vpop.f32.mrf.mxu0
    %v1843 = vadd.f32 0.0, %v1842
    %1844 = vmatmul.f32.gmra.mxu0 %v1805
    %v1845 = vpop.f32.mrf.mxu0
    %v1846 = vadd.f32 0.0, %v1845
    %1847 = vdwg.mxu0
    %1848 = vmatpush.msra.mxu0 0.0
    %1849 = vmatpush.msra.mxu0 0.0
    %1850 = vmatpush.msra.mxu0 0.0
    %1851 = vmatpush.msra.mxu0 0.0
    %1852 = vmatpush.msra.mxu0 0.0
    %1853 = vmatpush.msra.mxu0 0.0
    %1854 = vmatpush.msra.mxu0 0.0
    %1855 = vmatpush.msra.mxu0 0.0
    %1856 = vmatpush.msra.mxu0 %v1775
    %1857 = vmatpush.msra.mxu0 %v1774
    %1858 = vmatpush.msra.mxu0 %v1773
    %1859 = vmatpush.msra.mxu0 %v1772
    %1860 = vmatpush.msra.mxu0 %v1771
    %1861 = vmatpush.msra.mxu0 %v1770
    %1862 = vmatpush.msra.mxu0 %v1769
    %1863 = vmatpush.msra.mxu0 %v1768
    %1864 = vmatmul.f32.gmra.mxu0 %v1811
    %v1865 = vpop.f32.mrf.mxu0
    %v1866 = vadd.f32 %v1837, %v1865
    %1867 = vmatmul.f32.gmra.mxu0 %v1813
    %v1868 = vpop.f32.mrf.mxu0
    %v1869 = vadd.f32 %v1840, %v1868
    %1870 = vmatmul.f32.gmra.mxu0 %v1815
    %v1871 = vpop.f32.mrf.mxu0
    %v1872 = vadd.f32 %v1843, %v1871
    %1873 = vmatmul.f32.gmra.mxu0 %v1817
    %v1874 = vpop.f32.mrf.mxu0
    %v1875 = vadd.f32 %v1846, %v1874
    %1876 = vdwg.mxu0
    %v1877 = vld [vmem:[%s8] sm:$0x1]
    %v1879 = vperm.slane %v1877, 0
    %v1881 = vmul.f32 %v1866, %v1879
    %v1882 = vmul.f32 %v1869, %v1879
    %v1883 = vmul.f32 %v1872, %v1879
    %v1884 = vmul.f32 %v1875, %v1879
    %v1885 = vld [vmem:[%s9] sm:$0x1]
    %v1887 = vperm.slane %v1885, 0
    %v1889 = vadd.f32 %v1881, %v1887
    %v1890 = vadd.f32 %v1882, %v1887
    %v1891 = vadd.f32 %v1883, %v1887
    %v1892 = vadd.f32 %v1884, %v1887
    %v1893 = vmax.f32 %v1889, 0.0
    %v1894 = vmax.f32 %v1890, 0.0
    %v1895 = vmax.f32 %v1891, 0.0
    %v1896 = vmax.f32 %v1892, 0.0
    %v1901 = vrot.slane %v1893, 2
    %v1902 = vrot.slane %v1893, 4
    %v1903 = vrot.slane %v1893, 6
    %v1904 = vrot.slane %v1894, 2
    %v1905 = vrot.slane %v1894, 4
    %v1906 = vrot.slane %v1894, 6
    %v1907 = vrot.slane %v1895, 2
    %v1908 = vrot.slane %v1895, 4
    %v1909 = vrot.slane %v1895, 6
    %v1910 = vrot.slane %v1896, 2
    %v1911 = vrot.slane %v1896, 4
    %v1912 = vrot.slane %v1896, 6
    %vm1925 = vcmask 123904
    %1926 = vst.msk [vmem:[#allocation3] sm:$0x3] %vm1925, 0.0
    %s1927 = scalar_lea.vmem [#allocation3], 66
    %1928 = vst.msk [vmem:[%s1927] sm:$0x3] %vm1925, 0.0
    %s1929 = scalar_lea.vmem [#allocation3], 2
    %1930 = vst.msk [vmem:[%s1929] sm:$0x3] %vm1925, %v1893
    %s1931 = scalar_lea.vmem [#allocation3], 4
    %1932 = vst.msk [vmem:[%s1931] sm:$0x3] %vm1925, %v1893
    %s1933 = scalar_lea.vmem [#allocation3], 6
    %1934 = vst.msk [vmem:[%s1933] sm:$0x3] %vm1925, %v1901
    %s1935 = scalar_lea.vmem [#allocation3], 8
    %1936 = vst.msk [vmem:[%s1935] sm:$0x3] %vm1925, %v1901
    %s1937 = scalar_lea.vmem [#allocation3], 10
    %1938 = vst.msk [vmem:[%s1937] sm:$0x3] %vm1925, %v1902
    %s1939 = scalar_lea.vmem [#allocation3], 12
    %1940 = vst.msk [vmem:[%s1939] sm:$0x3] %vm1925, %v1902
    %s1941 = scalar_lea.vmem [#allocation3], 14
    %1942 = vst.msk [vmem:[%s1941] sm:$0x3] %vm1925, %v1903
    %s1943 = scalar_lea.vmem [#allocation3], 16
    %1944 = vst.msk [vmem:[%s1943] sm:$0x3] %vm1925, %v1903
    %s1945 = scalar_lea.vmem [#allocation3], 18
    %1946 = vst.msk [vmem:[%s1945] sm:$0x3] %vm1925, %v1894
    %s1947 = scalar_lea.vmem [#allocation3], 20
    %1948 = vst.msk [vmem:[%s1947] sm:$0x3] %vm1925, %v1894
    %s1949 = scalar_lea.vmem [#allocation3], 22
    %1950 = vst.msk [vmem:[%s1949] sm:$0x3] %vm1925, %v1904
    %s1951 = scalar_lea.vmem [#allocation3], 24
    %1952 = vst.msk [vmem:[%s1951] sm:$0x3] %vm1925, %v1904
    %s1953 = scalar_lea.vmem [#allocation3], 26
    %1954 = vst.msk [vmem:[%s1953] sm:$0x3] %vm1925, %v1905
    %s1955 = scalar_lea.vmem [#allocation3], 28
    %1956 = vst.msk [vmem:[%s1955] sm:$0x3] %vm1925, %v1905
    %s1957 = scalar_lea.vmem [#allocation3], 30
    %1958 = vst.msk [vmem:[%s1957] sm:$0x3] %vm1925, %v1906
    %s1959 = scalar_lea.vmem [#allocation3], 32
    %1960 = vst.msk [vmem:[%s1959] sm:$0x3] %vm1925, %v1906
    %s1961 = scalar_lea.vmem [#allocation3], 34
    %1962 = vst.msk [vmem:[%s1961] sm:$0x3] %vm1925, %v1895
    %s1963 = scalar_lea.vmem [#allocation3], 36
    %1964 = vst.msk [vmem:[%s1963] sm:$0x3] %vm1925, %v1895
    %s1965 = scalar_lea.vmem [#allocation3], 38
    %1966 = vst.msk [vmem:[%s1965] sm:$0x3] %vm1925, %v1907
    %s1967 = scalar_lea.vmem [#allocation3], 40
    %1968 = vst.msk [vmem:[%s1967] sm:$0x3] %vm1925, %v1907
    %s1969 = scalar_lea.vmem [#allocation3], 42
    %1970 = vst.msk [vmem:[%s1969] sm:$0x3] %vm1925, %v1908
    %s1971 = scalar_lea.vmem [#allocation3], 44
    %1972 = vst.msk [vmem:[%s1971] sm:$0x3] %vm1925, %v1908
    %s1973 = scalar_lea.vmem [#allocation3], 46
    %1974 = vst.msk [vmem:[%s1973] sm:$0x3] %vm1925, %v1909
    %s1975 = scalar_lea.vmem [#allocation3], 48
    %1976 = vst.msk [vmem:[%s1975] sm:$0x3] %vm1925, %v1909
    %s1977 = scalar_lea.vmem [#allocation3], 50
    %1978 = vst.msk [vmem:[%s1977] sm:$0x3] %vm1925, %v1896
    %s1979 = scalar_lea.vmem [#allocation3], 52
    %1980 = vst.msk [vmem:[%s1979] sm:$0x3] %vm1925, %v1896
    %s1981 = scalar_lea.vmem [#allocation3], 54
    %1982 = vst.msk [vmem:[%s1981] sm:$0x3] %vm1925, %v1910
    %s1983 = scalar_lea.vmem [#allocation3], 56
    %1984 = vst.msk [vmem:[%s1983] sm:$0x3] %vm1925, %v1910
    %s1985 = scalar_lea.vmem [#allocation3], 58
    %1986 = vst.msk [vmem:[%s1985] sm:$0x3] %vm1925, %v1911
    %s1987 = scalar_lea.vmem [#allocation3], 60
    %1988 = vst.msk [vmem:[%s1987] sm:$0x3] %vm1925, %v1911
    %s1989 = scalar_lea.vmem [#allocation3], 62
    %1990 = vst.msk [vmem:[%s1989] sm:$0x3] %vm1925, %v1912
    %s1991 = scalar_lea.vmem [#allocation3], 64
    %1992 = vst.msk [vmem:[%s1991] sm:$0x3] %vm1925, %v1912
    %v1993 = vld [vmem:[#allocation3] sm:$0x3]
    %v1994 = vld [vmem:[#allocation3 + $0x2] sm:$0x3]
    %v1995 = vld [vmem:[#allocation3 + $0x4] sm:$0x3]
    %v1996 = vld [vmem:[#allocation3 + $0x6] sm:$0x3]
    %v1997 = vld [vmem:[#allocation3 + $0x8] sm:$0x3]
    %v1998 = vld [vmem:[#allocation3 + $0xa] sm:$0x3]
    %v1999 = vld [vmem:[#allocation3 + $0xc] sm:$0x3]
    %v2000 = vld [vmem:[#allocation3 + $0xe] sm:$0x3]
    %v2001 = vld [vmem:[#allocation3 + $0x10] sm:$0x3]
    %v2002 = vld [vmem:[#allocation3 + $0x12] sm:$0x3]
    %v2003 = vld [vmem:[#allocation3 + $0x14] sm:$0x3]
    %v2004 = vld [vmem:[#allocation3 + $0x16] sm:$0x3]
    %v2005 = vld [vmem:[#allocation3 + $0x18] sm:$0x3]
    %v2006 = vld [vmem:[#allocation3 + $0x1a] sm:$0x3]
    %v2007 = vld [vmem:[#allocation3 + $0x1c] sm:$0x3]
    %v2008 = vld [vmem:[#allocation3 + $0x1e] sm:$0x3]
    %v2009 = vld [vmem:[#allocation3 + $0x20] sm:$0x3]
    %v2010 = vld [vmem:[#allocation3 + $0x22] sm:$0x3]
    %v2011 = vld [vmem:[#allocation3 + $0x24] sm:$0x3]
    %v2012 = vld [vmem:[#allocation3 + $0x26] sm:$0x3]
    %v2013 = vld [vmem:[#allocation3 + $0x28] sm:$0x3]
    %v2014 = vld [vmem:[#allocation3 + $0x2a] sm:$0x3]
    %v2015 = vld [vmem:[#allocation3 + $0x2c] sm:$0x3]
    %v2016 = vld [vmem:[#allocation3 + $0x2e] sm:$0x3]
    %v2017 = vld [vmem:[#allocation3 + $0x30] sm:$0x3]
    %v2018 = vld [vmem:[#allocation3 + $0x32] sm:$0x3]
    %v2019 = vld [vmem:[#allocation3 + $0x34] sm:$0x3]
    %v2020 = vld [vmem:[#allocation3 + $0x36] sm:$0x3]
    %v2021 = vld [vmem:[#allocation3 + $0x38] sm:$0x3]
    %v2022 = vld [vmem:[#allocation3 + $0x3a] sm:$0x3]
    %v2023 = vld [vmem:[#allocation3 + $0x3c] sm:$0x3]
    %v2024 = vld [vmem:[#allocation3 + $0x3e] sm:$0x3]
    %v2025 = vld [vmem:[#allocation3 + $0x40] sm:$0x3]
    %v2026 = vld [vmem:[#allocation3 + $0x42] sm:$0x3]
    %2059 = vrot.lane.b32.xlu0 %v1994, 16
    %v2060 = vpop.permute.xlu0 %2059
    %2061 = vrot.lane.b32.xlu0 %v1995, 16
    %v2062 = vpop.permute.xlu0 %2061
    %2063 = vrot.lane.b32.xlu0 %v1996, 16
    %v2064 = vpop.permute.xlu0 %2063
    %2065 = vrot.lane.b32.xlu0 %v1997, 16
    %v2066 = vpop.permute.xlu0 %2065
    %2067 = vrot.lane.b32.xlu0 %v1998, 16
    %v2068 = vpop.permute.xlu0 %2067
    %2069 = vrot.lane.b32.xlu0 %v1999, 16
    %v2070 = vpop.permute.xlu0 %2069
    %2071 = vrot.lane.b32.xlu0 %v2000, 16
    %v2072 = vpop.permute.xlu0 %2071
    %2073 = vrot.lane.b32.xlu0 %v2001, 16
    %v2074 = vpop.permute.xlu0 %2073
    %2075 = vrot.lane.b32.xlu0 %v2002, 16
    %v2076 = vpop.permute.xlu0 %2075
    %2077 = vrot.lane.b32.xlu0 %v2003, 16
    %v2078 = vpop.permute.xlu0 %2077
    %2079 = vrot.lane.b32.xlu0 %v2004, 16
    %v2080 = vpop.permute.xlu0 %2079
    %2081 = vrot.lane.b32.xlu0 %v2005, 16
    %v2082 = vpop.permute.xlu0 %2081
    %2083 = vrot.lane.b32.xlu0 %v2006, 16
    %v2084 = vpop.permute.xlu0 %2083
    %2085 = vrot.lane.b32.xlu0 %v2007, 16
    %v2086 = vpop.permute.xlu0 %2085
    %2087 = vrot.lane.b32.xlu0 %v2008, 16
    %v2088 = vpop.permute.xlu0 %2087
    %2089 = vrot.lane.b32.xlu0 %v2009, 16
    %v2090 = vpop.permute.xlu0 %2089
    %2091 = vrot.lane.b32.xlu0 %v2010, 16
    %v2092 = vpop.permute.xlu0 %2091
    %2093 = vrot.lane.b32.xlu0 %v2011, 16
    %v2094 = vpop.permute.xlu0 %2093
    %2095 = vrot.lane.b32.xlu0 %v2012, 16
    %v2096 = vpop.permute.xlu0 %2095
    %2097 = vrot.lane.b32.xlu0 %v2013, 16
    %v2098 = vpop.permute.xlu0 %2097
    %2099 = vrot.lane.b32.xlu0 %v2014, 16
    %v2100 = vpop.permute.xlu0 %2099
    %2101 = vrot.lane.b32.xlu0 %v2015, 16
    %v2102 = vpop.permute.xlu0 %2101
    %2103 = vrot.lane.b32.xlu0 %v2016, 16
    %v2104 = vpop.permute.xlu0 %2103
    %2105 = vrot.lane.b32.xlu0 %v2017, 16
    %v2106 = vpop.permute.xlu0 %2105
    %2107 = vrot.lane.b32.xlu0 %v2018, 16
    %v2108 = vpop.permute.xlu0 %2107
    %2109 = vrot.lane.b32.xlu0 %v2019, 16
    %v2110 = vpop.permute.xlu0 %2109
    %2111 = vrot.lane.b32.xlu0 %v2020, 16
    %v2112 = vpop.permute.xlu0 %2111
    %2113 = vrot.lane.b32.xlu0 %v2021, 16
    %v2114 = vpop.permute.xlu0 %2113
    %2115 = vrot.lane.b32.xlu0 %v2022, 16
    %v2116 = vpop.permute.xlu0 %2115
    %2117 = vrot.lane.b32.xlu0 %v2023, 16
    %v2118 = vpop.permute.xlu0 %2117
    %2119 = vrot.lane.b32.xlu0 %v2024, 16
    %v2120 = vpop.permute.xlu0 %2119
    %2121 = vrot.lane.b32.xlu0 %v2025, 16
    %v2122 = vpop.permute.xlu0 %2121
    %2156 = vrot.lane.b32.xlu0 %v1995, 32
    %v2157 = vpop.permute.xlu0 %2156
    %2158 = vrot.lane.b32.xlu0 %v1996, 32
    %v2159 = vpop.permute.xlu0 %2158
    %2160 = vrot.lane.b32.xlu0 %v1997, 32
    %v2161 = vpop.permute.xlu0 %2160
    %2162 = vrot.lane.b32.xlu0 %v1998, 32
    %v2163 = vpop.permute.xlu0 %2162
    %2164 = vrot.lane.b32.xlu0 %v1999, 32
    %v2165 = vpop.permute.xlu0 %2164
    %2166 = vrot.lane.b32.xlu0 %v2000, 32
    %v2167 = vpop.permute.xlu0 %2166
    %2168 = vrot.lane.b32.xlu0 %v2001, 32
    %v2169 = vpop.permute.xlu0 %2168
    %2170 = vrot.lane.b32.xlu0 %v2002, 32
    %v2171 = vpop.permute.xlu0 %2170
    %2172 = vrot.lane.b32.xlu0 %v2003, 32
    %v2173 = vpop.permute.xlu0 %2172
    %2174 = vrot.lane.b32.xlu0 %v2004, 32
    %v2175 = vpop.permute.xlu0 %2174
    %2176 = vrot.lane.b32.xlu0 %v2005, 32
    %v2177 = vpop.permute.xlu0 %2176
    %2178 = vrot.lane.b32.xlu0 %v2006, 32
    %v2179 = vpop.permute.xlu0 %2178
    %2180 = vrot.lane.b32.xlu0 %v2007, 32
    %v2181 = vpop.permute.xlu0 %2180
    %2182 = vrot.lane.b32.xlu0 %v2008, 32
    %v2183 = vpop.permute.xlu0 %2182
    %2184 = vrot.lane.b32.xlu0 %v2009, 32
    %v2185 = vpop.permute.xlu0 %2184
    %2186 = vrot.lane.b32.xlu0 %v2010, 32
    %v2187 = vpop.permute.xlu0 %2186
    %2188 = vrot.lane.b32.xlu0 %v2011, 32
    %v2189 = vpop.permute.xlu0 %2188
    %2190 = vrot.lane.b32.xlu0 %v2012, 32
    %v2191 = vpop.permute.xlu0 %2190
    %2192 = vrot.lane.b32.xlu0 %v2013, 32
    %v2193 = vpop.permute.xlu0 %2192
    %2194 = vrot.lane.b32.xlu0 %v2014, 32
    %v2195 = vpop.permute.xlu0 %2194
    %2196 = vrot.lane.b32.xlu0 %v2015, 32
    %v2197 = vpop.permute.xlu0 %2196
    %2198 = vrot.lane.b32.xlu0 %v2016, 32
    %v2199 = vpop.permute.xlu0 %2198
    %2200 = vrot.lane.b32.xlu0 %v2017, 32
    %v2201 = vpop.permute.xlu0 %2200
    %2202 = vrot.lane.b32.xlu0 %v2018, 32
    %v2203 = vpop.permute.xlu0 %2202
    %2204 = vrot.lane.b32.xlu0 %v2019, 32
    %v2205 = vpop.permute.xlu0 %2204
    %2206 = vrot.lane.b32.xlu0 %v2020, 32
    %v2207 = vpop.permute.xlu0 %2206
    %2208 = vrot.lane.b32.xlu0 %v2021, 32
    %v2209 = vpop.permute.xlu0 %2208
    %2210 = vrot.lane.b32.xlu0 %v2022, 32
    %v2211 = vpop.permute.xlu0 %2210
    %2212 = vrot.lane.b32.xlu0 %v2023, 32
    %v2213 = vpop.permute.xlu0 %2212
    %2214 = vrot.lane.b32.xlu0 %v2024, 32
    %v2215 = vpop.permute.xlu0 %2214
    %2216 = vrot.lane.b32.xlu0 %v2025, 32
    %v2217 = vpop.permute.xlu0 %2216
    %2218 = vrot.lane.b32.xlu0 %v2026, 32
    %v2219 = vpop.permute.xlu0 %2218
    %vm2252 = vcmask 130048
    %v2253 = vsel %vm2252, %v1993, %v2060
    %v2254 = vsel %vm2252, %v1994, %v2062
    %v2255 = vsel %vm2252, %v1995, %v2064
    %v2256 = vsel %vm2252, %v1996, %v2066
    %v2257 = vsel %vm2252, %v1997, %v2068
    %v2258 = vsel %vm2252, %v1998, %v2070
    %v2259 = vsel %vm2252, %v1999, %v2072
    %v2260 = vsel %vm2252, %v2000, %v2074
    %v2261 = vsel %vm2252, %v2001, %v2076
    %v2262 = vsel %vm2252, %v2002, %v2078
    %v2263 = vsel %vm2252, %v2003, %v2080
    %v2264 = vsel %vm2252, %v2004, %v2082
    %v2265 = vsel %vm2252, %v2005, %v2084
    %v2266 = vsel %vm2252, %v2006, %v2086
    %v2267 = vsel %vm2252, %v2007, %v2088
    %v2268 = vsel %vm2252, %v2008, %v2090
    %v2269 = vsel %vm2252, %v2009, %v2092
    %v2270 = vsel %vm2252, %v2010, %v2094
    %v2271 = vsel %vm2252, %v2011, %v2096
    %v2272 = vsel %vm2252, %v2012, %v2098
    %v2273 = vsel %vm2252, %v2013, %v2100
    %v2274 = vsel %vm2252, %v2014, %v2102
    %v2275 = vsel %vm2252, %v2015, %v2104
    %v2276 = vsel %vm2252, %v2016, %v2106
    %v2277 = vsel %vm2252, %v2017, %v2108
    %v2278 = vsel %vm2252, %v2018, %v2110
    %v2279 = vsel %vm2252, %v2019, %v2112
    %v2280 = vsel %vm2252, %v2020, %v2114
    %v2281 = vsel %vm2252, %v2021, %v2116
    %v2282 = vsel %vm2252, %v2022, %v2118
    %v2283 = vsel %vm2252, %v2023, %v2120
    %v2284 = vsel %vm2252, %v2024, %v2122
    %v2285 = vsel %vm140, %v2253, %v2157
    %v2286 = vsel %vm140, %v2254, %v2159
    %v2287 = vsel %vm140, %v2255, %v2161
    %v2288 = vsel %vm140, %v2256, %v2163
    %v2289 = vsel %vm140, %v2257, %v2165
    %v2290 = vsel %vm140, %v2258, %v2167
    %v2291 = vsel %vm140, %v2259, %v2169
    %v2292 = vsel %vm140, %v2260, %v2171
    %v2293 = vsel %vm140, %v2261, %v2173
    %v2294 = vsel %vm140, %v2262, %v2175
    %v2295 = vsel %vm140, %v2263, %v2177
    %v2296 = vsel %vm140, %v2264, %v2179
    %v2297 = vsel %vm140, %v2265, %v2181
    %v2298 = vsel %vm140, %v2266, %v2183
    %v2299 = vsel %vm140, %v2267, %v2185
    %v2300 = vsel %vm140, %v2268, %v2187
    %v2301 = vsel %vm140, %v2269, %v2189
    %v2302 = vsel %vm140, %v2270, %v2191
    %v2303 = vsel %vm140, %v2271, %v2193
    %v2304 = vsel %vm140, %v2272, %v2195
    %v2305 = vsel %vm140, %v2273, %v2197
    %v2306 = vsel %vm140, %v2274, %v2199
    %v2307 = vsel %vm140, %v2275, %v2201
    %v2308 = vsel %vm140, %v2276, %v2203
    %v2309 = vsel %vm140, %v2277, %v2205
    %v2310 = vsel %vm140, %v2278, %v2207
    %v2311 = vsel %vm140, %v2279, %v2209
    %v2312 = vsel %vm140, %v2280, %v2211
    %v2313 = vsel %vm140, %v2281, %v2213
    %v2314 = vsel %vm140, %v2282, %v2215
    %v2315 = vsel %vm140, %v2283, %v2217
    %v2316 = vsel %vm140, %v2284, %v2219
    %v2317 = vld [vmem:[%s10] sm:$0xff]
    %v2318 = vld [vmem:[%s10 + $0x8] sm:$0xff]
    %v2319 = vld [vmem:[%s10 + $0x10] sm:$0xff]
    %v2320 = vld [vmem:[%s10 + $0x18] sm:$0xff]
    %v2321 = vld [vmem:[%s10 + $0x20] sm:$0xff]
    %v2322 = vld [vmem:[%s10 + $0x28] sm:$0xff]
    %2355 = vst [vmem:[#allocation1] ss:$4 sm:$0xff] %v2285
    %s2356 = scalar_lea.vmem [#allocation1], 1
    %2357 = vst [vmem:[%s2356] ss:$4 sm:$0xff] %v2286
    %s2358 = scalar_lea.vmem [#allocation1], 2
    %2359 = vst [vmem:[%s2358] ss:$4 sm:$0xff] %v2287
    %s2360 = scalar_lea.vmem [#allocation1], 3
    %2361 = vst [vmem:[%s2360] ss:$4 sm:$0xff] %v2288
    %s2362 = scalar_lea.vmem [#allocation1], 32
    %2363 = vst [vmem:[%s2362] ss:$4 sm:$0xff] %v2289
    %s2364 = scalar_lea.vmem [#allocation1], 33
    %2365 = vst [vmem:[%s2364] ss:$4 sm:$0xff] %v2290
    %s2366 = scalar_lea.vmem [#allocation1], 34
    %2367 = vst [vmem:[%s2366] ss:$4 sm:$0xff] %v2291
    %s2368 = scalar_lea.vmem [#allocation1], 35
    %2369 = vst [vmem:[%s2368] ss:$4 sm:$0xff] %v2292
    %v2370 = vld.sshfl [vmem:[#allocation1] sm:$0xff pattern:$0x73625140]
    %v2371 = vld.sshfl [vmem:[#allocation1 + $0x20] sm:$0xff pattern:$0x73625140]
    %2372 = vst [vmem:[#allocation1] ss:$4 sm:$0xff] %v2293
    %2373 = vst [vmem:[%s2356] ss:$4 sm:$0xff] %v2294
    %2374 = vst [vmem:[%s2358] ss:$4 sm:$0xff] %v2295
    %2375 = vst [vmem:[%s2360] ss:$4 sm:$0xff] %v2296
    %2376 = vst [vmem:[%s2362] ss:$4 sm:$0xff] %v2297
    %2377 = vst [vmem:[%s2364] ss:$4 sm:$0xff] %v2298
    %2378 = vst [vmem:[%s2366] ss:$4 sm:$0xff] %v2299
    %2379 = vst [vmem:[%s2368] ss:$4 sm:$0xff] %v2300
    %v2380 = vld.sshfl [vmem:[#allocation1] sm:$0xff pattern:$0x73625140]
    %v2381 = vld.sshfl [vmem:[#allocation1 + $0x20] sm:$0xff pattern:$0x73625140]
    %2382 = vst [vmem:[#allocation1] ss:$4 sm:$0xff] %v2301
    %2383 = vst [vmem:[%s2356] ss:$4 sm:$0xff] %v2302
    %2384 = vst [vmem:[%s2358] ss:$4 sm:$0xff] %v2303
    %2385 = vst [vmem:[%s2360] ss:$4 sm:$0xff] %v2304
    %2386 = vst [vmem:[%s2362] ss:$4 sm:$0xff] %v2305
    %2387 = vst [vmem:[%s2364] ss:$4 sm:$0xff] %v2306
    %2388 = vst [vmem:[%s2366] ss:$4 sm:$0xff] %v2307
    %2389 = vst [vmem:[%s2368] ss:$4 sm:$0xff] %v2308
    %v2390 = vld.sshfl [vmem:[#allocation1] sm:$0xff pattern:$0x73625140]
    %v2391 = vld.sshfl [vmem:[#allocation1 + $0x20] sm:$0xff pattern:$0x73625140]
    %2392 = vst [vmem:[#allocation1] ss:$4 sm:$0xff] %v2309
    %2393 = vst [vmem:[%s2356] ss:$4 sm:$0xff] %v2310
    %2394 = vst [vmem:[%s2358] ss:$4 sm:$0xff] %v2311
    %2395 = vst [vmem:[%s2360] ss:$4 sm:$0xff] %v2312
    %2396 = vst [vmem:[%s2362] ss:$4 sm:$0xff] %v2313
    %2397 = vst [vmem:[%s2364] ss:$4 sm:$0xff] %v2314
    %2398 = vst [vmem:[%s2366] ss:$4 sm:$0xff] %v2315
    %2399 = vst [vmem:[%s2368] ss:$4 sm:$0xff] %v2316
    %v2400 = vld.sshfl [vmem:[#allocation1] sm:$0xff pattern:$0x73625140]
    %v2401 = vld.sshfl [vmem:[#allocation1 + $0x20] sm:$0xff pattern:$0x73625140]
    %vm2402 = vcmask 392192
    %v2403 = vsel %vm2402, %v2370, 0
    %v2405 = vsel %vm2402, %v2371, 0
    %v2407 = vsel %vm2402, %v2380, 0
    %v2409 = vsel %vm2402, %v2381, 0
    %v2411 = vsel %vm2402, %v2390, 0
    %v2413 = vsel %vm2402, %v2391, 0
    %v2415 = vsel %vm2402, %v2400, 0
    %v2417 = vsel %vm2402, %v2401, 0
    %2419 = vmatpush.msra.mxu0 0.0
    %2420 = vmatpush.msra.mxu0 0.0
    %2421 = vmatpush.msra.mxu0 0.0
    %2422 = vmatpush.msra.mxu0 0.0
    %2423 = vmatpush.msra.mxu0 0.0
    %2424 = vmatpush.msra.mxu0 0.0
    %2425 = vmatpush.msra.mxu0 0.0
    %2426 = vmatpush.msra.mxu0 0.0
    %2427 = vmatpush.msra.mxu0 0.0
    %2428 = vmatpush.msra.mxu0 0.0
    %2429 = vmatpush.msra.mxu0 %v2322
    %2430 = vmatpush.msra.mxu0 %v2321
    %2431 = vmatpush.msra.mxu0 %v2320
    %2432 = vmatpush.msra.mxu0 %v2319
    %2433 = vmatpush.msra.mxu0 %v2318
    %2434 = vmatpush.msra.mxu0 %v2317
    %2435 = vmatmul.f32.gmra.mxu0 %v2403
    %v2436 = vpop.f32.mrf.mxu0
    %v2437 = vadd.f32 0.0, %v2436
    %2438 = vmatmul.f32.gmra.mxu0 %v2405
    %v2439 = vpop.f32.mrf.mxu0
    %v2440 = vadd.f32 0.0, %v2439
    %2441 = vmatmul.f32.gmra.mxu0 %v2407
    %v2442 = vpop.f32.mrf.mxu0
    %v2443 = vadd.f32 0.0, %v2442
    %2444 = vmatmul.f32.gmra.mxu0 %v2409
    %v2445 = vpop.f32.mrf.mxu0
    %v2446 = vadd.f32 0.0, %v2445
    %2447 = vmatmul.f32.gmra.mxu0 %v2411
    %v2448 = vpop.f32.mrf.mxu0
    %v2449 = vadd.f32 0.0, %v2448
    %2450 = vmatmul.f32.gmra.mxu0 %v2413
    %v2451 = vpop.f32.mrf.mxu0
    %v2452 = vadd.f32 0.0, %v2451
    %2453 = vmatmul.f32.gmra.mxu0 %v2415
    %v2454 = vpop.f32.mrf.mxu0
    %v2455 = vadd.f32 0.0, %v2454
    %2456 = vmatmul.f32.gmra.mxu0 %v2417
    %v2457 = vpop.f32.mrf.mxu0
    %v2458 = vadd.f32 0.0, %v2457
    %2459 = vdwg.mxu0
    %v2460 = vld [vmem:[%s11] sm:$0x1]
    %v2462 = vperm.slane %v2460, 0
    %v2464 = vmul.f32 %v2437, %v2462
    %v2465 = vmul.f32 %v2440, %v2462
    %v2466 = vmul.f32 %v2443, %v2462
    %v2467 = vmul.f32 %v2446, %v2462
    %v2468 = vmul.f32 %v2449, %v2462
    %v2469 = vmul.f32 %v2452, %v2462
    %v2470 = vmul.f32 %v2455, %v2462
    %v2471 = vmul.f32 %v2458, %v2462
    %v2472 = vld [vmem:[%s12] sm:$0x1]
    %v2474 = vperm.slane %v2472, 0
    %v2476 = vadd.f32 %v2464, %v2474
    %v2477 = vadd.f32 %v2465, %v2474
    %v2478 = vadd.f32 %v2466, %v2474
    %v2479 = vadd.f32 %v2467, %v2474
    %v2480 = vadd.f32 %v2468, %v2474
    %v2481 = vadd.f32 %v2469, %v2474
    %v2482 = vadd.f32 %v2470, %v2474
    %v2483 = vadd.f32 %v2471, %v2474
    %v2484 = vmax.f32 %v2476, 0.0
    %v2485 = vmax.f32 %v2477, 0.0
    %v2486 = vmax.f32 %v2478, 0.0
    %v2487 = vmax.f32 %v2479, 0.0
    %v2488 = vmax.f32 %v2480, 0.0
    %v2489 = vmax.f32 %v2481, 0.0
    %v2490 = vmax.f32 %v2482, 0.0
    %v2491 = vmax.f32 %v2483, 0.0
    %vm2492 = vcmask 58368
    %2493 = vst.msk [vmem:[#allocation4] sm:$0x3] %vm2492, 0.0
    %s2494 = scalar_lea.vmem [#allocation4], 66
    %2495 = vst.msk [vmem:[%s2494] sm:$0x3] %vm2492, 0.0
    %v2504 = vrot.slane %v2484, 2
    %v2505 = vrot.slane %v2484, 4
    %v2506 = vrot.slane %v2484, 6
    %v2507 = vrot.slane %v2485, 2
    %v2508 = vrot.slane %v2485, 4
    %v2509 = vrot.slane %v2485, 6
    %v2510 = vrot.slane %v2486, 2
    %v2511 = vrot.slane %v2486, 4
    %v2512 = vrot.slane %v2486, 6
    %v2513 = vrot.slane %v2487, 2
    %v2514 = vrot.slane %v2487, 4
    %v2515 = vrot.slane %v2487, 6
    %v2516 = vrot.slane %v2488, 2
    %v2517 = vrot.slane %v2488, 4
    %v2518 = vrot.slane %v2488, 6
    %v2519 = vrot.slane %v2489, 2
    %v2520 = vrot.slane %v2489, 4
    %v2521 = vrot.slane %v2489, 6
    %v2522 = vrot.slane %v2490, 2
    %v2523 = vrot.slane %v2490, 4
    %v2524 = vrot.slane %v2490, 6
    %v2525 = vrot.slane %v2491, 2
    %v2526 = vrot.slane %v2491, 4
    %v2527 = vrot.slane %v2491, 6
    %s2552 = scalar_lea.vmem [#allocation4], 2
    %2553 = vst.msk [vmem:[%s2552] sm:$0x3] %vm2492, %v2484
    %2554 = vst.msk [vmem:[%s2552 + $0x2] sm:$0x3] %vm2492, %v2504
    %2555 = vst.msk [vmem:[%s2552 + $0x4] sm:$0x3] %vm2492, %v2505
    %2556 = vst.msk [vmem:[%s2552 + $0x6] sm:$0x3] %vm2492, %v2506
    %2557 = vst.msk [vmem:[%s2552 + $0x8] sm:$0x3] %vm2492, %v2485
    %2558 = vst.msk [vmem:[%s2552 + $0xa] sm:$0x3] %vm2492, %v2507
    %2559 = vst.msk [vmem:[%s2552 + $0xc] sm:$0x3] %vm2492, %v2508
    %2560 = vst.msk [vmem:[%s2552 + $0xe] sm:$0x3] %vm2492, %v2509
    %2561 = vst.msk [vmem:[%s2552 + $0x10] sm:$0x3] %vm2492, %v2486
    %2562 = vst.msk [vmem:[%s2552 + $0x12] sm:$0x3] %vm2492, %v2510
    %2563 = vst.msk [vmem:[%s2552 + $0x14] sm:$0x3] %vm2492, %v2511
    %2564 = vst.msk [vmem:[%s2552 + $0x16] sm:$0x3] %vm2492, %v2512
    %2565 = vst.msk [vmem:[%s2552 + $0x18] sm:$0x3] %vm2492, %v2487
    %2566 = vst.msk [vmem:[%s2552 + $0x1a] sm:$0x3] %vm2492, %v2513
    %2567 = vst.msk [vmem:[%s2552 + $0x1c] sm:$0x3] %vm2492, %v2514
    %2568 = vst.msk [vmem:[%s2552 + $0x1e] sm:$0x3] %vm2492, %v2515
    %2569 = vst.msk [vmem:[%s2552 + $0x20] sm:$0x3] %vm2492, %v2488
    %2570 = vst.msk [vmem:[%s2552 + $0x22] sm:$0x3] %vm2492, %v2516
    %2571 = vst.msk [vmem:[%s2552 + $0x24] sm:$0x3] %vm2492, %v2517
    %2572 = vst.msk [vmem:[%s2552 + $0x26] sm:$0x3] %vm2492, %v2518
    %2573 = vst.msk [vmem:[%s2552 + $0x28] sm:$0x3] %vm2492, %v2489
    %2574 = vst.msk [vmem:[%s2552 + $0x2a] sm:$0x3] %vm2492, %v2519
    %2575 = vst.msk [vmem:[%s2552 + $0x2c] sm:$0x3] %vm2492, %v2520
    %2576 = vst.msk [vmem:[%s2552 + $0x2e] sm:$0x3] %vm2492, %v2521
    %2577 = vst.msk [vmem:[%s2552 + $0x30] sm:$0x3] %vm2492, %v2490
    %2578 = vst.msk [vmem:[%s2552 + $0x32] sm:$0x3] %vm2492, %v2522
    %2579 = vst.msk [vmem:[%s2552 + $0x34] sm:$0x3] %vm2492, %v2523
    %2580 = vst.msk [vmem:[%s2552 + $0x36] sm:$0x3] %vm2492, %v2524
    %2581 = vst.msk [vmem:[%s2552 + $0x38] sm:$0x3] %vm2492, %v2491
    %2582 = vst.msk [vmem:[%s2552 + $0x3a] sm:$0x3] %vm2492, %v2525
    %2583 = vst.msk [vmem:[%s2552 + $0x3c] sm:$0x3] %vm2492, %v2526
    %2584 = vst.msk [vmem:[%s2552 + $0x3e] sm:$0x3] %vm2492, %v2527
    %v2585 = vld [vmem:[#allocation4] sm:$0x3]
    %v2586 = vld [vmem:[#allocation4 + $0x2] sm:$0x3]
    %v2587 = vld [vmem:[#allocation4 + $0x4] sm:$0x3]
    %v2588 = vld [vmem:[#allocation4 + $0x6] sm:$0x3]
    %v2589 = vld [vmem:[#allocation4 + $0x8] sm:$0x3]
    %v2590 = vld [vmem:[#allocation4 + $0xa] sm:$0x3]
    %v2591 = vld [vmem:[#allocation4 + $0xc] sm:$0x3]
    %v2592 = vld [vmem:[#allocation4 + $0xe] sm:$0x3]
    %v2593 = vld [vmem:[#allocation4 + $0x10] sm:$0x3]
    %v2594 = vld [vmem:[#allocation4 + $0x12] sm:$0x3]
    %v2595 = vld [vmem:[#allocation4 + $0x14] sm:$0x3]
    %v2596 = vld [vmem:[#allocation4 + $0x16] sm:$0x3]
    %v2597 = vld [vmem:[#allocation4 + $0x18] sm:$0x3]
    %v2598 = vld [vmem:[#allocation4 + $0x1a] sm:$0x3]
    %v2599 = vld [vmem:[#allocation4 + $0x1c] sm:$0x3]
    %v2600 = vld [vmem:[#allocation4 + $0x1e] sm:$0x3]
    %v2601 = vld [vmem:[#allocation4 + $0x20] sm:$0x3]
    %v2602 = vld [vmem:[#allocation4 + $0x22] sm:$0x3]
    %v2603 = vld [vmem:[#allocation4 + $0x24] sm:$0x3]
    %v2604 = vld [vmem:[#allocation4 + $0x26] sm:$0x3]
    %v2605 = vld [vmem:[#allocation4 + $0x28] sm:$0x3]
    %v2606 = vld [vmem:[#allocation4 + $0x2a] sm:$0x3]
    %v2607 = vld [vmem:[#allocation4 + $0x2c] sm:$0x3]
    %v2608 = vld [vmem:[#allocation4 + $0x2e] sm:$0x3]
    %v2609 = vld [vmem:[#allocation4 + $0x30] sm:$0x3]
    %v2610 = vld [vmem:[#allocation4 + $0x32] sm:$0x3]
    %v2611 = vld [vmem:[#allocation4 + $0x34] sm:$0x3]
    %v2612 = vld [vmem:[#allocation4 + $0x36] sm:$0x3]
    %v2613 = vld [vmem:[#allocation4 + $0x38] sm:$0x3]
    %v2614 = vld [vmem:[#allocation4 + $0x3a] sm:$0x3]
    %v2615 = vld [vmem:[#allocation4 + $0x3c] sm:$0x3]
    %v2616 = vld [vmem:[#allocation4 + $0x3e] sm:$0x3]
    %v2617 = vld [vmem:[#allocation4 + $0x40] sm:$0x3]
    %v2618 = vld [vmem:[#allocation4 + $0x42] sm:$0x3]
    %2651 = vrot.lane.b32.xlu0 %v2586, 8
    %v2652 = vpop.permute.xlu0 %2651
    %2653 = vrot.lane.b32.xlu0 %v2587, 8
    %v2654 = vpop.permute.xlu0 %2653
    %2655 = vrot.lane.b32.xlu0 %v2588, 8
    %v2656 = vpop.permute.xlu0 %2655
    %2657 = vrot.lane.b32.xlu0 %v2589, 8
    %v2658 = vpop.permute.xlu0 %2657
    %2659 = vrot.lane.b32.xlu0 %v2590, 8
    %v2660 = vpop.permute.xlu0 %2659
    %2661 = vrot.lane.b32.xlu0 %v2591, 8
    %v2662 = vpop.permute.xlu0 %2661
    %2663 = vrot.lane.b32.xlu0 %v2592, 8
    %v2664 = vpop.permute.xlu0 %2663
    %2665 = vrot.lane.b32.xlu0 %v2593, 8
    %v2666 = vpop.permute.xlu0 %2665
    %2667 = vrot.lane.b32.xlu0 %v2594, 8
    %v2668 = vpop.permute.xlu0 %2667
    %2669 = vrot.lane.b32.xlu0 %v2595, 8
    %v2670 = vpop.permute.xlu0 %2669
    %2671 = vrot.lane.b32.xlu0 %v2596, 8
    %v2672 = vpop.permute.xlu0 %2671
    %2673 = vrot.lane.b32.xlu0 %v2597, 8
    %v2674 = vpop.permute.xlu0 %2673
    %2675 = vrot.lane.b32.xlu0 %v2598, 8
    %v2676 = vpop.permute.xlu0 %2675
    %2677 = vrot.lane.b32.xlu0 %v2599, 8
    %v2678 = vpop.permute.xlu0 %2677
    %2679 = vrot.lane.b32.xlu0 %v2600, 8
    %v2680 = vpop.permute.xlu0 %2679
    %2681 = vrot.lane.b32.xlu0 %v2601, 8
    %v2682 = vpop.permute.xlu0 %2681
    %2683 = vrot.lane.b32.xlu0 %v2602, 8
    %v2684 = vpop.permute.xlu0 %2683
    %2685 = vrot.lane.b32.xlu0 %v2603, 8
    %v2686 = vpop.permute.xlu0 %2685
    %2687 = vrot.lane.b32.xlu0 %v2604, 8
    %v2688 = vpop.permute.xlu0 %2687
    %2689 = vrot.lane.b32.xlu0 %v2605, 8
    %v2690 = vpop.permute.xlu0 %2689
    %2691 = vrot.lane.b32.xlu0 %v2606, 8
    %v2692 = vpop.permute.xlu0 %2691
    %2693 = vrot.lane.b32.xlu0 %v2607, 8
    %v2694 = vpop.permute.xlu0 %2693
    %2695 = vrot.lane.b32.xlu0 %v2608, 8
    %v2696 = vpop.permute.xlu0 %2695
    %2697 = vrot.lane.b32.xlu0 %v2609, 8
    %v2698 = vpop.permute.xlu0 %2697
    %2699 = vrot.lane.b32.xlu0 %v2610, 8
    %v2700 = vpop.permute.xlu0 %2699
    %2701 = vrot.lane.b32.xlu0 %v2611, 8
    %v2702 = vpop.permute.xlu0 %2701
    %2703 = vrot.lane.b32.xlu0 %v2612, 8
    %v2704 = vpop.permute.xlu0 %2703
    %2705 = vrot.lane.b32.xlu0 %v2613, 8
    %v2706 = vpop.permute.xlu0 %2705
    %2707 = vrot.lane.b32.xlu0 %v2614, 8
    %v2708 = vpop.permute.xlu0 %2707
    %2709 = vrot.lane.b32.xlu0 %v2615, 8
    %v2710 = vpop.permute.xlu0 %2709
    %2711 = vrot.lane.b32.xlu0 %v2616, 8
    %v2712 = vpop.permute.xlu0 %2711
    %2713 = vrot.lane.b32.xlu0 %v2617, 8
    %v2714 = vpop.permute.xlu0 %2713
    %2748 = vrot.lane.b32.xlu0 %v2587, 16
    %v2749 = vpop.permute.xlu0 %2748
    %2750 = vrot.lane.b32.xlu0 %v2588, 16
    %v2751 = vpop.permute.xlu0 %2750
    %2752 = vrot.lane.b32.xlu0 %v2589, 16
    %v2753 = vpop.permute.xlu0 %2752
    %2754 = vrot.lane.b32.xlu0 %v2590, 16
    %v2755 = vpop.permute.xlu0 %2754
    %2756 = vrot.lane.b32.xlu0 %v2591, 16
    %v2757 = vpop.permute.xlu0 %2756
    %2758 = vrot.lane.b32.xlu0 %v2592, 16
    %v2759 = vpop.permute.xlu0 %2758
    %2760 = vrot.lane.b32.xlu0 %v2593, 16
    %v2761 = vpop.permute.xlu0 %2760
    %2762 = vrot.lane.b32.xlu0 %v2594, 16
    %v2763 = vpop.permute.xlu0 %2762
    %2764 = vrot.lane.b32.xlu0 %v2595, 16
    %v2765 = vpop.permute.xlu0 %2764
    %2766 = vrot.lane.b32.xlu0 %v2596, 16
    %v2767 = vpop.permute.xlu0 %2766
    %2768 = vrot.lane.b32.xlu0 %v2597, 16
    %v2769 = vpop.permute.xlu0 %2768
    %2770 = vrot.lane.b32.xlu0 %v2598, 16
    %v2771 = vpop.permute.xlu0 %2770
    %2772 = vrot.lane.b32.xlu0 %v2599, 16
    %v2773 = vpop.permute.xlu0 %2772
    %2774 = vrot.lane.b32.xlu0 %v2600, 16
    %v2775 = vpop.permute.xlu0 %2774
    %2776 = vrot.lane.b32.xlu0 %v2601, 16
    %v2777 = vpop.permute.xlu0 %2776
    %2778 = vrot.lane.b32.xlu0 %v2602, 16
    %v2779 = vpop.permute.xlu0 %2778
    %2780 = vrot.lane.b32.xlu0 %v2603, 16
    %v2781 = vpop.permute.xlu0 %2780
    %2782 = vrot.lane.b32.xlu0 %v2604, 16
    %v2783 = vpop.permute.xlu0 %2782
    %2784 = vrot.lane.b32.xlu0 %v2605, 16
    %v2785 = vpop.permute.xlu0 %2784
    %2786 = vrot.lane.b32.xlu0 %v2606, 16
    %v2787 = vpop.permute.xlu0 %2786
    %2788 = vrot.lane.b32.xlu0 %v2607, 16
    %v2789 = vpop.permute.xlu0 %2788
    %2790 = vrot.lane.b32.xlu0 %v2608, 16
    %v2791 = vpop.permute.xlu0 %2790
    %2792 = vrot.lane.b32.xlu0 %v2609, 16
    %v2793 = vpop.permute.xlu0 %2792
    %2794 = vrot.lane.b32.xlu0 %v2610, 16
    %v2795 = vpop.permute.xlu0 %2794
    %2796 = vrot.lane.b32.xlu0 %v2611, 16
    %v2797 = vpop.permute.xlu0 %2796
    %2798 = vrot.lane.b32.xlu0 %v2612, 16
    %v2799 = vpop.permute.xlu0 %2798
    %2800 = vrot.lane.b32.xlu0 %v2613, 16
    %v2801 = vpop.permute.xlu0 %2800
    %2802 = vrot.lane.b32.xlu0 %v2614, 16
    %v2803 = vpop.permute.xlu0 %2802
    %2804 = vrot.lane.b32.xlu0 %v2615, 16
    %v2805 = vpop.permute.xlu0 %2804
    %2806 = vrot.lane.b32.xlu0 %v2616, 16
    %v2807 = vpop.permute.xlu0 %2806
    %2808 = vrot.lane.b32.xlu0 %v2617, 16
    %v2809 = vpop.permute.xlu0 %2808
    %2810 = vrot.lane.b32.xlu0 %v2618, 16
    %v2811 = vpop.permute.xlu0 %2810
    %vm2844 = vcmask 64512
    %v2845 = vsel %vm2844, %v2585, %v2652
    %v2846 = vsel %vm2844, %v2586, %v2654
    %v2847 = vsel %vm2844, %v2587, %v2656
    %v2848 = vsel %vm2844, %v2588, %v2658
    %v2849 = vsel %vm2844, %v2589, %v2660
    %v2850 = vsel %vm2844, %v2590, %v2662
    %v2851 = vsel %vm2844, %v2591, %v2664
    %v2852 = vsel %vm2844, %v2592, %v2666
    %v2853 = vsel %vm2844, %v2593, %v2668
    %v2854 = vsel %vm2844, %v2594, %v2670
    %v2855 = vsel %vm2844, %v2595, %v2672
    %v2856 = vsel %vm2844, %v2596, %v2674
    %v2857 = vsel %vm2844, %v2597, %v2676
    %v2858 = vsel %vm2844, %v2598, %v2678
    %v2859 = vsel %vm2844, %v2599, %v2680
    %v2860 = vsel %vm2844, %v2600, %v2682
    %v2861 = vsel %vm2844, %v2601, %v2684
    %v2862 = vsel %vm2844, %v2602, %v2686
    %v2863 = vsel %vm2844, %v2603, %v2688
    %v2864 = vsel %vm2844, %v2604, %v2690
    %v2865 = vsel %vm2844, %v2605, %v2692
    %v2866 = vsel %vm2844, %v2606, %v2694
    %v2867 = vsel %vm2844, %v2607, %v2696
    %v2868 = vsel %vm2844, %v2608, %v2698
    %v2869 = vsel %vm2844, %v2609, %v2700
    %v2870 = vsel %vm2844, %v2610, %v2702
    %v2871 = vsel %vm2844, %v2611, %v2704
    %v2872 = vsel %vm2844, %v2612, %v2706
    %v2873 = vsel %vm2844, %v2613, %v2708
    %v2874 = vsel %vm2844, %v2614, %v2710
    %v2875 = vsel %vm2844, %v2615, %v2712
    %v2876 = vsel %vm2844, %v2616, %v2714
    %v2877 = vsel %vm2252, %v2845, %v2749
    %v2878 = vsel %vm2252, %v2846, %v2751
    %v2879 = vsel %vm2252, %v2847, %v2753
    %v2880 = vsel %vm2252, %v2848, %v2755
    %v2881 = vsel %vm2252, %v2849, %v2757
    %v2882 = vsel %vm2252, %v2850, %v2759
    %v2883 = vsel %vm2252, %v2851, %v2761
    %v2884 = vsel %vm2252, %v2852, %v2763
    %v2885 = vsel %vm2252, %v2853, %v2765
    %v2886 = vsel %vm2252, %v2854, %v2767
    %v2887 = vsel %vm2252, %v2855, %v2769
    %v2888 = vsel %vm2252, %v2856, %v2771
    %v2889 = vsel %vm2252, %v2857, %v2773
    %v2890 = vsel %vm2252, %v2858, %v2775
    %v2891 = vsel %vm2252, %v2859, %v2777
    %v2892 = vsel %vm2252, %v2860, %v2779
    %v2893 = vsel %vm2252, %v2861, %v2781
    %v2894 = vsel %vm2252, %v2862, %v2783
    %v2895 = vsel %vm2252, %v2863, %v2785
    %v2896 = vsel %vm2252, %v2864, %v2787
    %v2897 = vsel %vm2252, %v2865, %v2789
    %v2898 = vsel %vm2252, %v2866, %v2791
    %v2899 = vsel %vm2252, %v2867, %v2793
    %v2900 = vsel %vm2252, %v2868, %v2795
    %v2901 = vsel %vm2252, %v2869, %v2797
    %v2902 = vsel %vm2252, %v2870, %v2799
    %v2903 = vsel %vm2252, %v2871, %v2801
    %v2904 = vsel %vm2252, %v2872, %v2803
    %v2905 = vsel %vm2252, %v2873, %v2805
    %v2906 = vsel %vm2252, %v2874, %v2807
    %v2907 = vsel %vm2252, %v2875, %v2809
    %v2908 = vsel %vm2252, %v2876, %v2811
    %v2909 = vld [vmem:[%s13] sm:$0xff]
    %v2910 = vld [vmem:[%s13 + $0x8] sm:$0xff]
    %v2911 = vld [vmem:[%s13 + $0x10] sm:$0xff]
    %2944 = vst [vmem:[#allocation1] ss:$4 sm:$0xff] %v2877
    %s2945 = scalar_lea.vmem [#allocation1], 1
    %2946 = vst [vmem:[%s2945] ss:$4 sm:$0xff] %v2878
    %s2947 = scalar_lea.vmem [#allocation1], 2
    %2948 = vst [vmem:[%s2947] ss:$4 sm:$0xff] %v2879
    %s2949 = scalar_lea.vmem [#allocation1], 3
    %2950 = vst [vmem:[%s2949] ss:$4 sm:$0xff] %v2880
    %s2951 = scalar_lea.vmem [#allocation1], 32
    %2952 = vst [vmem:[%s2951] ss:$4 sm:$0xff] %v2881
    %s2953 = scalar_lea.vmem [#allocation1], 33
    %2954 = vst [vmem:[%s2953] ss:$4 sm:$0xff] %v2882
    %s2955 = scalar_lea.vmem [#allocation1], 34
    %2956 = vst [vmem:[%s2955] ss:$4 sm:$0xff] %v2883
    %s2957 = scalar_lea.vmem [#allocation1], 35
    %2958 = vst [vmem:[%s2957] ss:$4 sm:$0xff] %v2884
    %v2959 = vld.sshfl [vmem:[#allocation1] sm:$0xff pattern:$0x73625140]
    %v2960 = vld.sshfl [vmem:[#allocation1 + $0x20] sm:$0xff pattern:$0x73625140]
    %2961 = vst [vmem:[#allocation1] ss:$4 sm:$0xff] %v2885
    %2962 = vst [vmem:[%s2945] ss:$4 sm:$0xff] %v2886
    %2963 = vst [vmem:[%s2947] ss:$4 sm:$0xff] %v2887
    %2964 = vst [vmem:[%s2949] ss:$4 sm:$0xff] %v2888
    %2965 = vst [vmem:[%s2951] ss:$4 sm:$0xff] %v2889
    %2966 = vst [vmem:[%s2953] ss:$4 sm:$0xff] %v2890
    %2967 = vst [vmem:[%s2955] ss:$4 sm:$0xff] %v2891
    %2968 = vst [vmem:[%s2957] ss:$4 sm:$0xff] %v2892
    %v2969 = vld.sshfl [vmem:[#allocation1] sm:$0xff pattern:$0x73625140]
    %v2970 = vld.sshfl [vmem:[#allocation1 + $0x20] sm:$0xff pattern:$0x73625140]
    %2971 = vst [vmem:[#allocation1] ss:$4 sm:$0xff] %v2893
    %2972 = vst [vmem:[%s2945] ss:$4 sm:$0xff] %v2894
    %2973 = vst [vmem:[%s2947] ss:$4 sm:$0xff] %v2895
    %2974 = vst [vmem:[%s2949] ss:$4 sm:$0xff] %v2896
    %2975 = vst [vmem:[%s2951] ss:$4 sm:$0xff] %v2897
    %2976 = vst [vmem:[%s2953] ss:$4 sm:$0xff] %v2898
    %2977 = vst [vmem:[%s2955] ss:$4 sm:$0xff] %v2899
    %2978 = vst [vmem:[%s2957] ss:$4 sm:$0xff] %v2900
    %v2979 = vld.sshfl [vmem:[#allocation1] sm:$0xff pattern:$0x73625140]
    %v2980 = vld.sshfl [vmem:[#allocation1 + $0x20] sm:$0xff pattern:$0x73625140]
    %2981 = vst [vmem:[#allocation1] ss:$4 sm:$0xff] %v2901
    %2982 = vst [vmem:[%s2945] ss:$4 sm:$0xff] %v2902
    %2983 = vst [vmem:[%s2947] ss:$4 sm:$0xff] %v2903
    %2984 = vst [vmem:[%s2949] ss:$4 sm:$0xff] %v2904
    %2985 = vst [vmem:[%s2951] ss:$4 sm:$0xff] %v2905
    %2986 = vst [vmem:[%s2953] ss:$4 sm:$0xff] %v2906
    %2987 = vst [vmem:[%s2955] ss:$4 sm:$0xff] %v2907
    %2988 = vst [vmem:[%s2957] ss:$4 sm:$0xff] %v2908
    %v2989 = vld.sshfl [vmem:[#allocation1] sm:$0xff pattern:$0x73625140]
    %v2990 = vld.sshfl [vmem:[#allocation1 + $0x20] sm:$0xff pattern:$0x73625140]
    %vm2991 = vcmask 195584
    %v2992 = vsel %vm2991, %v2959, 0
    %v2994 = vsel %vm2991, %v2960, 0
    %v2996 = vsel %vm2991, %v2969, 0
    %v2998 = vsel %vm2991, %v2970, 0
    %v3000 = vsel %vm2991, %v2979, 0
    %v3002 = vsel %vm2991, %v2980, 0
    %v3004 = vsel %vm2991, %v2989, 0
    %v3006 = vsel %vm2991, %v2990, 0
    %3008 = vmatpush.msra.mxu0 0.0
    %3009 = vmatpush.msra.mxu0 0.0
    %3010 = vmatpush.msra.mxu0 0.0
    %3011 = vmatpush.msra.mxu0 0.0
    %3012 = vmatpush.msra.mxu0 0.0
    %3013 = vmatpush.msra.mxu0 0.0
    %3014 = vmatpush.msra.mxu0 0.0
    %3015 = vmatpush.msra.mxu0 0.0
    %3016 = vmatpush.msra.mxu0 0.0
    %3017 = vmatpush.msra.mxu0 0.0
    %3018 = vmatpush.msra.mxu0 0.0
    %3019 = vmatpush.msra.mxu0 0.0
    %3020 = vmatpush.msra.mxu0 0.0
    %3021 = vmatpush.msra.mxu0 %v2911
    %3022 = vmatpush.msra.mxu0 %v2910
    %3023 = vmatpush.msra.mxu0 %v2909
    %3024 = vmatmul.f32.gmra.mxu0 %v2992
    %v3025 = vpop.f32.mrf.mxu0
    %v3026 = vadd.f32 0.0, %v3025
    %3027 = vmatmul.f32.gmra.mxu0 %v2994
    %v3028 = vpop.f32.mrf.mxu0
    %v3029 = vadd.f32 0.0, %v3028
    %3030 = vmatmul.f32.gmra.mxu0 %v2996
    %v3031 = vpop.f32.mrf.mxu0
    %v3032 = vadd.f32 0.0, %v3031
    %3033 = vmatmul.f32.gmra.mxu0 %v2998
    %v3034 = vpop.f32.mrf.mxu0
    %v3035 = vadd.f32 0.0, %v3034
    %3036 = vmatmul.f32.gmra.mxu0 %v3000
    %v3037 = vpop.f32.mrf.mxu0
    %v3038 = vadd.f32 0.0, %v3037
    %3039 = vmatmul.f32.gmra.mxu0 %v3002
    %v3040 = vpop.f32.mrf.mxu0
    %v3041 = vadd.f32 0.0, %v3040
    %3042 = vmatmul.f32.gmra.mxu0 %v3004
    %v3043 = vpop.f32.mrf.mxu0
    %v3044 = vadd.f32 0.0, %v3043
    %3045 = vmatmul.f32.gmra.mxu0 %v3006
    %v3046 = vpop.f32.mrf.mxu0
    %v3047 = vadd.f32 0.0, %v3046
    %3048 = vdwg.mxu0
    %v3049 = vld [vmem:[#allocation5] sm:$0x1]
    %v3051 = vperm.slane %v3049, 0
    %v3053 = vmul.f32 %v3026, %v3051
    %v3054 = vmul.f32 %v3029, %v3051
    %v3055 = vmul.f32 %v3032, %v3051
    %v3056 = vmul.f32 %v3035, %v3051
    %v3057 = vmul.f32 %v3038, %v3051
    %v3058 = vmul.f32 %v3041, %v3051
    %v3059 = vmul.f32 %v3044, %v3051
    %v3060 = vmul.f32 %v3047, %v3051
    %v3061 = vld [vmem:[#allocation6] sm:$0x1]
    %v3063 = vperm.slane %v3061, 0
    %v3065 = vadd.f32 %v3053, %v3063
    %v3066 = vadd.f32 %v3054, %v3063
    %v3067 = vadd.f32 %v3055, %v3063
    %v3068 = vadd.f32 %v3056, %v3063
    %v3069 = vadd.f32 %v3057, %v3063
    %v3070 = vadd.f32 %v3058, %v3063
    %v3071 = vadd.f32 %v3059, %v3063
    %v3072 = vadd.f32 %v3060, %v3063
    %vm3073 = vcmask 7168
    %3074 = vst.msk [vmem:[%s16] sm:$0xff] %vm3073, %v3065
    %3075 = vst.msk [vmem:[%s16 + $0x8] sm:$0xff] %vm3073, %v3066
    %3076 = vst.msk [vmem:[%s16 + $0x10] sm:$0xff] %vm3073, %v3067
    %3077 = vst.msk [vmem:[%s16 + $0x18] sm:$0xff] %vm3073, %v3068
    %3078 = vst.msk [vmem:[%s16 + $0x20] sm:$0xff] %vm3073, %v3069
    %3079 = vst.msk [vmem:[%s16 + $0x28] sm:$0xff] %vm3073, %v3070
    %3080 = vst.msk [vmem:[%s16 + $0x30] sm:$0xff] %vm3073, %v3071
    %3081 = vst.msk [vmem:[%s16 + $0x38] sm:$0xff] %vm3073, %v3072
    // Predicated region
    $region74: #{tpu_custom_call.1} parent=1 // pred_check
      _
    $region75: #{tpu_custom_call.1} parent=1 // pred_check_branch
      %3083 = sbr.rel (0) target = $region77
    $region76: #{tpu_custom_call.1} parent=1 // pred_region
      _
    $region77: #{tpu_custom_call.1} parent=1 // pred_fallthru
      _
    // Predicated region
    $region78: #{tpu_custom_call.1} parent=1 // pred_check
      _
    $region79: #{tpu_custom_call.1} parent=1 // pred_check_branch
      %3085 = sbr.rel (0) target = $region81
    $region80: #{tpu_custom_call.1} parent=1 // pred_region
      _
    $region81: #{tpu_custom_call.1} parent=1 // pred_fallthru
      _
    %3086 = vsyncpa [#allocation8], 1
    %3087 = vsyncpa [#allocation10], 1

</llo_original>
